<compile_context>
chip_gen: v6e
topology: v6e:2x2x1
jax: 0.10.0
libtpu: 0.0.40
codegen_flags: <defaults>
</compile_context>

<pallas_src>
import functools
import math

import jax
import jax.numpy as jnp
from jax.experimental import pallas as pl
from jax.experimental.pallas import tpu as pltpu

# bf16 operands -> native MXU throughput on every generation; f32 accumulate is
# kept via preferred_element_type, and LN/softmax statistics stay f32.
MATMUL_DTYPE = jnp.bfloat16
PARAM_DTYPE = jnp.bfloat16   # weight matrices stored bf16 in HBM
ACT_DTYPE = jnp.bfloat16     # activations stored bf16 in HBM


def _tpu_defaults():
    """Per-generation scoped-VMEM limit and matmul tile targets."""
    try:
        kind = jax.devices()[0].device_kind.lower()
    except Exception:  # pragma: no cover - e.g. backend not initialized
        kind = ""
    if "v7" in kind:
        # v7x: only 64 MiB physical VMEM -> stay at the 32 MiB scoped default
        # and keep modest tiles (re-derive before growing D or S).
        return 32 * 1024 * 1024, 256, 512, 512
    if any(t in kind for t in ("v4", "v5", "v6")):
        # 128 MiB physical VMEM: larger tiles amortize the ~0.35 us per-grid-
        # step overhead and push mem-bound matmuls toward the HBM roofline.
        return 96 * 1024 * 1024, 512, 1024, 1024
    return 32 * 1024 * 1024, 256, 512, 512


_VMEM_LIMIT, _TM, _TN, _TK = _tpu_defaults()
# bf16 packs 16 rows per sublane tile -> tm quantum 16 avoids masked stores.
_TM_QUANTUM = 16 if ACT_DTYPE == jnp.bfloat16 else 8


def _tile(dim, target, quantum):
    """Largest divisor of `dim` that is <= target and a multiple of `quantum`,
    or the full dim if dim <= target (or no such divisor exists)."""
    if dim <= target:
        return dim
    t = (target // quantum) * quantum
    while t >= quantum:
        if dim % t == 0:
            return t
        t -= quantum
    return dim  # TODO(synk): fallback can exceed the VMEM budget for odd dims.


# ----------------------------------------------------------------------------
# Kernel 1: tiled matmul + bias (+ optional ReLU)
# ----------------------------------------------------------------------------
def _matmul_bias_single_kernel(x_ref, w_ref, b_ref, o_ref, *, relu):
    # Single K step: no accumulator scratch, no zero-init, no final copy.
    y = jnp.dot(x_ref[...].astype(MATMUL_DTYPE),
                w_ref[...].astype(MATMUL_DTYPE),
                preferred_element_type=jnp.float32) + b_ref[...]
    if relu:
        y = jnp.maximum(y, 0.0)
    o_ref[...] = y.astype(o_ref.dtype)


def _matmul_bias_kernel(x_ref, w_ref, b_ref, o_ref, acc_ref, *, relu):
    k = pl.program_id(2)

    @pl.when(k == 0)
    def _():
        acc_ref[...] = jnp.zeros_like(acc_ref)

    acc_ref[...] += jnp.dot(x_ref[...].astype(MATMUL_DTYPE),
                            w_ref[...].astype(MATMUL_DTYPE),
                            preferred_element_type=jnp.float32)

    @pl.when(k == pl.num_programs(2) - 1)
    def _():
        y = acc_ref[...] + b_ref[...]
        if relu:
            y = jnp.maximum(y, 0.0)
        o_ref[...] = y.astype(o_ref.dtype)


def linear(x2d, w, b, *, relu=False, tm=None, tn=None, tk=None):
    """x2d: [M, K], w: [K, N], b: [N] -> [M, N] (= x @ w + b, optional ReLU)."""
    M, K = x2d.shape
    _, N = w.shape
    tm = _tile(M, tm or _TM, _TM_QUANTUM)
    tn = _tile(N, tn or _TN, 128)
    tk = _tile(K, tk or _TK, 128)
    b2 = b.reshape(1, N).astype(jnp.float32)

    if tk == K:  # whole contraction in one step
        return pl.pallas_call(
            functools.partial(_matmul_bias_single_kernel, relu=relu),
            out_shape=jax.ShapeDtypeStruct((M, N), x2d.dtype),
            grid=(M // tm, N // tn),
            in_specs=[
                pl.BlockSpec((tm, K), lambda i, j: (i, 0)),
                pl.BlockSpec((K, tn), lambda i, j: (0, j)),
                pl.BlockSpec((1, tn), lambda i, j: (0, j)),
            ],
            out_specs=pl.BlockSpec((tm, tn), lambda i, j: (i, j)),
            compiler_params=pltpu.CompilerParams(
                dimension_semantics=("parallel", "parallel"),
                vmem_limit_bytes=_VMEM_LIMIT,
            ),
        )(x2d, w, b2)

    return pl.pallas_call(
        functools.partial(_matmul_bias_kernel, relu=relu),
        out_shape=jax.ShapeDtypeStruct((M, N), x2d.dtype),
        grid=(M // tm, N // tn, K // tk),
        in_specs=[
            pl.BlockSpec((tm, tk), lambda i, j, k: (i, k)),
            pl.BlockSpec((tk, tn), lambda i, j, k: (k, j)),
            pl.BlockSpec((1, tn), lambda i, j, k: (0, j)),
        ],
        out_specs=pl.BlockSpec((tm, tn), lambda i, j, k: (i, j)),
        scratch_shapes=[pltpu.VMEM((tm, tn), jnp.float32)],
        compiler_params=pltpu.CompilerParams(
            dimension_semantics=("parallel", "parallel", "arbitrary"),
            vmem_limit_bytes=_VMEM_LIMIT,
        ),
    )(x2d, w, b2)


# ----------------------------------------------------------------------------
# Kernel 2: tiled matmul + bias + residual add + LayerNorm (fused epilogue)
# ----------------------------------------------------------------------------
def _ln_epilogue(y, g, beta, eps):
    mu = jnp.mean(y, axis=-1, keepdims=True)
    yc = y - mu
    var = jnp.mean(yc * yc, axis=-1, keepdims=True)
    inv = jax.lax.rsqrt(var + eps)
    return yc * inv * g + beta


def _matmul_add_ln_single_kernel(x_ref, w_ref, b_ref, res_ref, g_ref, beta_ref,
                                 o_ref, *, eps):
    y = jnp.dot(x_ref[...].astype(MATMUL_DTYPE),
                w_ref[...].astype(MATMUL_DTYPE),
                preferred_element_type=jnp.float32)
    y = y + b_ref[...] + res_ref[...].astype(jnp.float32)
    o_ref[...] = _ln_epilogue(y, g_ref[...], beta_ref[...], eps).astype(o_ref.dtype)


def _matmul_add_ln_kernel(x_ref, w_ref, b_ref, res_ref, g_ref, beta_ref,
                          o_ref, acc_ref, *, eps):
    k = pl.program_id(1)

    @pl.when(k == 0)
    def _():
        acc_ref[...] = jnp.zeros_like(acc_ref)

    acc_ref[...] += jnp.dot(x_ref[...].astype(MATMUL_DTYPE),
                            w_ref[...].astype(MATMUL_DTYPE),
                            preferred_element_type=jnp.float32)

    @pl.when(k == pl.num_programs(1) - 1)
    def _():
        y = acc_ref[...] + b_ref[...] + res_ref[...].astype(jnp.float32)
        o_ref[...] = _ln_epilogue(y, g_ref[...], beta_ref[...], eps).astype(o_ref.dtype)


def matmul_add_ln(x2d, w, b, res2d, gamma, beta, *, eps=1e-5, tm=None, tk=None):
    """LayerNorm((x2d @ w + b) + res2d) over the last axis.  N = model_dim is
    kept full-width so the LayerNorm reduction stays inside one output tile."""
    M, K = x2d.shape
    _, D = w.shape
    tm = _tile(M, tm or _TM, _TM_QUANTUM)
    tk = _tile(K, tk or _TK, 128)
    b2 = b.reshape(1, D).astype(jnp.float32)
    g2 = gamma.reshape(1, D).astype(jnp.float32)
    be2 = beta.reshape(1, D).astype(jnp.float32)

    if tk == K:
        return pl.pallas_call(
            functools.partial(_matmul_add_ln_single_kernel, eps=eps),
            out_shape=jax.ShapeDtypeStruct((M, D), x2d.dtype),
            grid=(M // tm,),
            in_specs=[
                pl.BlockSpec((tm, K), lambda i: (i, 0)),
                pl.BlockSpec((K, D), lambda i: (0, 0)),
                pl.BlockSpec((1, D), lambda i: (0, 0)),
                pl.BlockSpec((tm, D), lambda i: (i, 0)),
                pl.BlockSpec((1, D), lambda i: (0, 0)),
                pl.BlockSpec((1, D), lambda i: (0, 0)),
            ],
            out_specs=pl.BlockSpec((tm, D), lambda i: (i, 0)),
            compiler_params=pltpu.CompilerParams(
                dimension_semantics=("parallel",),
                vmem_limit_bytes=_VMEM_LIMIT,
            ),
        )(x2d, w, b2, res2d, g2, be2)

    return pl.pallas_call(
        functools.partial(_matmul_add_ln_kernel, eps=eps),
        out_shape=jax.ShapeDtypeStruct((M, D), x2d.dtype),
        grid=(M // tm, K // tk),
        in_specs=[
            pl.BlockSpec((tm, tk), lambda i, k: (i, k)),
            pl.BlockSpec((tk, D), lambda i, k: (k, 0)),
            pl.BlockSpec((1, D), lambda i, k: (0, 0)),
            pl.BlockSpec((tm, D), lambda i, k: (i, 0)),
            pl.BlockSpec((1, D), lambda i, k: (0, 0)),
            pl.BlockSpec((1, D), lambda i, k: (0, 0)),
        ],
        out_specs=pl.BlockSpec((tm, D), lambda i, k: (i, 0)),
        scratch_shapes=[pltpu.VMEM((tm, D), jnp.float32)],
        compiler_params=pltpu.CompilerParams(
            dimension_semantics=("parallel", "arbitrary"),
            vmem_limit_bytes=_VMEM_LIMIT,
        ),
    )(x2d, w, b2, res2d, g2, be2)


# ----------------------------------------------------------------------------
# Kernel 3: multi-head attention core, grid = (batch, head)
# ----------------------------------------------------------------------------
def _attention_kernel(q_ref, k_ref, v_ref, *rest, causal, scale, has_bias):
    if has_bias:
        bias_ref, o_ref = rest
    else:
        (o_ref,) = rest

    q = q_ref[0, 0]                       # (Sq, dh)
    k = k_ref[0, 0]                       # (Skv, dh)
    v = v_ref[0, 0]                       # (Skv, dh)

    # Fold 1/sqrt(dh) into the small (Sq, dh) operand instead of the scores.
    q = (q * scale).astype(MATMUL_DTYPE)
    # scores = q @ k^T (contract head dim, no explicit transpose), f32 accumulate.
    s = jax.lax.dot_general(q, k.astype(MATMUL_DTYPE),
                            (((1,), (1,)), ((), ())),
                            preferred_element_type=jnp.float32)   # (Sq, Skv)
    if has_bias:
        s = s + bias_ref[0]               # (1, Skv) additive key-padding bias
    if causal:
        row = jax.lax.broadcasted_iota(jnp.int32, s.shape, 0)
        col = jax.lax.broadcasted_iota(jnp.int32, s.shape, 1)
        s = jnp.where(col > row, jnp.float32(-1e9), s)

    m = jnp.max(s, axis=-1, keepdims=True)        # f32 softmax statistics
    p = jnp.exp(s - m)                            # unnormalized probs
    l = jnp.sum(p, axis=-1, keepdims=True)
    o = jnp.dot(p.astype(MATMUL_DTYPE), v.astype(MATMUL_DTYPE),
                preferred_element_type=jnp.float32)               # (Sq, dh)
    o = o * pl.reciprocal(l, approx=True)         # normalize after PV matmul
    o_ref[0, 0] = o.astype(o_ref.dtype)


def attention(q, k, v, key_bias, *, causal):
    """q: [B, H, Sq, dh], k/v: [B, H, Skv, dh], key_bias: [B, 1, Skv] or None."""
    B, H, Sq, dh = q.shape
    Skv = k.shape[2]
    scale = 1.0 / math.sqrt(dh)
    has_bias = key_bias is not None

    in_specs = [
        pl.BlockSpec((1, 1, Sq, dh), lambda b, h: (b, h, 0, 0)),
        pl.BlockSpec((1, 1, Skv, dh), lambda b, h: (b, h, 0, 0)),
        pl.BlockSpec((1, 1, Skv, dh), lambda b, h: (b, h, 0, 0)),
    ]
    args = [q, k, v]
    if has_bias:
        in_specs.append(pl.BlockSpec((1, 1, Skv), lambda b, h: (b, 0, 0)))
        args.append(key_bias)

    # TODO(synk): add a KV grid axis with online softmax (flash-style) for long
    #             sequences, especially on v7x (64 MiB physical VMEM).
    return pl.pallas_call(
        functools.partial(_attention_kernel, causal=causal, scale=scale,
                          has_bias=has_bias),
        out_shape=jax.ShapeDtypeStruct((B, H, Sq, dh), q.dtype),
        grid=(B, H),                       # two parallel axes -> both v7x TCs busy
        in_specs=in_specs,
        out_specs=pl.BlockSpec((1, 1, Sq, dh), lambda b, h: (b, h, 0, 0)),
        compiler_params=pltpu.CompilerParams(
            dimension_semantics=("parallel", "parallel"),
            vmem_limit_bytes=_VMEM_LIMIT,
        ),
    )(*args)


# ----------------------------------------------------------------------------
# Module composition (plain JAX glue)
# ----------------------------------------------------------------------------
def _key_bias(pad_mask, B, Skv):
    if pad_mask is None:
        return None   # no-bias kernel variant: no zeros HBM array, DMA or add
    # pad_mask: [B, Skv] bool, True = valid key token (inverse of torch's
    # key_padding_mask convention, where True = ignore).
    return jnp.where(pad_mask[:, None, :], 0.0, -1e9).astype(jnp.float32)


def mha_block(x_q, x_kv, residual, p, h_num, *, causal, key_pad_mask,
              ln_g, ln_b):
    """MultiheadAttention -> (+residual) -> LayerNorm, with fused projections.

    The head split/merge transposes are done by XLA directly on the fused QKV /
    KV projection outputs (no intermediate jnp.split copies); head-major layout
    lets the attention kernel run pure 2-D matmuls per (batch, head) grid step.
    """
    B, Sq, D = x_q.shape
    Skv = x_kv.shape[1]
    dh = D // h_num

    if "w_qkv" in p:          # self-attention: fused [D, 3D] QKV projection
        qkv = linear(x_q.reshape(-1, D), p["w_qkv"], p["b_qkv"])
        qkv = qkv.reshape(B, Sq, 3, h_num, dh)
        q = jnp.transpose(qkv[:, :, 0], (0, 2, 1, 3))          # [B, H, Sq, dh]
        k = jnp.transpose(qkv[:, :, 1], (0, 2, 1, 3))
        v = jnp.transpose(qkv[:, :, 2], (0, 2, 1, 3))
    else:                     # cross-attention: Q from decoder, fused KV from enc
        q2 = linear(x_q.reshape(-1, D), p["w_q"], p["b_q"])
        q = jnp.transpose(q2.reshape(B, Sq, h_num, dh), (0, 2, 1, 3))
        kv = linear(x_kv.reshape(-1, D), p["w_kv"], p["b_kv"])
        kv = kv.reshape(B, Skv, 2, h_num, dh)
        k = jnp.transpose(kv[:, :, 0], (0, 2, 1, 3))
        v = jnp.transpose(kv[:, :, 1], (0, 2, 1, 3))

    ctx = attention(q, k, v, _key_bias(key_pad_mask, B, Skv), causal=causal)
    ctx = jnp.transpose(ctx, (0, 2, 1, 3)).reshape(B * Sq, D)  # merge heads

    out = matmul_add_ln(ctx, p["wo"], p["bo"],
                        residual.reshape(-1, D), ln_g, ln_b)
    return out.reshape(B, Sq, D)


def ffn_block(x, residual, p, ln_g, ln_b):
    """FeedForward -> (+residual) -> LayerNorm, LN fused into FFN-2 matmul."""
    B, S, D = x.shape
    h = linear(x.reshape(-1, D), p["w1"], p["b1"], relu=True)     # [M, 4D]
    out = matmul_add_ln(h, p["w2"], p["b2"], residual.reshape(-1, D),
                        ln_g, ln_b)
    return out.reshape(B, S, D)


def encoder_layer(x, p, h_num, pad_mask=None):
    h = mha_block(x, x, x, p["att"], h_num, causal=False,
                  key_pad_mask=pad_mask, ln_g=p["ln1_g"], ln_b=p["ln1_b"])
    return ffn_block(h, h, p["ff"], p["ln2_g"], p["ln2_b"])


def decoder_layer(x, enc, p, h_num, x_pad_mask=None, enc_pad_mask=None):
    h = mha_block(x, x, x, p["masked_att"], h_num, causal=True,
                  key_pad_mask=x_pad_mask, ln_g=p["ln1_g"], ln_b=p["ln1_b"])
    h2 = mha_block(h, enc, h, p["att"], h_num, causal=False,
                   key_pad_mask=enc_pad_mask, ln_g=p["ln2_g"], ln_b=p["ln2_b"])
    return ffn_block(h2, h2, p["ff"], p["ln3_g"], p["ln3_b"])


@functools.partial(jax.jit, static_argnames=("h_num",))
def transformer_forward(x, y, params, h_num, x_pad_mask=None, y_pad_mask=None):
    # Positional-encoding add is a trivial broadcast; left to XLA.
    pos = params["pos_enc"]
    enc = (x + pos[None, : x.shape[1], :]).astype(ACT_DTYPE)
    for ep in params["encoders"]:
        enc = encoder_layer(enc, ep, h_num, x_pad_mask)
    dec = (y + pos[None, : y.shape[1], :]).astype(ACT_DTYPE)
    for dp in params["decoders"]:
        dec = decoder_layer(dec, enc, dp, h_num, y_pad_mask, x_pad_mask)
    # NOTE: the PyTorch module defines self.linear but never uses it in forward.
    return dec.astype(jnp.float32)


# ----------------------------------------------------------------------------
# Deterministic parameter / pos-enc construction
# ----------------------------------------------------------------------------
def make_pos_enc(max_seq_len, model_dim):
    pos = jnp.arange(max_seq_len, dtype=jnp.float32)[:, None]        # [S, 1]
    dim = jnp.arange(model_dim)                                      # [D]
    even = (dim % 2) == 0
    expo = jnp.where(even, dim, dim - 1).astype(jnp.float32) / model_dim
    ang = pos / jnp.power(10000.0, expo)[None, :]
    return jnp.where(even[None, :], jnp.sin(ang), jnp.cos(ang)).astype(jnp.float32)


def init_params(key, model_dim, max_seq_len, enc_num, dec_num):
    D = model_dim
    keys = iter(jax.random.split(key, 8 * (enc_num + dec_num) + 4))

    def lin(din, dout):
        w = 0.05 * jax.random.normal(next(keys), (din, dout), jnp.float32)
        return w.astype(PARAM_DTYPE)

    def ln():
        return jnp.ones((D,), jnp.float32), jnp.zeros((D,), jnp.float32)

    def self_att():
        return {"w_qkv": lin(D, 3 * D), "b_qkv": jnp.zeros((3 * D,), jnp.float32),
                "wo": lin(D, D), "bo": jnp.zeros((D,), jnp.float32)}

    def cross_att():
        return {"w_q": lin(D, D), "b_q": jnp.zeros((D,), jnp.float32),
                "w_kv": lin(D, 2 * D), "b_kv": jnp.zeros((2 * D,), jnp.float32),
                "wo": lin(D, D), "bo": jnp.zeros((D,), jnp.float32)}

    def ff():
        return {"w1": lin(D, 4 * D), "b1": jnp.zeros((4 * D,), jnp.float32),
                "w2": lin(4 * D, D), "b2": jnp.zeros((D,), jnp.float32)}

    encoders = []
    for _ in range(enc_num):
        g1, b1 = ln(); g2, b2 = ln()
        encoders.append({"att": self_att(), "ff": ff(),
                         "ln1_g": g1, "ln1_b": b1, "ln2_g": g2, "ln2_b": b2})

    decoders = []
    for _ in range(dec_num):
        g1, b1 = ln(); g2, b2 = ln(); g3, b3 = ln()
        decoders.append({"masked_att": self_att(), "att": cross_att(), "ff": ff(),
                         "ln1_g": g1, "ln1_b": b1, "ln2_g": g2, "ln2_b": b2,
                         "ln3_g": g3, "ln3_b": b3})

    return {"encoders": encoders, "decoders": decoders,
            "pos_enc": make_pos_enc(max_seq_len, D)}


if __name__ == "__main__":
    B, S, D, H = 2, 8, 128, 4          # batch, max_seq_len, model_dim, heads
    ENC_N, DEC_N = 2, 2                # encoder / decoder layer counts

    key = jax.random.PRNGKey(0)
    kx, ky, kp = jax.random.split(key, 3)
    x = jax.random.normal(kx, (B, S, D), jnp.float32)   # encoder-side input
    y = jax.random.normal(ky, (B, S, D), jnp.float32)   # decoder-side input
    params = init_params(kp, D, S, ENC_N, DEC_N)

    out = transformer_forward(x, y, params, h_num=H)
    out = jax.block_until_ready(out)

    assert out.shape == (B, S, D)
    assert bool(jnp.all(jnp.isfinite(out)))
    print("KERNEL_OK")
</pallas_src>

<mosaic_0001>
module attributes {stable_mosaic.version = 11 : i64} {
  func.func @_matmul_bias_single_kernel(%arg0: i32, %arg1: i32, %arg2: memref<16x128xbf16, #tpu.memory_space<vmem>>, %arg3: memref<128x384xbf16, #tpu.memory_space<vmem>>, %arg4: memref<1x384xf32, #tpu.memory_space<vmem>>, %arg5: memref<16x384xbf16, #tpu.memory_space<vmem>>) attributes {dimension_semantics = [#tpu.dimension_semantics<parallel>, #tpu.dimension_semantics<parallel>], iteration_bounds = array<i64: 1, 1>, scalar_prefetch = 0 : i64, scratch_operands = 0 : i64, tpu.core_type = #tpu.core_type<tc>, window_params = [{transform_indices = @transform_0, window_bounds = array<i64: 16, 128>}, {transform_indices = @transform_1, window_bounds = array<i64: 128, 384>}, {transform_indices = @transform_2, window_bounds = array<i64: 1, 384>}, {transform_indices = @transform_3, window_bounds = array<i64: 16, 384>}]} {
    %c0 = arith.constant 0 : index
    %c0_0 = arith.constant 0 : index
    %0 = vector.load %arg2[%c0, %c0_0] : memref<16x128xbf16, #tpu.memory_space<vmem>>, vector<16x128xbf16>
    %c0_1 = arith.constant 0 : index
    %c0_2 = arith.constant 0 : index
    %1 = vector.load %arg3[%c0_1, %c0_2] : memref<128x384xbf16, #tpu.memory_space<vmem>>, vector<128x384xbf16>
    %cst = arith.constant dense<0.000000e+00> : vector<16x384xf32>
    %2 = tpu.matmul %0, %1, %cst {dimension_numbers = #tpu.dot_dimension_numbers<[1], [0], [0], [1], [0, 0, 1, 1], [], []>} : vector<16x128xbf16>, vector<128x384xbf16>, vector<16x384xf32> -> vector<16x384xf32>
    %c0_3 = arith.constant 0 : index
    %c0_4 = arith.constant 0 : index
    %3 = vector.load %arg4[%c0_3, %c0_4] : memref<1x384xf32, #tpu.memory_space<vmem>>, vector<1x384xf32>
    %4 = vector.broadcast %3 : vector<1x384xf32> to vector<16x384xf32>
    %5 = arith.addf %2, %4 : vector<16x384xf32>
    %6 = arith.truncf %5 : vector<16x384xf32> to vector<16x384xbf16>
    %c0_5 = arith.constant 0 : index
    %c0_6 = arith.constant 0 : index
    %7 = vector.load %arg5[%c0_5, %c0_6] : memref<16x384xbf16, #tpu.memory_space<vmem>>, vector<16x384xbf16>
    tpu.vector_store %arg5[%c0_5, %c0_6], %6 {strides = array<i32>} : memref<16x384xbf16, #tpu.memory_space<vmem>>, vector<16x384xbf16>,
    return
  }
  func.func @transform_0(%arg0: i32, %arg1: i32) -> (i32, i32) {
    %c0_i32 = arith.constant 0 : i32
    %c0_i32_0 = arith.constant 0 : i32
    return %arg0, %c0_i32 : i32, i32
  }
  func.func @transform_1(%arg0: i32, %arg1: i32) -> (i32, i32) {
    %c0_i32 = arith.constant 0 : i32
    %c0_i32_0 = arith.constant 0 : i32
    return %c0_i32, %arg1 : i32, i32
  }
  func.func @transform_2(%arg0: i32, %arg1: i32) -> (i32, i32) {
    %c0_i32 = arith.constant 0 : i32
    %c0_i32_0 = arith.constant 0 : i32
    return %c0_i32, %arg1 : i32, i32
  }
  func.func @transform_3(%arg0: i32, %arg1: i32) -> (i32, i32) {
    %c0_i32 = arith.constant 0 : i32
    return %arg0, %arg1 : i32, i32
  }
}

module attributes {stable_mosaic.version = 11 : i64} {
  func.func @_attention_kernel(%arg0: i32, %arg1: i32, %arg2: memref<1x1x8x32xbf16, #tpu.memory_space<vmem>>, %arg3: memref<1x1x8x32xbf16, #tpu.memory_space<vmem>>, %arg4: memref<1x1x8x32xbf16, #tpu.memory_space<vmem>>, %arg5: memref<1x1x8x32xbf16, #tpu.memory_space<vmem>>) attributes {dimension_semantics = [#tpu.dimension_semantics<parallel>, #tpu.dimension_semantics<parallel>], iteration_bounds = array<i64: 2, 4>, scalar_prefetch = 0 : i64, scratch_operands = 0 : i64, tpu.core_type = #tpu.core_type<tc>, window_params = [{transform_indices = @transform_0, window_bounds = array<i64: 1, 1, 8, 32>}, {transform_indices = @transform_1, window_bounds = array<i64: 1, 1, 8, 32>}, {transform_indices = @transform_2, window_bounds = array<i64: 1, 1, 8, 32>}, {transform_indices = @transform_3, window_bounds = array<i64: 1, 1, 8, 32>}]} {
    %c0 = arith.constant 0 : index
    %c0_0 = arith.constant 0 : index
    %c0_1 = arith.constant 0 : index
    %c0_2 = arith.constant 0 : index
    %0 = vector.load %arg2[%c0, %c0_0, %c0_1, %c0_2] : memref<1x1x8x32xbf16, #tpu.memory_space<vmem>>, vector<1x1x8x32xbf16>
    %1 = vector.shape_cast %0 : vector<1x1x8x32xbf16> to vector<8x32xbf16>
    %c0_3 = arith.constant 0 : index
    %c0_4 = arith.constant 0 : index
    %c0_5 = arith.constant 0 : index
    %c0_6 = arith.constant 0 : index
    %2 = vector.load %arg3[%c0_3, %c0_4, %c0_5, %c0_6] : memref<1x1x8x32xbf16, #tpu.memory_space<vmem>>, vector<1x1x8x32xbf16>
    %3 = vector.shape_cast %2 : vector<1x1x8x32xbf16> to vector<8x32xbf16>
    %c0_7 = arith.constant 0 : index
    %c0_8 = arith.constant 0 : index
    %c0_9 = arith.constant 0 : index
    %c0_10 = arith.constant 0 : index
    %4 = vector.load %arg4[%c0_7, %c0_8, %c0_9, %c0_10] : memref<1x1x8x32xbf16, #tpu.memory_space<vmem>>, vector<1x1x8x32xbf16>
    %5 = vector.shape_cast %4 : vector<1x1x8x32xbf16> to vector<8x32xbf16>
    %cst = arith.constant 1.767580e-01 : bf16
    %6 = vector.broadcast %cst : bf16 to vector<8x32xbf16>
    %7 = arith.mulf %1, %6 : vector<8x32xbf16>
    %cst_11 = arith.constant dense<0.000000e+00> : vector<8x8xf32>
    %8 = tpu.matmul %7, %3, %cst_11 {dimension_numbers = #tpu.dot_dimension_numbers<[1], [1], [0], [0], [0, 0, 1, 0], [], []>} : vector<8x32xbf16>, vector<8x32xbf16>, vector<8x8xf32> -> vector<8x8xf32>
    %9 = tpu.iota {dimensions = array<i32: 0>} : vector<8x8xi32>
    %10 = tpu.iota {dimensions = array<i32: 1>} : vector<8x8xi32>
    %11 = arith.cmpi sgt, %10, %9 : vector<8x8xi32>
    %cst_12 = arith.constant -1.000000e+09 : f32
    %12 = vector.broadcast %cst_12 : f32 to vector<8x8xf32>
    %13 = arith.select %11, %12, %8 : vector<8x8xi1>, vector<8x8xf32>
    %cst_13 = arith.constant dense<0xFF800000> : vector<8xf32>
    %14 = vector.multi_reduction <maximumf>, %13, %cst_13 [1] : vector<8x8xf32> to vector<8xf32>
    %15 = vector.shape_cast %14 : vector<8xf32> to vector<8x1xf32>
    %16 = vector.broadcast %15 : vector<8x1xf32> to vector<8x8xf32>
    %17 = arith.subf %13, %16 : vector<8x8xf32>
    %18 = math.exp %17 : vector<8x8xf32>
    %cst_14 = arith.constant dense<0.000000e+00> : vector<8xf32>
    %19 = vector.multi_reduction <add>, %18, %cst_14 [1] : vector<8x8xf32> to vector<8xf32>
    %20 = vector.shape_cast %19 : vector<8xf32> to vector<8x1xf32>
    %21 = arith.truncf %18 : vector<8x8xf32> to vector<8x8xbf16>
    %cst_15 = arith.constant dense<0.000000e+00> : vector<8x32xf32>
    %22 = tpu.matmul %21, %5, %cst_15 {dimension_numbers = #tpu.dot_dimension_numbers<[1], [0], [0], [1], [0, 0, 1, 1], [], []>} : vector<8x8xbf16>, vector<8x32xbf16>, vector<8x32xf32> -> vector<8x32xf32>
    %23 = tpu.reciprocal %20 {approx = true} : vector<8x1xf32> -> vector<8x1xf32>
    %24 = vector.broadcast %23 : vector<8x1xf32> to vector<8x32xf32>
    %25 = arith.mulf %22, %24 : vector<8x32xf32>
    %26 = arith.truncf %25 : vector<8x32xf32> to vector<8x32xbf16>
    %c0_16 = arith.constant 0 : index
    %c0_17 = arith.constant 0 : index
    %c0_18 = arith.constant 0 : index
    %c0_19 = arith.constant 0 : index
    %27 = vector.load %arg5[%c0_16, %c0_17, %c0_18, %c0_19] : memref<1x1x8x32xbf16, #tpu.memory_space<vmem>>, vector<1x1x8x32xbf16>
    %28 = vector.shape_cast %27 : vector<1x1x8x32xbf16> to vector<8x32xbf16>
    %29 = vector.shape_cast %26 : vector<8x32xbf16> to vector<1x1x8x32xbf16>
    tpu.vector_store %arg5[%c0_16, %c0_17, %c0_18, %c0_19], %29 {strides = array<i32>} : memref<1x1x8x32xbf16, #tpu.memory_space<vmem>>, vector<1x1x8x32xbf16>,
    return
  }
  func.func @transform_0(%arg0: i32, %arg1: i32) -> (i32, i32, i32, i32) {
    %c0_i32 = arith.constant 0 : i32
    %c0_i32_0 = arith.constant 0 : i32
    %c0_i32_1 = arith.constant 0 : i32
    return %arg0, %arg1, %c0_i32, %c0_i32_0 : i32, i32, i32, i32
  }
  func.func @transform_1(%arg0: i32, %arg1: i32) -> (i32, i32, i32, i32) {
    %c0_i32 = arith.constant 0 : i32
    %c0_i32_0 = arith.constant 0 : i32
    %c0_i32_1 = arith.constant 0 : i32
    return %arg0, %arg1, %c0_i32, %c0_i32_0 : i32, i32, i32, i32
  }
  func.func @transform_2(%arg0: i32, %arg1: i32) -> (i32, i32, i32, i32) {
    %c0_i32 = arith.constant 0 : i32
    %c0_i32_0 = arith.constant 0 : i32
    %c0_i32_1 = arith.constant 0 : i32
    return %arg0, %arg1, %c0_i32, %c0_i32_0 : i32, i32, i32, i32
  }
  func.func @transform_3(%arg0: i32, %arg1: i32) -> (i32, i32, i32, i32) {
    %c0_i32 = arith.constant 0 : i32
    %c0_i32_0 = arith.constant 0 : i32
    %c0_i32_1 = arith.constant 0 : i32
    return %arg0, %arg1, %c0_i32, %c0_i32_0 : i32, i32, i32, i32
  }
}

module attributes {stable_mosaic.version = 11 : i64} {
  func.func @_matmul_add_ln_single_kernel(%arg0: i32, %arg1: memref<16x128xbf16, #tpu.memory_space<vmem>>, %arg2: memref<128x128xbf16, #tpu.memory_space<vmem>>, %arg3: memref<1x128xf32, #tpu.memory_space<vmem>>, %arg4: memref<16x128xbf16, #tpu.memory_space<vmem>>, %arg5: memref<1x128xf32, #tpu.memory_space<vmem>>, %arg6: memref<1x128xf32, #tpu.memory_space<vmem>>, %arg7: memref<16x128xbf16, #tpu.memory_space<vmem>>) attributes {dimension_semantics = [#tpu.dimension_semantics<parallel>], iteration_bounds = array<i64: 1>, scalar_prefetch = 0 : i64, scratch_operands = 0 : i64, tpu.core_type = #tpu.core_type<tc>, window_params = [{transform_indices = @transform_0, window_bounds = array<i64: 16, 128>}, {pipeline_mode = #tpu.pipeline_mode<synchronous>, transform_indices = @transform_1, window_bounds = array<i64: 128, 128>}, {pipeline_mode = #tpu.pipeline_mode<synchronous>, transform_indices = @transform_2, window_bounds = array<i64: 1, 128>}, {transform_indices = @transform_3, window_bounds = array<i64: 16, 128>}, {pipeline_mode = #tpu.pipeline_mode<synchronous>, transform_indices = @transform_4, window_bounds = array<i64: 1, 128>}, {pipeline_mode = #tpu.pipeline_mode<synchronous>, transform_indices = @transform_5, window_bounds = array<i64: 1, 128>}, {transform_indices = @transform_6, window_bounds = array<i64: 16, 128>}]} {
    %c0 = arith.constant 0 : index
    %c0_0 = arith.constant 0 : index
    %0 = vector.load %arg1[%c0, %c0_0] : memref<16x128xbf16, #tpu.memory_space<vmem>>, vector<16x128xbf16>
    %c0_1 = arith.constant 0 : index
    %c0_2 = arith.constant 0 : index
    %1 = vector.load %arg2[%c0_1, %c0_2] : memref<128x128xbf16, #tpu.memory_space<vmem>>, vector<128x128xbf16>
    %cst = arith.constant dense<0.000000e+00> : vector<16x128xf32>
    %2 = tpu.matmul %0, %1, %cst {dimension_numbers = #tpu.dot_dimension_numbers<[1], [0], [0], [1], [0, 0, 1, 1], [], []>} : vector<16x128xbf16>, vector<128x128xbf16>, vector<16x128xf32> -> vector<16x128xf32>
    %c0_3 = arith.constant 0 : index
    %c0_4 = arith.constant 0 : index
    %3 = vector.load %arg3[%c0_3, %c0_4] : memref<1x128xf32, #tpu.memory_space<vmem>>, vector<1x128xf32>
    %4 = vector.broadcast %3 : vector<1x128xf32> to vector<16x128xf32>
    %5 = arith.addf %2, %4 : vector<16x128xf32>
    %c0_5 = arith.constant 0 : index
    %c0_6 = arith.constant 0 : index
    %6 = vector.load %arg4[%c0_5, %c0_6] : memref<16x128xbf16, #tpu.memory_space<vmem>>, vector<16x128xbf16>
    %7 = arith.extf %6 : vector<16x128xbf16> to vector<16x128xf32>
    %8 = arith.addf %5, %7 : vector<16x128xf32>
    %c0_7 = arith.constant 0 : index
    %c0_8 = arith.constant 0 : index
    %9 = vector.load %arg5[%c0_7, %c0_8] : memref<1x128xf32, #tpu.memory_space<vmem>>, vector<1x128xf32>
    %c0_9 = arith.constant 0 : index
    %c0_10 = arith.constant 0 : index
    %10 = vector.load %arg6[%c0_9, %c0_10] : memref<1x128xf32, #tpu.memory_space<vmem>>, vector<1x128xf32>
    %cst_11 = arith.constant dense<0.000000e+00> : vector<16xf32>
    %11 = vector.multi_reduction <add>, %8, %cst_11 [1] : vector<16x128xf32> to vector<16xf32>
    %12 = vector.shape_cast %11 : vector<16xf32> to vector<16x1xf32>
    %cst_12 = arith.constant 1.280000e+02 : f32
    %13 = vector.broadcast %cst_12 : f32 to vector<16x1xf32>
    %14 = arith.divf %12, %13 : vector<16x1xf32>
    %15 = vector.broadcast %14 : vector<16x1xf32> to vector<16x128xf32>
    %16 = arith.subf %8, %15 : vector<16x128xf32>
    %17 = arith.mulf %16, %16 : vector<16x128xf32>
    %cst_13 = arith.constant dense<0.000000e+00> : vector<16xf32>
    %18 = vector.multi_reduction <add>, %17, %cst_13 [1] : vector<16x128xf32> to vector<16xf32>
    %19 = vector.shape_cast %18 : vector<16xf32> to vector<16x1xf32>
    %cst_14 = arith.constant 1.280000e+02 : f32
    %20 = vector.broadcast %cst_14 : f32 to vector<16x1xf32>
    %21 = arith.divf %19, %20 : vector<16x1xf32>
    %cst_15 = arith.constant 9.99999974E-6 : f32
    %22 = vector.broadcast %cst_15 : f32 to vector<16x1xf32>
    %23 = arith.addf %21, %22 : vector<16x1xf32>
    %24 = math.rsqrt %23 : vector<16x1xf32>
    %25 = vector.broadcast %24 : vector<16x1xf32> to vector<16x128xf32>
    %26 = arith.mulf %16, %25 : vector<16x128xf32>
    %27 = vector.broadcast %9 : vector<1x128xf32> to vector<16x128xf32>
    %28 = arith.mulf %26, %27 : vector<16x128xf32>
    %29 = vector.broadcast %10 : vector<1x128xf32> to vector<16x128xf32>
    %30 = arith.addf %28, %29 : vector<16x128xf32>
    %31 = arith.truncf %30 : vector<16x128xf32> to vector<16x128xbf16>
    %c0_16 = arith.constant 0 : index
    %c0_17 = arith.constant 0 : index
    %32 = vector.load %arg7[%c0_16, %c0_17] : memref<16x128xbf16, #tpu.memory_space<vmem>>, vector<16x128xbf16>
    tpu.vector_store %arg7[%c0_16, %c0_17], %31 {strides = array<i32>} : memref<16x128xbf16, #tpu.memory_space<vmem>>, vector<16x128xbf16>,
    return
  }
  func.func @transform_0(%arg0: i32) -> (i32, i32) {
    %c0_i32 = arith.constant 0 : i32
    %c0_i32_0 = arith.constant 0 : i32
    return %arg0, %c0_i32 : i32, i32
  }
  func.func @transform_1(%arg0: i32) -> (i32, i32) {
    %c0_i32 = arith.constant 0 : i32
    %c0_i32_0 = arith.constant 0 : i32
    %c0_i32_1 = arith.constant 0 : i32
    return %c0_i32, %c0_i32_0 : i32, i32
  }
  func.func @transform_2(%arg0: i32) -> (i32, i32) {
    %c0_i32 = arith.constant 0 : i32
    %c0_i32_0 = arith.constant 0 : i32
    %c0_i32_1 = arith.constant 0 : i32
    return %c0_i32, %c0_i32_0 : i32, i32
  }
  func.func @transform_3(%arg0: i32) -> (i32, i32) {
    %c0_i32 = arith.constant 0 : i32
    %c0_i32_0 = arith.constant 0 : i32
    return %arg0, %c0_i32 : i32, i32
  }
  func.func @transform_4(%arg0: i32) -> (i32, i32) {
    %c0_i32 = arith.constant 0 : i32
    %c0_i32_0 = arith.constant 0 : i32
    %c0_i32_1 = arith.constant 0 : i32
    return %c0_i32, %c0_i32_0 : i32, i32
  }
  func.func @transform_5(%arg0: i32) -> (i32, i32) {
    %c0_i32 = arith.constant 0 : i32
    %c0_i32_0 = arith.constant 0 : i32
    %c0_i32_1 = arith.constant 0 : i32
    return %c0_i32, %c0_i32_0 : i32, i32
  }
  func.func @transform_6(%arg0: i32) -> (i32, i32) {
    %c0_i32 = arith.constant 0 : i32
    %c0_i32_0 = arith.constant 0 : i32
    return %arg0, %c0_i32 : i32, i32
  }
}

module attributes {stable_mosaic.version = 11 : i64} {
  func.func @_matmul_bias_single_kernel(%arg0: i32, %arg1: i32, %arg2: memref<16x128xbf16, #tpu.memory_space<vmem>>, %arg3: memref<128x128xbf16, #tpu.memory_space<vmem>>, %arg4: memref<1x128xf32, #tpu.memory_space<vmem>>, %arg5: memref<16x128xbf16, #tpu.memory_space<vmem>>) attributes {dimension_semantics = [#tpu.dimension_semantics<parallel>, #tpu.dimension_semantics<parallel>], iteration_bounds = array<i64: 1, 1>, scalar_prefetch = 0 : i64, scratch_operands = 0 : i64, tpu.core_type = #tpu.core_type<tc>, window_params = [{transform_indices = @transform_0, window_bounds = array<i64: 16, 128>}, {transform_indices = @transform_1, window_bounds = array<i64: 128, 128>}, {transform_indices = @transform_2, window_bounds = array<i64: 1, 128>}, {transform_indices = @transform_3, window_bounds = array<i64: 16, 128>}]} {
    %c0 = arith.constant 0 : index
    %c0_0 = arith.constant 0 : index
    %0 = vector.load %arg2[%c0, %c0_0] : memref<16x128xbf16, #tpu.memory_space<vmem>>, vector<16x128xbf16>
    %c0_1 = arith.constant 0 : index
    %c0_2 = arith.constant 0 : index
    %1 = vector.load %arg3[%c0_1, %c0_2] : memref<128x128xbf16, #tpu.memory_space<vmem>>, vector<128x128xbf16>
    %cst = arith.constant dense<0.000000e+00> : vector<16x128xf32>
    %2 = tpu.matmul %0, %1, %cst {dimension_numbers = #tpu.dot_dimension_numbers<[1], [0], [0], [1], [0, 0, 1, 1], [], []>} : vector<16x128xbf16>, vector<128x128xbf16>, vector<16x128xf32> -> vector<16x128xf32>
    %c0_3 = arith.constant 0 : index
    %c0_4 = arith.constant 0 : index
    %3 = vector.load %arg4[%c0_3, %c0_4] : memref<1x128xf32, #tpu.memory_space<vmem>>, vector<1x128xf32>
    %4 = vector.broadcast %3 : vector<1x128xf32> to vector<16x128xf32>
    %5 = arith.addf %2, %4 : vector<16x128xf32>
    %6 = arith.truncf %5 : vector<16x128xf32> to vector<16x128xbf16>
    %c0_5 = arith.constant 0 : index
    %c0_6 = arith.constant 0 : index
    %7 = vector.load %arg5[%c0_5, %c0_6] : memref<16x128xbf16, #tpu.memory_space<vmem>>, vector<16x128xbf16>
    tpu.vector_store %arg5[%c0_5, %c0_6], %6 {strides = array<i32>} : memref<16x128xbf16, #tpu.memory_space<vmem>>, vector<16x128xbf16>,
    return
  }
  func.func @transform_0(%arg0: i32, %arg1: i32) -> (i32, i32) {
    %c0_i32 = arith.constant 0 : i32
    %c0_i32_0 = arith.constant 0 : i32
    return %arg0, %c0_i32 : i32, i32
  }
  func.func @transform_1(%arg0: i32, %arg1: i32) -> (i32, i32) {
    %c0_i32 = arith.constant 0 : i32
    %c0_i32_0 = arith.constant 0 : i32
    return %c0_i32, %arg1 : i32, i32
  }
  func.func @transform_2(%arg0: i32, %arg1: i32) -> (i32, i32) {
    %c0_i32 = arith.constant 0 : i32
    %c0_i32_0 = arith.constant 0 : i32
    return %c0_i32, %arg1 : i32, i32
  }
  func.func @transform_3(%arg0: i32, %arg1: i32) -> (i32, i32) {
    %c0_i32 = arith.constant 0 : i32
    return %arg0, %arg1 : i32, i32
  }
}

module attributes {stable_mosaic.version = 11 : i64} {
  func.func @_matmul_bias_single_kernel(%arg0: i32, %arg1: i32, %arg2: memref<16x128xbf16, #tpu.memory_space<vmem>>, %arg3: memref<128x384xbf16, #tpu.memory_space<vmem>>, %arg4: memref<1x384xf32, #tpu.memory_space<vmem>>, %arg5: memref<16x384xbf16, #tpu.memory_space<vmem>>) attributes {dimension_semantics = [#tpu.dimension_semantics<parallel>, #tpu.dimension_semantics<parallel>], iteration_bounds = array<i64: 1, 1>, scalar_prefetch = 0 : i64, scratch_operands = 0 : i64, tpu.core_type = #tpu.core_type<tc>, window_params = [{transform_indices = @transform_0, window_bounds = array<i64: 16, 128>}, {transform_indices = @transform_1, window_bounds = array<i64: 128, 384>}, {transform_indices = @transform_2, window_bounds = array<i64: 1, 384>}, {transform_indices = @transform_3, window_bounds = array<i64: 16, 384>}]} {
    %c0 = arith.constant 0 : index
    %c0_0 = arith.constant 0 : index
    %0 = vector.load %arg2[%c0, %c0_0] : memref<16x128xbf16, #tpu.memory_space<vmem>>, vector<16x128xbf16>
    %c0_1 = arith.constant 0 : index
    %c0_2 = arith.constant 0 : index
    %1 = vector.load %arg3[%c0_1, %c0_2] : memref<128x384xbf16, #tpu.memory_space<vmem>>, vector<128x384xbf16>
    %cst = arith.constant dense<0.000000e+00> : vector<16x384xf32>
    %2 = tpu.matmul %0, %1, %cst {dimension_numbers = #tpu.dot_dimension_numbers<[1], [0], [0], [1], [0, 0, 1, 1], [], []>} : vector<16x128xbf16>, vector<128x384xbf16>, vector<16x384xf32> -> vector<16x384xf32>
    %c0_3 = arith.constant 0 : index
    %c0_4 = arith.constant 0 : index
    %3 = vector.load %arg4[%c0_3, %c0_4] : memref<1x384xf32, #tpu.memory_space<vmem>>, vector<1x384xf32>
    %4 = vector.broadcast %3 : vector<1x384xf32> to vector<16x384xf32>
    %5 = arith.addf %2, %4 : vector<16x384xf32>
    %6 = arith.truncf %5 : vector<16x384xf32> to vector<16x384xbf16>
    %c0_5 = arith.constant 0 : index
    %c0_6 = arith.constant 0 : index
    %7 = vector.load %arg5[%c0_5, %c0_6] : memref<16x384xbf16, #tpu.memory_space<vmem>>, vector<16x384xbf16>
    tpu.vector_store %arg5[%c0_5, %c0_6], %6 {strides = array<i32>} : memref<16x384xbf16, #tpu.memory_space<vmem>>, vector<16x384xbf16>,
    return
  }
  func.func @transform_0(%arg0: i32, %arg1: i32) -> (i32, i32) {
    %c0_i32 = arith.constant 0 : i32
    %c0_i32_0 = arith.constant 0 : i32
    return %arg0, %c0_i32 : i32, i32
  }
  func.func @transform_1(%arg0: i32, %arg1: i32) -> (i32, i32) {
    %c0_i32 = arith.constant 0 : i32
    %c0_i32_0 = arith.constant 0 : i32
    return %c0_i32, %arg1 : i32, i32
  }
  func.func @transform_2(%arg0: i32, %arg1: i32) -> (i32, i32) {
    %c0_i32 = arith.constant 0 : i32
    %c0_i32_0 = arith.constant 0 : i32
    return %c0_i32, %arg1 : i32, i32
  }
  func.func @transform_3(%arg0: i32, %arg1: i32) -> (i32, i32) {
    %c0_i32 = arith.constant 0 : i32
    return %arg0, %arg1 : i32, i32
  }
}

module attributes {stable_mosaic.version = 11 : i64} {
  func.func @_matmul_bias_single_kernel(%arg0: i32, %arg1: i32, %arg2: memref<16x128xbf16, #tpu.memory_space<vmem>>, %arg3: memref<128x512xbf16, #tpu.memory_space<vmem>>, %arg4: memref<1x512xf32, #tpu.memory_space<vmem>>, %arg5: memref<16x512xbf16, #tpu.memory_space<vmem>>) attributes {dimension_semantics = [#tpu.dimension_semantics<parallel>, #tpu.dimension_semantics<parallel>], iteration_bounds = array<i64: 1, 1>, scalar_prefetch = 0 : i64, scratch_operands = 0 : i64, tpu.core_type = #tpu.core_type<tc>, window_params = [{transform_indices = @transform_0, window_bounds = array<i64: 16, 128>}, {transform_indices = @transform_1, window_bounds = array<i64: 128, 512>}, {transform_indices = @transform_2, window_bounds = array<i64: 1, 512>}, {transform_indices = @transform_3, window_bounds = array<i64: 16, 512>}]} {
    %c0 = arith.constant 0 : index
    %c0_0 = arith.constant 0 : index
    %0 = vector.load %arg2[%c0, %c0_0] : memref<16x128xbf16, #tpu.memory_space<vmem>>, vector<16x128xbf16>
    %c0_1 = arith.constant 0 : index
    %c0_2 = arith.constant 0 : index
    %1 = vector.load %arg3[%c0_1, %c0_2] : memref<128x512xbf16, #tpu.memory_space<vmem>>, vector<128x512xbf16>
    %cst = arith.constant dense<0.000000e+00> : vector<16x512xf32>
    %2 = tpu.matmul %0, %1, %cst {dimension_numbers = #tpu.dot_dimension_numbers<[1], [0], [0], [1], [0, 0, 1, 1], [], []>} : vector<16x128xbf16>, vector<128x512xbf16>, vector<16x512xf32> -> vector<16x512xf32>
    %c0_3 = arith.constant 0 : index
    %c0_4 = arith.constant 0 : index
    %3 = vector.load %arg4[%c0_3, %c0_4] : memref<1x512xf32, #tpu.memory_space<vmem>>, vector<1x512xf32>
    %4 = vector.broadcast %3 : vector<1x512xf32> to vector<16x512xf32>
    %5 = arith.addf %2, %4 : vector<16x512xf32>
    %cst_5 = arith.constant 0.000000e+00 : f32
    %6 = vector.broadcast %cst_5 : f32 to vector<16x512xf32>
    %7 = arith.maximumf %5, %6 : vector<16x512xf32>
    %8 = arith.truncf %7 : vector<16x512xf32> to vector<16x512xbf16>
    %c0_6 = arith.constant 0 : index
    %c0_7 = arith.constant 0 : index
    %9 = vector.load %arg5[%c0_6, %c0_7] : memref<16x512xbf16, #tpu.memory_space<vmem>>, vector<16x512xbf16>
    tpu.vector_store %arg5[%c0_6, %c0_7], %8 {strides = array<i32>} : memref<16x512xbf16, #tpu.memory_space<vmem>>, vector<16x512xbf16>,
    return
  }
  func.func @transform_0(%arg0: i32, %arg1: i32) -> (i32, i32) {
    %c0_i32 = arith.constant 0 : i32
    %c0_i32_0 = arith.constant 0 : i32
    return %arg0, %c0_i32 : i32, i32
  }
  func.func @transform_1(%arg0: i32, %arg1: i32) -> (i32, i32) {
    %c0_i32 = arith.constant 0 : i32
    %c0_i32_0 = arith.constant 0 : i32
    return %c0_i32, %arg1 : i32, i32
  }
  func.func @transform_2(%arg0: i32, %arg1: i32) -> (i32, i32) {
    %c0_i32 = arith.constant 0 : i32
    %c0_i32_0 = arith.constant 0 : i32
    return %c0_i32, %arg1 : i32, i32
  }
  func.func @transform_3(%arg0: i32, %arg1: i32) -> (i32, i32) {
    %c0_i32 = arith.constant 0 : i32
    return %arg0, %arg1 : i32, i32
  }
}

module attributes {stable_mosaic.version = 11 : i64} {
  func.func @_attention_kernel(%arg0: i32, %arg1: i32, %arg2: memref<1x1x8x32xbf16, #tpu.memory_space<vmem>>, %arg3: memref<1x1x8x32xbf16, #tpu.memory_space<vmem>>, %arg4: memref<1x1x8x32xbf16, #tpu.memory_space<vmem>>, %arg5: memref<1x1x8x32xbf16, #tpu.memory_space<vmem>>) attributes {dimension_semantics = [#tpu.dimension_semantics<parallel>, #tpu.dimension_semantics<parallel>], iteration_bounds = array<i64: 2, 4>, scalar_prefetch = 0 : i64, scratch_operands = 0 : i64, tpu.core_type = #tpu.core_type<tc>, window_params = [{transform_indices = @transform_0, window_bounds = array<i64: 1, 1, 8, 32>}, {transform_indices = @transform_1, window_bounds = array<i64: 1, 1, 8, 32>}, {transform_indices = @transform_2, window_bounds = array<i64: 1, 1, 8, 32>}, {transform_indices = @transform_3, window_bounds = array<i64: 1, 1, 8, 32>}]} {
    %c0 = arith.constant 0 : index
    %c0_0 = arith.constant 0 : index
    %c0_1 = arith.constant 0 : index
    %c0_2 = arith.constant 0 : index
    %0 = vector.load %arg2[%c0, %c0_0, %c0_1, %c0_2] : memref<1x1x8x32xbf16, #tpu.memory_space<vmem>>, vector<1x1x8x32xbf16>
    %1 = vector.shape_cast %0 : vector<1x1x8x32xbf16> to vector<8x32xbf16>
    %c0_3 = arith.constant 0 : index
    %c0_4 = arith.constant 0 : index
    %c0_5 = arith.constant 0 : index
    %c0_6 = arith.constant 0 : index
    %2 = vector.load %arg3[%c0_3, %c0_4, %c0_5, %c0_6] : memref<1x1x8x32xbf16, #tpu.memory_space<vmem>>, vector<1x1x8x32xbf16>
    %3 = vector.shape_cast %2 : vector<1x1x8x32xbf16> to vector<8x32xbf16>
    %c0_7 = arith.constant 0 : index
    %c0_8 = arith.constant 0 : index
    %c0_9 = arith.constant 0 : index
    %c0_10 = arith.constant 0 : index
    %4 = vector.load %arg4[%c0_7, %c0_8, %c0_9, %c0_10] : memref<1x1x8x32xbf16, #tpu.memory_space<vmem>>, vector<1x1x8x32xbf16>
    %5 = vector.shape_cast %4 : vector<1x1x8x32xbf16> to vector<8x32xbf16>
    %cst = arith.constant 1.767580e-01 : bf16
    %6 = vector.broadcast %cst : bf16 to vector<8x32xbf16>
    %7 = arith.mulf %1, %6 : vector<8x32xbf16>
    %cst_11 = arith.constant dense<0.000000e+00> : vector<8x8xf32>
    %8 = tpu.matmul %7, %3, %cst_11 {dimension_numbers = #tpu.dot_dimension_numbers<[1], [1], [0], [0], [0, 0, 1, 0], [], []>} : vector<8x32xbf16>, vector<8x32xbf16>, vector<8x8xf32> -> vector<8x8xf32>
    %cst_12 = arith.constant dense<0xFF800000> : vector<8xf32>
    %9 = vector.multi_reduction <maximumf>, %8, %cst_12 [1] : vector<8x8xf32> to vector<8xf32>
    %10 = vector.shape_cast %9 : vector<8xf32> to vector<8x1xf32>
    %11 = vector.broadcast %10 : vector<8x1xf32> to vector<8x8xf32>
    %12 = arith.subf %8, %11 : vector<8x8xf32>
    %13 = math.exp %12 : vector<8x8xf32>
    %cst_13 = arith.constant dense<0.000000e+00> : vector<8xf32>
    %14 = vector.multi_reduction <add>, %13, %cst_13 [1] : vector<8x8xf32> to vector<8xf32>
    %15 = vector.shape_cast %14 : vector<8xf32> to vector<8x1xf32>
    %16 = arith.truncf %13 : vector<8x8xf32> to vector<8x8xbf16>
    %cst_14 = arith.constant dense<0.000000e+00> : vector<8x32xf32>
    %17 = tpu.matmul %16, %5, %cst_14 {dimension_numbers = #tpu.dot_dimension_numbers<[1], [0], [0], [1], [0, 0, 1, 1], [], []>} : vector<8x8xbf16>, vector<8x32xbf16>, vector<8x32xf32> -> vector<8x32xf32>
    %18 = tpu.reciprocal %15 {approx = true} : vector<8x1xf32> -> vector<8x1xf32>
    %19 = vector.broadcast %18 : vector<8x1xf32> to vector<8x32xf32>
    %20 = arith.mulf %17, %19 : vector<8x32xf32>
    %21 = arith.truncf %20 : vector<8x32xf32> to vector<8x32xbf16>
    %c0_15 = arith.constant 0 : index
    %c0_16 = arith.constant 0 : index
    %c0_17 = arith.constant 0 : index
    %c0_18 = arith.constant 0 : index
    %22 = vector.load %arg5[%c0_15, %c0_16, %c0_17, %c0_18] : memref<1x1x8x32xbf16, #tpu.memory_space<vmem>>, vector<1x1x8x32xbf16>
    %23 = vector.shape_cast %22 : vector<1x1x8x32xbf16> to vector<8x32xbf16>
    %24 = vector.shape_cast %21 : vector<8x32xbf16> to vector<1x1x8x32xbf16>
    tpu.vector_store %arg5[%c0_15, %c0_16, %c0_17, %c0_18], %24 {strides = array<i32>} : memref<1x1x8x32xbf16, #tpu.memory_space<vmem>>, vector<1x1x8x32xbf16>,
    return
  }
  func.func @transform_0(%arg0: i32, %arg1: i32) -> (i32, i32, i32, i32) {
    %c0_i32 = arith.constant 0 : i32
    %c0_i32_0 = arith.constant 0 : i32
    %c0_i32_1 = arith.constant 0 : i32
    return %arg0, %arg1, %c0_i32, %c0_i32_0 : i32, i32, i32, i32
  }
  func.func @transform_1(%arg0: i32, %arg1: i32) -> (i32, i32, i32, i32) {
    %c0_i32 = arith.constant 0 : i32
    %c0_i32_0 = arith.constant 0 : i32
    %c0_i32_1 = arith.constant 0 : i32
    return %arg0, %arg1, %c0_i32, %c0_i32_0 : i32, i32, i32, i32
  }
  func.func @transform_2(%arg0: i32, %arg1: i32) -> (i32, i32, i32, i32) {
    %c0_i32 = arith.constant 0 : i32
    %c0_i32_0 = arith.constant 0 : i32
    %c0_i32_1 = arith.constant 0 : i32
    return %arg0, %arg1, %c0_i32, %c0_i32_0 : i32, i32, i32, i32
  }
  func.func @transform_3(%arg0: i32, %arg1: i32) -> (i32, i32, i32, i32) {
    %c0_i32 = arith.constant 0 : i32
    %c0_i32_0 = arith.constant 0 : i32
    %c0_i32_1 = arith.constant 0 : i32
    return %arg0, %arg1, %c0_i32, %c0_i32_0 : i32, i32, i32, i32
  }
}

module attributes {stable_mosaic.version = 11 : i64} {
  func.func @_matmul_add_ln_single_kernel(%arg0: i32, %arg1: memref<16x512xbf16, #tpu.memory_space<vmem>>, %arg2: memref<512x128xbf16, #tpu.memory_space<vmem>>, %arg3: memref<1x128xf32, #tpu.memory_space<vmem>>, %arg4: memref<16x128xbf16, #tpu.memory_space<vmem>>, %arg5: memref<1x128xf32, #tpu.memory_space<vmem>>, %arg6: memref<1x128xf32, #tpu.memory_space<vmem>>, %arg7: memref<16x128xbf16, #tpu.memory_space<vmem>>) attributes {dimension_semantics = [#tpu.dimension_semantics<parallel>], iteration_bounds = array<i64: 1>, scalar_prefetch = 0 : i64, scratch_operands = 0 : i64, tpu.core_type = #tpu.core_type<tc>, window_params = [{transform_indices = @transform_0, window_bounds = array<i64: 16, 512>}, {pipeline_mode = #tpu.pipeline_mode<synchronous>, transform_indices = @transform_1, window_bounds = array<i64: 512, 128>}, {pipeline_mode = #tpu.pipeline_mode<synchronous>, transform_indices = @transform_2, window_bounds = array<i64: 1, 128>}, {transform_indices = @transform_3, window_bounds = array<i64: 16, 128>}, {pipeline_mode = #tpu.pipeline_mode<synchronous>, transform_indices = @transform_4, window_bounds = array<i64: 1, 128>}, {pipeline_mode = #tpu.pipeline_mode<synchronous>, transform_indices = @transform_5, window_bounds = array<i64: 1, 128>}, {transform_indices = @transform_6, window_bounds = array<i64: 16, 128>}]} {
    %c0 = arith.constant 0 : index
    %c0_0 = arith.constant 0 : index
    %0 = vector.load %arg1[%c0, %c0_0] : memref<16x512xbf16, #tpu.memory_space<vmem>>, vector<16x512xbf16>
    %c0_1 = arith.constant 0 : index
    %c0_2 = arith.constant 0 : index
    %1 = vector.load %arg2[%c0_1, %c0_2] : memref<512x128xbf16, #tpu.memory_space<vmem>>, vector<512x128xbf16>
    %cst = arith.constant dense<0.000000e+00> : vector<16x128xf32>
    %2 = tpu.matmul %0, %1, %cst {dimension_numbers = #tpu.dot_dimension_numbers<[1], [0], [0], [1], [0, 0, 1, 1], [], []>} : vector<16x512xbf16>, vector<512x128xbf16>, vector<16x128xf32> -> vector<16x128xf32>
    %c0_3 = arith.constant 0 : index
    %c0_4 = arith.constant 0 : index
    %3 = vector.load %arg3[%c0_3, %c0_4] : memref<1x128xf32, #tpu.memory_space<vmem>>, vector<1x128xf32>
    %4 = vector.broadcast %3 : vector<1x128xf32> to vector<16x128xf32>
    %5 = arith.addf %2, %4 : vector<16x128xf32>
    %c0_5 = arith.constant 0 : index
    %c0_6 = arith.constant 0 : index
    %6 = vector.load %arg4[%c0_5, %c0_6] : memref<16x128xbf16, #tpu.memory_space<vmem>>, vector<16x128xbf16>
    %7 = arith.extf %6 : vector<16x128xbf16> to vector<16x128xf32>
    %8 = arith.addf %5, %7 : vector<16x128xf32>
    %c0_7 = arith.constant 0 : index
    %c0_8 = arith.constant 0 : index
    %9 = vector.load %arg5[%c0_7, %c0_8] : memref<1x128xf32, #tpu.memory_space<vmem>>, vector<1x128xf32>
    %c0_9 = arith.constant 0 : index
    %c0_10 = arith.constant 0 : index
    %10 = vector.load %arg6[%c0_9, %c0_10] : memref<1x128xf32, #tpu.memory_space<vmem>>, vector<1x128xf32>
    %cst_11 = arith.constant dense<0.000000e+00> : vector<16xf32>
    %11 = vector.multi_reduction <add>, %8, %cst_11 [1] : vector<16x128xf32> to vector<16xf32>
    %12 = vector.shape_cast %11 : vector<16xf32> to vector<16x1xf32>
    %cst_12 = arith.constant 1.280000e+02 : f32
    %13 = vector.broadcast %cst_12 : f32 to vector<16x1xf32>
    %14 = arith.divf %12, %13 : vector<16x1xf32>
    %15 = vector.broadcast %14 : vector<16x1xf32> to vector<16x128xf32>
    %16 = arith.subf %8, %15 : vector<16x128xf32>
    %17 = arith.mulf %16, %16 : vector<16x128xf32>
    %cst_13 = arith.constant dense<0.000000e+00> : vector<16xf32>
    %18 = vector.multi_reduction <add>, %17, %cst_13 [1] : vector<16x128xf32> to vector<16xf32>
    %19 = vector.shape_cast %18 : vector<16xf32> to vector<16x1xf32>
    %cst_14 = arith.constant 1.280000e+02 : f32
    %20 = vector.broadcast %cst_14 : f32 to vector<16x1xf32>
    %21 = arith.divf %19, %20 : vector<16x1xf32>
    %cst_15 = arith.constant 9.99999974E-6 : f32
    %22 = vector.broadcast %cst_15 : f32 to vector<16x1xf32>
    %23 = arith.addf %21, %22 : vector<16x1xf32>
    %24 = math.rsqrt %23 : vector<16x1xf32>
    %25 = vector.broadcast %24 : vector<16x1xf32> to vector<16x128xf32>
    %26 = arith.mulf %16, %25 : vector<16x128xf32>
    %27 = vector.broadcast %9 : vector<1x128xf32> to vector<16x128xf32>
    %28 = arith.mulf %26, %27 : vector<16x128xf32>
    %29 = vector.broadcast %10 : vector<1x128xf32> to vector<16x128xf32>
    %30 = arith.addf %28, %29 : vector<16x128xf32>
    %31 = arith.truncf %30 : vector<16x128xf32> to vector<16x128xbf16>
    %c0_16 = arith.constant 0 : index
    %c0_17 = arith.constant 0 : index
    %32 = vector.load %arg7[%c0_16, %c0_17] : memref<16x128xbf16, #tpu.memory_space<vmem>>, vector<16x128xbf16>
    tpu.vector_store %arg7[%c0_16, %c0_17], %31 {strides = array<i32>} : memref<16x128xbf16, #tpu.memory_space<vmem>>, vector<16x128xbf16>,
    return
  }
  func.func @transform_0(%arg0: i32) -> (i32, i32) {
    %c0_i32 = arith.constant 0 : i32
    %c0_i32_0 = arith.constant 0 : i32
    return %arg0, %c0_i32 : i32, i32
  }
  func.func @transform_1(%arg0: i32) -> (i32, i32) {
    %c0_i32 = arith.constant 0 : i32
    %c0_i32_0 = arith.constant 0 : i32
    %c0_i32_1 = arith.constant 0 : i32
    return %c0_i32, %c0_i32_0 : i32, i32
  }
  func.func @transform_2(%arg0: i32) -> (i32, i32) {
    %c0_i32 = arith.constant 0 : i32
    %c0_i32_0 = arith.constant 0 : i32
    %c0_i32_1 = arith.constant 0 : i32
    return %c0_i32, %c0_i32_0 : i32, i32
  }
  func.func @transform_3(%arg0: i32) -> (i32, i32) {
    %c0_i32 = arith.constant 0 : i32
    %c0_i32_0 = arith.constant 0 : i32
    return %arg0, %c0_i32 : i32, i32
  }
  func.func @transform_4(%arg0: i32) -> (i32, i32) {
    %c0_i32 = arith.constant 0 : i32
    %c0_i32_0 = arith.constant 0 : i32
    %c0_i32_1 = arith.constant 0 : i32
    return %c0_i32, %c0_i32_0 : i32, i32
  }
  func.func @transform_5(%arg0: i32) -> (i32, i32) {
    %c0_i32 = arith.constant 0 : i32
    %c0_i32_0 = arith.constant 0 : i32
    %c0_i32_1 = arith.constant 0 : i32
    return %c0_i32, %c0_i32_0 : i32, i32
  }
  func.func @transform_6(%arg0: i32) -> (i32, i32) {
    %c0_i32 = arith.constant 0 : i32
    %c0_i32_0 = arith.constant 0 : i32
    return %arg0, %c0_i32 : i32, i32
  }
}

module attributes {stable_mosaic.version = 11 : i64} {
  func.func @_matmul_bias_single_kernel(%arg0: i32, %arg1: i32, %arg2: memref<16x128xbf16, #tpu.memory_space<vmem>>, %arg3: memref<128x256xbf16, #tpu.memory_space<vmem>>, %arg4: memref<1x256xf32, #tpu.memory_space<vmem>>, %arg5: memref<16x256xbf16, #tpu.memory_space<vmem>>) attributes {dimension_semantics = [#tpu.dimension_semantics<parallel>, #tpu.dimension_semantics<parallel>], iteration_bounds = array<i64: 1, 1>, scalar_prefetch = 0 : i64, scratch_operands = 0 : i64, tpu.core_type = #tpu.core_type<tc>, window_params = [{transform_indices = @transform_0, window_bounds = array<i64: 16, 128>}, {transform_indices = @transform_1, window_bounds = array<i64: 128, 256>}, {transform_indices = @transform_2, window_bounds = array<i64: 1, 256>}, {transform_indices = @transform_3, window_bounds = array<i64: 16, 256>}]} {
    %c0 = arith.constant 0 : index
    %c0_0 = arith.constant 0 : index
    %0 = vector.load %arg2[%c0, %c0_0] : memref<16x128xbf16, #tpu.memory_space<vmem>>, vector<16x128xbf16>
    %c0_1 = arith.constant 0 : index
    %c0_2 = arith.constant 0 : index
    %1 = vector.load %arg3[%c0_1, %c0_2] : memref<128x256xbf16, #tpu.memory_space<vmem>>, vector<128x256xbf16>
    %cst = arith.constant dense<0.000000e+00> : vector<16x256xf32>
    %2 = tpu.matmul %0, %1, %cst {dimension_numbers = #tpu.dot_dimension_numbers<[1], [0], [0], [1], [0, 0, 1, 1], [], []>} : vector<16x128xbf16>, vector<128x256xbf16>, vector<16x256xf32> -> vector<16x256xf32>
    %c0_3 = arith.constant 0 : index
    %c0_4 = arith.constant 0 : index
    %3 = vector.load %arg4[%c0_3, %c0_4] : memref<1x256xf32, #tpu.memory_space<vmem>>, vector<1x256xf32>
    %4 = vector.broadcast %3 : vector<1x256xf32> to vector<16x256xf32>
    %5 = arith.addf %2, %4 : vector<16x256xf32>
    %6 = arith.truncf %5 : vector<16x256xf32> to vector<16x256xbf16>
    %c0_5 = arith.constant 0 : index
    %c0_6 = arith.constant 0 : index
    %7 = vector.load %arg5[%c0_5, %c0_6] : memref<16x256xbf16, #tpu.memory_space<vmem>>, vector<16x256xbf16>
    tpu.vector_store %arg5[%c0_5, %c0_6], %6 {strides = array<i32>} : memref<16x256xbf16, #tpu.memory_space<vmem>>, vector<16x256xbf16>,
    return
  }
  func.func @transform_0(%arg0: i32, %arg1: i32) -> (i32, i32) {
    %c0_i32 = arith.constant 0 : i32
    %c0_i32_0 = arith.constant 0 : i32
    return %arg0, %c0_i32 : i32, i32
  }
  func.func @transform_1(%arg0: i32, %arg1: i32) -> (i32, i32) {
    %c0_i32 = arith.constant 0 : i32
    %c0_i32_0 = arith.constant 0 : i32
    return %c0_i32, %arg1 : i32, i32
  }
  func.func @transform_2(%arg0: i32, %arg1: i32) -> (i32, i32) {
    %c0_i32 = arith.constant 0 : i32
    %c0_i32_0 = arith.constant 0 : i32
    return %c0_i32, %arg1 : i32, i32
  }
  func.func @transform_3(%arg0: i32, %arg1: i32) -> (i32, i32) {
    %c0_i32 = arith.constant 0 : i32
    return %arg0, %arg1 : i32, i32
  }
}

</mosaic_0001>

<llo_original>
// kernel: transformer_forward.39
$region0: #{transformer_forward.39}
  #allocation0 [shape = 'u32[]', space=smem, size = 0x4, offset = 0x4, fixed_abs, tag = 'smem constant byte address 0x4 - core index']
  #allocation1 [shape = 'u32[144,128]{1,0:T(1,128)}', space=vmem, size = 0x12000, scoped, tag = 'internal scratch']
  %s0 = inlined_call_operand.vmem [shape: bf16[2,4,8,32], index: 0, kind: input, shape index: {}]
  %s1 = inlined_call_operand.vmem [shape: bf16[2,4,8,32], index: 1, kind: input, shape index: {}]
  %s2 = inlined_call_operand.vmem [shape: bf16[2,4,8,32], index: 2, kind: input, shape index: {}]
  %s3 = inlined_call_operand.vmem [shape: bf16[2,4,8,32], index: 3, kind: output, shape index: {}]
  %s4 = sld [smem:[#allocation0]]
  $region45: #{transformer_forward.39} parent=0
    _
  %s6 = ssub.s32 1, %s4
  %s7 = scalar_select 0, %s6, %s4
  loop: start=0, step=1, limit=10
  $region2: #{transformer_forward.39} parent=0 // loop_pre_header
    _
  $region3: #{transformer_forward.39} parent=0 // loop_header
    %s9 = sphi 0, %s13
    %p10 = scmp.ge.s32.totalorder %s9, 10
    %s16 = sphi 0, %s28
    %s17 = sphi 0, %s24
    %s18 = sphi 0, %s16
    %s19 = sphi 0, %s17
    %s20 = sphi 0, %s18
    %s21 = sphi 0, %s19
    %s33 = sphi 0, %s35
    %s36 = sphi 0, %s33
    %s37 = sphi 0, %s36
    %s53 = sphi 0, %s37
    %s61 = sphi 0, %s63
    %s64 = sphi 0, %s61
    %s65 = sphi 0, %s64
    %s81 = sphi 0, %s65
    %s89 = sphi 0, %s91
    %s92 = sphi 0, %s89
    %s93 = sphi 0, %s92
    %s109 = sphi 0, %s93
    %s117 = sphi 0, %s119
    %s120 = sphi 0, %s117
    %s121 = sphi 0, %s120
    %s137 = sphi 0, %s121
  $region4: #{transformer_forward.39} parent=0 // loop_header_branch
    %12 = sbr.rel (%p10) target = $region8
  $region5: #{transformer_forward.39} parent=0 // loop_body
    %s14 = ssub.s32 %s9, 1
    %s15 = ssub.s32 %s9, 2
    %s22 = sadd.s32 1, %s17
    %p23 = scmp.ge.s32.totalorder %s22, 4
    %s24 = scalar_select %p23, 0, %s22
    %s25 = sadd.s32 1, %s16
    %s26 = scalar_select %p23, %s25, %s16
    %p27 = scmp.ge.s32.totalorder %s26, 2
    %s28 = scalar_select %p27, 0, %s26
    %s29 = ssub.s32 %s16, %s28
    %s30 = ssub.s32 %s17, %s24
    %s31 = sor.u32 %s29, %s30
    %p32 = scmp.eq.s32.totalorder %s31, 0
    %s34 = sadd.s32 %s33, 1
    %s35 = scalar_select %p32, %s33, %s34
    %p38 = pneg %p32
    %p39 = scmp.eq.s32.totalorder %s9, 7
    %p40 = por %p38, %p39
    %p41 = scmp.ne.s32.totalorder %s33, %s36
    %p42 = scmp.eq.s32.totalorder %s9, 0
    %p43 = por %p41, %p42
    %p44 = scmp.ne.s32.totalorder %s33, %s36
    %p45 = scmp.eq.s32.totalorder %s14, 7
    %p46 = por %p44, %p45
    %p47 = scmp.ne.s32.totalorder %s36, %s37
    %p48 = scmp.eq.s32.totalorder %s14, 0
    %p49 = por %p47, %p48
    %p50 = scmp.ne.s32.totalorder %s36, %s37
    %p51 = scmp.eq.s32.totalorder %s15, 7
    %p52 = por %p50, %p51
    %p54 = scmp.ne.s32.totalorder %s37, %s53
    %p55 = scmp.eq.s32.totalorder %s15, 0
    %p56 = por %p54, %p55
    %s57 = ssub.s32 %s16, %s28
    %s58 = ssub.s32 %s17, %s24
    %s59 = sor.u32 %s57, %s58
    %p60 = scmp.eq.s32.totalorder %s59, 0
    %s62 = sadd.s32 %s61, 1
    %s63 = scalar_select %p60, %s61, %s62
    %p66 = pneg %p60
    %p67 = scmp.eq.s32.totalorder %s9, 7
    %p68 = por %p66, %p67
    %p69 = scmp.ne.s32.totalorder %s61, %s64
    %p70 = scmp.eq.s32.totalorder %s9, 0
    %p71 = por %p69, %p70
    %p72 = scmp.ne.s32.totalorder %s61, %s64
    %p73 = scmp.eq.s32.totalorder %s14, 7
    %p74 = por %p72, %p73
    %p75 = scmp.ne.s32.totalorder %s64, %s65
    %p76 = scmp.eq.s32.totalorder %s14, 0
    %p77 = por %p75, %p76
    %p78 = scmp.ne.s32.totalorder %s64, %s65
    %p79 = scmp.eq.s32.totalorder %s15, 7
    %p80 = por %p78, %p79
    %p82 = scmp.ne.s32.totalorder %s65, %s81
    %p83 = scmp.eq.s32.totalorder %s15, 0
    %p84 = por %p82, %p83
    %s85 = ssub.s32 %s16, %s28
    %s86 = ssub.s32 %s17, %s24
    %s87 = sor.u32 %s85, %s86
    %p88 = scmp.eq.s32.totalorder %s87, 0
    %s90 = sadd.s32 %s89, 1
    %s91 = scalar_select %p88, %s89, %s90
    %p94 = pneg %p88
    %p95 = scmp.eq.s32.totalorder %s9, 7
    %p96 = por %p94, %p95
    %p97 = scmp.ne.s32.totalorder %s89, %s92
    %p98 = scmp.eq.s32.totalorder %s9, 0
    %p99 = por %p97, %p98
    %p100 = scmp.ne.s32.totalorder %s89, %s92
    %p101 = scmp.eq.s32.totalorder %s14, 7
    %p102 = por %p100, %p101
    %p103 = scmp.ne.s32.totalorder %s92, %s93
    %p104 = scmp.eq.s32.totalorder %s14, 0
    %p105 = por %p103, %p104
    %p106 = scmp.ne.s32.totalorder %s92, %s93
    %p107 = scmp.eq.s32.totalorder %s15, 7
    %p108 = por %p106, %p107
    %p110 = scmp.ne.s32.totalorder %s93, %s109
    %p111 = scmp.eq.s32.totalorder %s15, 0
    %p112 = por %p110, %p111
    %s113 = ssub.s32 %s16, %s28
    %s114 = ssub.s32 %s17, %s24
    %s115 = sor.u32 %s113, %s114
    %p116 = scmp.eq.s32.totalorder %s115, 0
    %s118 = sadd.s32 %s117, 1
    %s119 = scalar_select %p116, %s117, %s118
    %p122 = pneg %p116
    %p123 = scmp.eq.s32.totalorder %s9, 7
    %p124 = por %p122, %p123
    %p125 = scmp.ne.s32.totalorder %s117, %s120
    %p126 = scmp.eq.s32.totalorder %s9, 0
    %p127 = por %p125, %p126
    %p128 = scmp.ne.s32.totalorder %s117, %s120
    %p129 = scmp.eq.s32.totalorder %s14, 7
    %p130 = por %p128, %p129
    %p131 = scmp.ne.s32.totalorder %s120, %s121
    %p132 = scmp.eq.s32.totalorder %s14, 0
    %p133 = por %p131, %p132
    %p134 = scmp.ne.s32.totalorder %s120, %s121
    %p135 = scmp.eq.s32.totalorder %s15, 7
    %p136 = por %p134, %p135
    %p138 = scmp.ne.s32.totalorder %s121, %s137
    %p139 = scmp.eq.s32.totalorder %s15, 0
    %p140 = por %p138, %p139
    %p141 = scmp.le.s32.totalorder 1, %s9
    %p142 = scmp.lt.s32.totalorder %s9, 9
    %p143 = pnand %p141, %p142
    %p144 = pneg %p143
    // Predicated region
    $region9: #{transformer_forward.39} parent=5 // pred_check
      _
    $region10: #{transformer_forward.39} parent=5 // pred_check_branch
      %146 = sbr.rel (%p143) target = $region12
    $region11: #{transformer_forward.39} parent=5 // pred_region
      %s147 = ssub.s32 %s9, 1
    $region12: #{transformer_forward.39} parent=5 // pred_fallthru
      _
    %p148 = scmp.lt.s32.totalorder %s9, 8
    // Predicated region
    $region13: #{transformer_forward.39} parent=5 // pred_check
      %p149 = pneg %p148
    $region14: #{transformer_forward.39} parent=5 // pred_check_branch
      %151 = sbr.rel (%p149) target = $region16
    $region15: #{transformer_forward.39} parent=5 // pred_region
      // Predicated region
      $region17: #{transformer_forward.39} parent=15 // pred_check
        %p152 = pneg %p43
      $region18: #{transformer_forward.39} parent=15 // pred_check_branch
        %154 = sbr.rel (%p152) target = $region20
      $region19: #{transformer_forward.39} parent=15 // pred_region
        %p155 = scmp.lt.s32.totalorder %s16, 1
        %s156 = scalar_select %p155, %s16, 1
        %p157 = scmp.lt.s32.totalorder %s17, 3
        %s158 = scalar_select %p157, %s17, 3
        %s159 = smul.addr %s156, 4
        %s160 = sadd.s32 %s158, %s159
        %s161 = smul.addr %s160, 4
        %s162 = scalar_lea.vmem %s0, %s161
      $region20: #{transformer_forward.39} parent=15 // pred_fallthru
        _
      // Predicated region
      $region21: #{transformer_forward.39} parent=15 // pred_check
        %p163 = pneg %p71
      $region22: #{transformer_forward.39} parent=15 // pred_check_branch
        %165 = sbr.rel (%p163) target = $region24
      $region23: #{transformer_forward.39} parent=15 // pred_region
        %p166 = scmp.lt.s32.totalorder %s16, 1
        %s167 = scalar_select %p166, %s16, 1
        %p168 = scmp.lt.s32.totalorder %s17, 3
        %s169 = scalar_select %p168, %s17, 3
        %s170 = smul.addr %s167, 4
        %s171 = sadd.s32 %s169, %s170
        %s172 = smul.addr %s171, 4
        %s173 = scalar_lea.vmem %s1, %s172
      $region24: #{transformer_forward.39} parent=15 // pred_fallthru
        _
      // Predicated region
      $region25: #{transformer_forward.39} parent=15 // pred_check
        %p174 = pneg %p99
      $region26: #{transformer_forward.39} parent=15 // pred_check_branch
        %176 = sbr.rel (%p174) target = $region28
      $region27: #{transformer_forward.39} parent=15 // pred_region
        %p177 = scmp.lt.s32.totalorder %s16, 1
        %s178 = scalar_select %p177, %s16, 1
        %p179 = scmp.lt.s32.totalorder %s17, 3
        %s180 = scalar_select %p179, %s17, 3
        %s181 = smul.addr %s178, 4
        %s182 = sadd.s32 %s180, %s181
        %s183 = smul.addr %s182, 4
        %s184 = scalar_lea.vmem %s2, %s183
      $region28: #{transformer_forward.39} parent=15 // pred_fallthru
        _
    $region16: #{transformer_forward.39} parent=5 // pred_fallthru
      _
    %p185 = scmp.le.s32.totalorder 1, %s9
    %p186 = scmp.lt.s32.totalorder %s9, 9
    %p187 = pnand %p185, %p186
    %p188 = pneg %p187
    // Predicated region
    $region29: #{transformer_forward.39} parent=5 // pred_check
      _
    $region30: #{transformer_forward.39} parent=5 // pred_check_branch
      %190 = sbr.rel (%p187) target = $region32
    $region31: #{transformer_forward.39} parent=5 // pred_region
      %s191 = ssub.s32 %s9, 1
      %p192 = scmp.lt.s32.totalorder %s18, 1
      %s193 = scalar_select %p192, %s18, 1
      %p194 = scmp.lt.s32.totalorder %s19, 3
      %s195 = scalar_select %p194, %s19, 3
      %s196 = smul.addr %s193, 4
      %s197 = sadd.s32 %s195, %s196
      %s198 = smul.addr %s197, 4
      %s199 = scalar_lea.vmem %s0, %s198
      %p200 = pneg %p49
      %p201 = pneg %p46
      %p202 = scmp.lt.s32.totalorder %s18, 1
      %s203 = scalar_select %p202, %s18, 1
      %p204 = scmp.lt.s32.totalorder %s19, 3
      %s205 = scalar_select %p204, %s19, 3
      %s206 = smul.addr %s203, 4
      %s207 = sadd.s32 %s205, %s206
      %s208 = smul.addr %s207, 4
      %s209 = scalar_lea.vmem %s1, %s208
      %p210 = pneg %p77
      %p211 = pneg %p74
      %p212 = scmp.lt.s32.totalorder %s18, 1
      %s213 = scalar_select %p212, %s18, 1
      %p214 = scmp.lt.s32.totalorder %s19, 3
      %s215 = scalar_select %p214, %s19, 3
      %s216 = smul.addr %s213, 4
      %s217 = sadd.s32 %s215, %s216
      %s218 = smul.addr %s217, 4
      %s219 = scalar_lea.vmem %s2, %s218
      %p220 = pneg %p105
      %p221 = pneg %p102
      %p222 = pneg %p133
      %p223 = pneg %p130
      %p224 = scmp.lt.s32.totalorder %s18, 1
      %s225 = scalar_select %p224, %s18, 1
      %p226 = scmp.lt.s32.totalorder %s19, 3
      %s227 = scalar_select %p226, %s19, 3
      %s228 = smul.addr %s225, 4
      %s229 = sadd.s32 %s227, %s228
      %s230 = smul.addr %s229, 4
      %s231 = scalar_lea.vmem %s3, %s230
      %p232 = scmp.lt.s32.totalorder %s18, 1
      %s233 = scalar_select %p232, %s18, 1
      %p234 = scmp.lt.s32.totalorder %s19, 3
      %s235 = scalar_select %p234, %s19, 3
      %s236 = smul.addr %s233, 4
      %s237 = sadd.s32 %s235, %s236
      %s238 = smul.addr %s237, 4
      %s239 = scalar_lea.vmem %s0, %s238
      %p240 = scmp.lt.s32.totalorder %s18, 1
      %s241 = scalar_select %p240, %s18, 1
      %p242 = scmp.lt.s32.totalorder %s19, 3
      %s243 = scalar_select %p242, %s19, 3
      %s244 = smul.addr %s241, 4
      %s245 = sadd.s32 %s243, %s244
      %s246 = smul.addr %s245, 4
      %s247 = scalar_lea.vmem %s1, %s246
      %p248 = scmp.lt.s32.totalorder %s18, 1
      %s249 = scalar_select %p248, %s18, 1
      %p250 = scmp.lt.s32.totalorder %s19, 3
      %s251 = scalar_select %p250, %s19, 3
      %s252 = smul.addr %s249, 4
      %s253 = sadd.s32 %s251, %s252
      %s254 = smul.addr %s253, 4
      %s255 = scalar_lea.vmem %s2, %s254
      %p256 = scmp.lt.s32.totalorder %s18, 1
      %s257 = scalar_select %p256, %s18, 1
      %p258 = scmp.lt.s32.totalorder %s19, 3
      %s259 = scalar_select %p258, %s19, 3
      %s260 = smul.addr %s257, 4
      %s261 = sadd.s32 %s259, %s260
      %s262 = smul.addr %s261, 4
      %s263 = scalar_lea.vmem %s3, %s262
      %v266 = vld [vmem:[%s239] sm:$0xf]
      %v267 = vld [vmem:[%s247] sm:$0xf]
      %v268 = vld [vmem:[%s255] sm:$0xf]
      %v269 = vmul.bf16 %v266, 1043676725
      %vm270 = vcmask 261120
      %v272 = vsel %vm270, %v269, 0
      %v275 = vsel %vm270, %v267, 0
      %277 = vmatprep.subr.bf16.mxu0 0
      %278 = vmatpush1.bf16.xpose.msra.mxu0 0
      %279 = vmatprep.subr.bf16.mxu0 0
      %280 = vmatpush1.bf16.xpose.msra.mxu0 0
      %281 = vmatprep.subr.bf16.mxu0 0
      %282 = vmatpush1.bf16.xpose.msra.mxu0 0
      %283 = vmatprep.subr.bf16.mxu0 0
      %284 = vmatpush1.bf16.xpose.msra.mxu0 0
      %285 = vmatprep.subr.bf16.mxu0 0
      %286 = vmatpush1.bf16.xpose.msra.mxu0 0
      %287 = vmatprep.subr.bf16.mxu0 0
      %288 = vmatpush1.bf16.xpose.msra.mxu0 0
      %289 = vmatprep.subr.bf16.mxu0 0
      %290 = vmatpush1.bf16.xpose.msra.mxu0 0
      %291 = vmatprep.subr.bf16.mxu0 0
      %292 = vmatpush1.bf16.xpose.msra.mxu0 %v275
      %293 = vmatprep.subr.bf16.mxu0 0
      %294 = vmatpush2.bf16.xpose.msra.mxu0 0
      %295 = vmatprep.subr.bf16.mxu0 0
      %296 = vmatpush2.bf16.xpose.msra.mxu0 0
      %297 = vmatprep.subr.bf16.mxu0 0
      %298 = vmatpush2.bf16.xpose.msra.mxu0 0
      %299 = vmatprep.subr.bf16.mxu0 0
      %300 = vmatpush2.bf16.xpose.msra.mxu0 0
      %301 = vmatprep.subr.bf16.mxu0 0
      %302 = vmatpush2.bf16.xpose.msra.mxu0 0
      %303 = vmatprep.subr.bf16.mxu0 0
      %304 = vmatpush2.bf16.xpose.msra.mxu0 0
      %305 = vmatprep.subr.bf16.mxu0 0
      %306 = vmatpush2.bf16.xpose.msra.mxu0 0
      %307 = vmatprep.subr.bf16.mxu0 0
      %308 = vmatpush2.bf16.xpose.msra.mxu0 0
      %309 = vmatprep.mubr.bf16.mxu0 0
      %310 = vmatmul.mubr.bf16.gmra.mxu0 %v272
      %v311 = vpop.f32.mrf.mxu0
      %v312 = vadd.f32 0.0, %v311
      %v313 = vpop.f32.mrf.mxu0
      %v314 = vpop.f32.mrf.mxu0
      %v315 = vpop.f32.mrf.mxu0
      %316 = vdwg.mxu0
      %v317 = vlaneseq
      %v318 = vshrl.u32 %v317, 7
      %v319 = vlaneseq
      %v320 = vand.u32 %v319, 127
      %vm321 = vcmp.gt.s32.totalorder %v320, %v318
      %v322 = vsel %vm321, -1e+09, %v312
      %vm323 = vcmask 64512
      %v324 = vsel %vm323, %v322, -inf
      %325 = vmax.xlane.f32.xlu0 %v324
      %v326 = vpop.xlane.xlu0 %325
      %v327 = vsub.f32 %v322, %v326
      %v328 = vmul.f32 %v327, 1.442695
      %v329 = vpow.pop %v328
      %v330 = vsel %vm323, %v329, 0.0
      %331 = vadd.xlane.f32.xlu0 %v330
      %v332 = vpop.xlane.xlu0 %331
      %v333 = vpack.c.bf16 %v329, %v329
      %v335 = vsel %vm323, %v333, 0
      %vm337 = vcmask 1043456
      %v339 = vsel %vm337, %v268, 0
      %341 = vmatprep.subr.bf16.mxu0 0
      %342 = vmatpush1.bf16.msra.mxu0 0
      %343 = vmatprep.subr.bf16.mxu0 0
      %344 = vmatpush1.bf16.msra.mxu0 0
      %345 = vmatprep.subr.bf16.mxu0 0
      %346 = vmatpush1.bf16.msra.mxu0 0
      %347 = vmatprep.subr.bf16.mxu0 0
      %348 = vmatpush1.bf16.msra.mxu0 0
      %349 = vmatprep.subr.bf16.mxu0 0
      %350 = vmatpush1.bf16.msra.mxu0 0
      %351 = vmatprep.subr.bf16.mxu0 0
      %352 = vmatpush1.bf16.msra.mxu0 0
      %353 = vmatprep.subr.bf16.mxu0 0
      %354 = vmatpush1.bf16.msra.mxu0 0
      %355 = vmatprep.subr.bf16.mxu0 0
      %356 = vmatpush1.bf16.msra.mxu0 %v339
      %357 = vmatprep.subr.bf16.mxu0 0
      %358 = vmatpush2.bf16.msra.mxu0 0
      %359 = vmatprep.subr.bf16.mxu0 0
      %360 = vmatpush2.bf16.msra.mxu0 0
      %361 = vmatprep.subr.bf16.mxu0 0
      %362 = vmatpush2.bf16.msra.mxu0 0
      %363 = vmatprep.subr.bf16.mxu0 0
      %364 = vmatpush2.bf16.msra.mxu0 0
      %365 = vmatprep.subr.bf16.mxu0 0
      %366 = vmatpush2.bf16.msra.mxu0 0
      %367 = vmatprep.subr.bf16.mxu0 0
      %368 = vmatpush2.bf16.msra.mxu0 0
      %369 = vmatprep.subr.bf16.mxu0 0
      %370 = vmatpush2.bf16.msra.mxu0 0
      %371 = vmatprep.subr.bf16.mxu0 0
      %372 = vmatpush2.bf16.msra.mxu0 0
      %373 = vmatprep.mubr.bf16.mxu0 0
      %374 = vmatmul.mubr.bf16.gmra.mxu0 %v335
      %v375 = vpop.f32.mrf.mxu0
      %v376 = vadd.f32 0.0, %v375
      %v377 = vpop.f32.mrf.mxu0
      %v378 = vpop.f32.mrf.mxu0
      %v379 = vpop.f32.mrf.mxu0
      %380 = vdwg.mxu0
      %v381 = vrcp.pop %v332
      %v382 = vmul.f32 %v376, %v381
      %v383 = vpack.c.bf16 %v382, %v382
      %vm384 = vcmask 257024
      %385 = vst.msk [vmem:[%s263] sm:$0xf] %vm384, %v383
      %p386 = scmp.lt.s32.totalorder %s18, 1
      %s387 = scalar_select %p386, %s18, 1
      %p388 = scmp.lt.s32.totalorder %s19, 3
      %s389 = scalar_select %p388, %s19, 3
      %s390 = smul.addr %s387, 4
      %s391 = sadd.s32 %s389, %s390
      %s392 = smul.addr %s391, 4
      %s393 = scalar_lea.vmem %s3, %s392
      // Predicated region
      $region33: #{transformer_forward.39} parent=31 // pred_check
        %p394 = pneg %p130
      $region34: #{transformer_forward.39} parent=31 // pred_check_branch
        %396 = sbr.rel (%p394) target = $region36
      $region35: #{transformer_forward.39} parent=31 // pred_region
        _
      $region36: #{transformer_forward.39} parent=31 // pred_fallthru
        _
    $region32: #{transformer_forward.39} parent=5 // pred_fallthru
      _
    %p397 = scmp.le.s32.totalorder 2, %s9
    // Predicated region
    $region37: #{transformer_forward.39} parent=5 // pred_check
      %p398 = pneg %p397
    $region38: #{transformer_forward.39} parent=5 // pred_check_branch
      %400 = sbr.rel (%p398) target = $region40
    $region39: #{transformer_forward.39} parent=5 // pred_region
      %s401 = ssub.s32 %s9, 2
      // Predicated region
      $region41: #{transformer_forward.39} parent=39 // pred_check
        %p402 = pneg %p136
      $region42: #{transformer_forward.39} parent=39 // pred_check_branch
        %404 = sbr.rel (%p402) target = $region44
      $region43: #{transformer_forward.39} parent=39 // pred_region
        %p405 = scmp.lt.s32.totalorder %s20, 1
        %s406 = scalar_select %p405, %s20, 1
        %p407 = scmp.lt.s32.totalorder %s21, 3
        %s408 = scalar_select %p407, %s21, 3
        %s409 = smul.addr %s406, 4
        %s410 = sadd.s32 %s408, %s409
        %s411 = smul.addr %s410, 4
        %s412 = scalar_lea.vmem %s3, %s411
      $region44: #{transformer_forward.39} parent=39 // pred_fallthru
        _
    $region40: #{transformer_forward.39} parent=5 // pred_fallthru
      _
  $region6: #{transformer_forward.39} parent=0 // loop_footer
    %s13 = sadd.s32 1, %s9
  $region7: #{transformer_forward.39} parent=0 // loop_footer_branch
    %8 = sbr.rel target = $region3
  $region8: #{transformer_forward.39} parent=0 // loop_exit
    _

// kernel: transformer_forward.38
$region0: #{transformer_forward.38}
  #allocation0 [shape = 'u32[]', space=smem, size = 0x4, offset = 0x4, fixed_abs, tag = 'smem constant byte address 0x4 - core index']
  #allocation1 [shape = 'u32[144,128]{1,0:T(1,128)}', space=vmem, size = 0x12000, scoped, tag = 'internal scratch']
  %s0 = inlined_call_operand.vmem [shape: bf16[16,128], index: 0, kind: input, shape index: {}]
  %s1 = inlined_call_operand.hbm [shape: bf16[128,384], index: 1, kind: input, shape index: {}]
  %s2 = inlined_call_operand.vmem [shape: f32[1,384], index: 2, kind: input, shape index: {}]
  %s3 = inlined_call_operand.vmem [shape: bf16[16,384], index: 3, kind: output, shape index: {}]
  %s4 = sld [smem:[#allocation0]]
  $region26: #{transformer_forward.38} parent=0
    _
  %s6 = ssub.s32 1, %s4
  %s7 = scalar_select 0, %s6, %s4
  $region1: #{transformer_forward.38} parent=0
    #allocation2 [shape = 'u8[98304]{0}', space=vmem, size = 0x18000, scoped, tag = 'input window, operand 1, single buffered']
    #allocation3 [shape = 's32[1]{0}', space=sflag, size = 0x4, scoped, tag = 'scoped memory for transformer_forward.38']
    %8 = vsyncpa [#allocation3], 0
    // Predicated region
    $region2: #{transformer_forward.38} parent=1 // pred_check
      _
    $region3: #{transformer_forward.38} parent=1 // pred_check_branch
      %10 = sbr.rel (0) target = $region5
    $region4: #{transformer_forward.38} parent=1 // pred_region
      _
    $region5: #{transformer_forward.38} parent=1 // pred_fallthru
      _
    // Predicated region
    $region6: #{transformer_forward.38} parent=1 // pred_check
      _
    $region7: #{transformer_forward.38} parent=1 // pred_check_branch
      %12 = sbr.rel (0) target = $region9
    $region8: #{transformer_forward.38} parent=1 // pred_region
      %s14 = ssub.s32 3072, 3072
      %15 = vsyncadd [#allocation3], %s14
      %s16 = sshll.u32 [#allocation2], 4
      %s17 = int_to_ptr.vmem [resolvable:$true] %s16
      %22 = dma.hbm_to_vmem [thread:$0]  %s1, 3072, %s17, [#allocation3], 192, 192, 12
    $region9: #{transformer_forward.38} parent=1 // pred_fallthru
      _
    // Predicated region
    $region10: #{transformer_forward.38} parent=1 // pred_check
      _
    $region11: #{transformer_forward.38} parent=1 // pred_check_branch
      %24 = sbr.rel (0) target = $region13
    $region12: #{transformer_forward.38} parent=1 // pred_region
      _
    $region13: #{transformer_forward.38} parent=1 // pred_fallthru
      _
    // Predicated region
    $region14: #{transformer_forward.38} parent=1 // pred_check
      _
    $region15: #{transformer_forward.38} parent=1 // pred_check_branch
      %26 = sbr.rel (0) target = $region17
    $region16: #{transformer_forward.38} parent=1 // pred_region
      %27 = dma.done [#allocation3], 3072
    $region17: #{transformer_forward.38} parent=1 // pred_fallthru
      _
    %v29 = vld [vmem:[%s0] sm:$0xf]
    %v30 = vld [vmem:[%s0 + $0x4] sm:$0xf]
    %v31 = vld [vmem:[#allocation2] sm:$0xff]
    %v32 = vld [vmem:[#allocation2 + $0x8] sm:$0xf]
    %v33 = vld [vmem:[#allocation2 + $0xc] sm:$0xff]
    %v34 = vld [vmem:[#allocation2 + $0x14] sm:$0xf]
    %v35 = vld [vmem:[#allocation2 + $0x18] sm:$0xff]
    %v36 = vld [vmem:[#allocation2 + $0x20] sm:$0xf]
    %v37 = vld [vmem:[#allocation2 + $0x24] sm:$0xff]
    %v38 = vld [vmem:[#allocation2 + $0x2c] sm:$0xf]
    %v39 = vld [vmem:[#allocation2 + $0x30] sm:$0xff]
    %v40 = vld [vmem:[#allocation2 + $0x38] sm:$0xf]
    %v41 = vld [vmem:[#allocation2 + $0x3c] sm:$0xff]
    %v42 = vld [vmem:[#allocation2 + $0x44] sm:$0xf]
    %v43 = vld [vmem:[#allocation2 + $0x48] sm:$0xff]
    %v44 = vld [vmem:[#allocation2 + $0x50] sm:$0xf]
    %v45 = vld [vmem:[#allocation2 + $0x54] sm:$0xff]
    %v46 = vld [vmem:[#allocation2 + $0x5c] sm:$0xf]
    %v47 = vld [vmem:[#allocation2 + $0x60] sm:$0xff]
    %v48 = vld [vmem:[#allocation2 + $0x68] sm:$0xf]
    %v49 = vld [vmem:[#allocation2 + $0x6c] sm:$0xff]
    %v50 = vld [vmem:[#allocation2 + $0x74] sm:$0xf]
    %v51 = vld [vmem:[#allocation2 + $0x78] sm:$0xff]
    %v52 = vld [vmem:[#allocation2 + $0x80] sm:$0xf]
    %v53 = vld [vmem:[#allocation2 + $0x84] sm:$0xff]
    %v54 = vld [vmem:[#allocation2 + $0x8c] sm:$0xf]
    %v55 = vld [vmem:[#allocation2 + $0x90] sm:$0xff]
    %v56 = vld [vmem:[#allocation2 + $0x98] sm:$0xf]
    %v57 = vld [vmem:[#allocation2 + $0x9c] sm:$0xff]
    %v58 = vld [vmem:[#allocation2 + $0xa4] sm:$0xf]
    %v59 = vld [vmem:[#allocation2 + $0xa8] sm:$0xff]
    %v60 = vld [vmem:[#allocation2 + $0xb0] sm:$0xf]
    %v61 = vld [vmem:[#allocation2 + $0xb4] sm:$0xff]
    %v62 = vld [vmem:[#allocation2 + $0xbc] sm:$0xf]
    %v63 = vld [vmem:[%s2] sm:$0x7]
    %v65 = vlaneseq
    %v66 = vshrl.u32 %v65, 7
    %v67 = vsub.s32 0, %v66
    %v68 = vrot.slane %v63, %v67
    %v69 = vlaneseq
    %v70 = vshrl.u32 %v69, 7
    %v71 = vsub.s32 1, %v70
    %v72 = vrot.slane %v63, %v71
    %v73 = vlaneseq
    %v74 = vshrl.u32 %v73, 7
    %v75 = vsub.s32 2, %v74
    %v76 = vrot.slane %v63, %v75
    %v82 = vunpack.c.l.b16 %v29
    %v83 = vunpack.c.l.b16 %v30
    %v84 = vpack.c.b16 %v83, %v82
    %v118 = vunpack.c.l.b16 %v31
    %v119 = vunpack.c.h.b16 %v31
    %v120 = vunpack.c.l.b16 %v32
    %v121 = vunpack.c.l.b16 %v33
    %v122 = vunpack.c.h.b16 %v33
    %v123 = vunpack.c.l.b16 %v34
    %v124 = vunpack.c.l.b16 %v35
    %v125 = vunpack.c.h.b16 %v35
    %v126 = vunpack.c.l.b16 %v36
    %v127 = vunpack.c.l.b16 %v37
    %v128 = vunpack.c.h.b16 %v37
    %v129 = vunpack.c.l.b16 %v38
    %v130 = vunpack.c.l.b16 %v39
    %v131 = vunpack.c.h.b16 %v39
    %v132 = vunpack.c.l.b16 %v40
    %v133 = vunpack.c.l.b16 %v41
    %v134 = vunpack.c.h.b16 %v41
    %v135 = vunpack.c.l.b16 %v42
    %v136 = vunpack.c.l.b16 %v43
    %v137 = vunpack.c.h.b16 %v43
    %v138 = vunpack.c.l.b16 %v44
    %v139 = vunpack.c.l.b16 %v45
    %v140 = vunpack.c.h.b16 %v45
    %v141 = vunpack.c.l.b16 %v46
    %v142 = vunpack.c.l.b16 %v47
    %v143 = vunpack.c.h.b16 %v47
    %v144 = vunpack.c.l.b16 %v48
    %v145 = vunpack.c.l.b16 %v49
    %v146 = vunpack.c.h.b16 %v49
    %v147 = vunpack.c.l.b16 %v50
    %v148 = vunpack.c.l.b16 %v51
    %v149 = vunpack.c.h.b16 %v51
    %v150 = vunpack.c.l.b16 %v52
    %v151 = vunpack.c.l.b16 %v53
    %v152 = vunpack.c.h.b16 %v53
    %v153 = vunpack.c.l.b16 %v54
    %v154 = vunpack.c.l.b16 %v55
    %v155 = vunpack.c.h.b16 %v55
    %v156 = vunpack.c.l.b16 %v56
    %v157 = vunpack.c.l.b16 %v57
    %v158 = vunpack.c.h.b16 %v57
    %v159 = vunpack.c.l.b16 %v58
    %v160 = vunpack.c.l.b16 %v59
    %v161 = vunpack.c.h.b16 %v59
    %v162 = vunpack.c.l.b16 %v60
    %v163 = vunpack.c.l.b16 %v61
    %v164 = vunpack.c.h.b16 %v61
    %v165 = vunpack.c.l.b16 %v62
    %v166 = vpack.c.b16 %v121, %v118
    %v167 = vpack.c.b16 %v122, %v119
    %v168 = vpack.c.b16 %v123, %v120
    %v169 = vpack.c.b16 %v127, %v124
    %v170 = vpack.c.b16 %v128, %v125
    %v171 = vpack.c.b16 %v129, %v126
    %v172 = vpack.c.b16 %v133, %v130
    %v173 = vpack.c.b16 %v134, %v131
    %v174 = vpack.c.b16 %v135, %v132
    %v175 = vpack.c.b16 %v139, %v136
    %v176 = vpack.c.b16 %v140, %v137
    %v177 = vpack.c.b16 %v141, %v138
    %v178 = vpack.c.b16 %v145, %v142
    %v179 = vpack.c.b16 %v146, %v143
    %v180 = vpack.c.b16 %v147, %v144
    %v181 = vpack.c.b16 %v151, %v148
    %v182 = vpack.c.b16 %v152, %v149
    %v183 = vpack.c.b16 %v153, %v150
    %v184 = vpack.c.b16 %v157, %v154
    %v185 = vpack.c.b16 %v158, %v155
    %v186 = vpack.c.b16 %v159, %v156
    %v187 = vpack.c.b16 %v163, %v160
    %v188 = vpack.c.b16 %v164, %v161
    %v189 = vpack.c.b16 %v165, %v162
    %214 = vmatprep.subr.bf16.mxu0 %v188
    %215 = vmatpush1.bf16.msra.mxu0 %v187
    %216 = vmatprep.subr.bf16.mxu0 %v185
    %217 = vmatpush1.bf16.msra.mxu0 %v184
    %218 = vmatprep.subr.bf16.mxu0 %v182
    %219 = vmatpush1.bf16.msra.mxu0 %v181
    %220 = vmatprep.subr.bf16.mxu0 %v179
    %221 = vmatpush1.bf16.msra.mxu0 %v178
    %222 = vmatprep.subr.bf16.mxu0 %v176
    %223 = vmatpush1.bf16.msra.mxu0 %v175
    %224 = vmatprep.subr.bf16.mxu0 %v173
    %225 = vmatpush1.bf16.msra.mxu0 %v172
    %226 = vmatprep.subr.bf16.mxu0 %v170
    %227 = vmatpush1.bf16.msra.mxu0 %v169
    %228 = vmatprep.subr.bf16.mxu0 %v167
    %229 = vmatpush1.bf16.msra.mxu0 %v166
    %230 = vmatprep.subr.bf16.mxu0 0
    %231 = vmatpush2.bf16.msra.mxu0 0
    %232 = vmatprep.subr.bf16.mxu0 0
    %233 = vmatpush2.bf16.msra.mxu0 0
    %234 = vmatprep.subr.bf16.mxu0 0
    %235 = vmatpush2.bf16.msra.mxu0 0
    %236 = vmatprep.subr.bf16.mxu0 0
    %237 = vmatpush2.bf16.msra.mxu0 0
    %238 = vmatprep.subr.bf16.mxu0 0
    %239 = vmatpush2.bf16.msra.mxu0 0
    %240 = vmatprep.subr.bf16.mxu0 0
    %241 = vmatpush2.bf16.msra.mxu0 0
    %242 = vmatprep.subr.bf16.mxu0 0
    %243 = vmatpush2.bf16.msra.mxu0 0
    %244 = vmatprep.subr.bf16.mxu0 0
    %245 = vmatpush2.bf16.msra.mxu0 0
    %246 = vmatprep.mubr.bf16.mxu0 0
    %247 = vmatmul.mubr.bf16.gmra.mxu0 %v84
    %v248 = vpop.f32.mrf.mxu0
    %v249 = vadd.f32 %v68, %v248
    %v250 = vpop.f32.mrf.mxu0
    %v251 = vadd.f32 %v72, %v250
    %v252 = vpop.f32.mrf.mxu0
    %v253 = vadd.f32 %v68, %v252
    %v254 = vpop.f32.mrf.mxu0
    %v255 = vadd.f32 %v72, %v254
    %256 = vdwg.mxu0
    %257 = vmatprep.subr.bf16.mxu0 0
    %258 = vmatpush1.bf16.msra.mxu0 %v189
    %259 = vmatprep.subr.bf16.mxu0 0
    %260 = vmatpush1.bf16.msra.mxu0 %v186
    %261 = vmatprep.subr.bf16.mxu0 0
    %262 = vmatpush1.bf16.msra.mxu0 %v183
    %263 = vmatprep.subr.bf16.mxu0 0
    %264 = vmatpush1.bf16.msra.mxu0 %v180
    %265 = vmatprep.subr.bf16.mxu0 0
    %266 = vmatpush1.bf16.msra.mxu0 %v177
    %267 = vmatprep.subr.bf16.mxu0 0
    %268 = vmatpush1.bf16.msra.mxu0 %v174
    %269 = vmatprep.subr.bf16.mxu0 0
    %270 = vmatpush1.bf16.msra.mxu0 %v171
    %271 = vmatprep.subr.bf16.mxu0 0
    %272 = vmatpush1.bf16.msra.mxu0 %v168
    %273 = vmatprep.subr.bf16.mxu0 0
    %274 = vmatpush2.bf16.msra.mxu0 0
    %275 = vmatprep.subr.bf16.mxu0 0
    %276 = vmatpush2.bf16.msra.mxu0 0
    %277 = vmatprep.subr.bf16.mxu0 0
    %278 = vmatpush2.bf16.msra.mxu0 0
    %279 = vmatprep.subr.bf16.mxu0 0
    %280 = vmatpush2.bf16.msra.mxu0 0
    %281 = vmatprep.subr.bf16.mxu0 0
    %282 = vmatpush2.bf16.msra.mxu0 0
    %283 = vmatprep.subr.bf16.mxu0 0
    %284 = vmatpush2.bf16.msra.mxu0 0
    %285 = vmatprep.subr.bf16.mxu0 0
    %286 = vmatpush2.bf16.msra.mxu0 0
    %287 = vmatprep.subr.bf16.mxu0 0
    %288 = vmatpush2.bf16.msra.mxu0 0
    %289 = vmatprep.mubr.bf16.mxu0 0
    %290 = vmatmul.mubr.bf16.gmra.mxu0 %v84
    %v291 = vpop.f32.mrf.mxu0
    %v292 = vadd.f32 %v76, %v291
    %v293 = vpop.f32.mrf.mxu0
    %v294 = vpop.f32.mrf.mxu0
    %v295 = vadd.f32 %v76, %v294
    %v296 = vpop.f32.mrf.mxu0
    %297 = vdwg.mxu0
    %v298 = vpack.c.bf16 %v253, %v249
    %v299 = vpack.c.bf16 %v255, %v251
    %v300 = vpack.c.bf16 %v295, %v292
    %v304 = vunpack.c.l.b16 %v298
    %v305 = vunpack.c.l.b16 %v299
    %v306 = vunpack.c.l.b16 %v300
    %v307 = vunpack.c.h.b16 %v298
    %v308 = vunpack.c.h.b16 %v299
    %v309 = vunpack.c.h.b16 %v300
    %v310 = vpack.c.b16 %v305, %v304
    %v311 = vpack.c.b16 %v306, %v306
    %v312 = vpack.c.b16 %v308, %v307
    %v313 = vpack.c.b16 %v309, %v309
    %318 = vst [vmem:[%s3] sm:$0xff] %v310
    %319 = vst [vmem:[%s3 + $0x8] sm:$0xf] %v311
    %320 = vst [vmem:[%s3 + $0xc] sm:$0xff] %v312
    %321 = vst [vmem:[%s3 + $0x14] sm:$0xf] %v313
    // Predicated region
    $region18: #{transformer_forward.38} parent=1 // pred_check
      _
    $region19: #{transformer_forward.38} parent=1 // pred_check_branch
      %323 = sbr.rel (0) target = $region21
    $region20: #{transformer_forward.38} parent=1 // pred_region
      _
    $region21: #{transformer_forward.38} parent=1 // pred_fallthru
      _
    // Predicated region
    $region22: #{transformer_forward.38} parent=1 // pred_check
      _
    $region23: #{transformer_forward.38} parent=1 // pred_check_branch
      %325 = sbr.rel (0) target = $region25
    $region24: #{transformer_forward.38} parent=1 // pred_region
      _
    $region25: #{transformer_forward.38} parent=1 // pred_fallthru
      _
    %326 = vsyncpa [#allocation3], 1

// kernel: transformer_forward.41
$region0: #{transformer_forward.41}
  #allocation0 [shape = 'u32[]', space=smem, size = 0x4, offset = 0x4, fixed_abs, tag = 'smem constant byte address 0x4 - core index']
  #allocation1 [shape = 'u32[144,128]{1,0:T(1,128)}', space=vmem, size = 0x12000, scoped, tag = 'internal scratch']
  %s0 = inlined_call_operand.vmem [shape: bf16[16,128], index: 0, kind: input, shape index: {}]
  %s1 = inlined_call_operand.vmem [shape: bf16[128,128], index: 1, kind: input, shape index: {}]
  %s2 = inlined_call_operand.vmem [shape: f32[1,128], index: 2, kind: input, shape index: {}]
  %s3 = inlined_call_operand.vmem [shape: bf16[16,128], index: 3, kind: output, shape index: {}]
  %s4 = sld [smem:[#allocation0]]
  $region22: #{transformer_forward.41} parent=0
    _
  %s6 = ssub.s32 1, %s4
  %s7 = scalar_select 0, %s6, %s4
  // Predicated region
  $region2: #{transformer_forward.41} parent=0 // pred_check
    _
  $region3: #{transformer_forward.41} parent=0 // pred_check_branch
    %9 = sbr.rel (0) target = $region5
  $region4: #{transformer_forward.41} parent=0 // pred_region
    _
  $region5: #{transformer_forward.41} parent=0 // pred_fallthru
    _
  // Predicated region
  $region6: #{transformer_forward.41} parent=0 // pred_check
    _
  $region7: #{transformer_forward.41} parent=0 // pred_check_branch
    %11 = sbr.rel (0) target = $region9
  $region8: #{transformer_forward.41} parent=0 // pred_region
    _
  $region9: #{transformer_forward.41} parent=0 // pred_fallthru
    _
  // Predicated region
  $region10: #{transformer_forward.41} parent=0 // pred_check
    _
  $region11: #{transformer_forward.41} parent=0 // pred_check_branch
    %13 = sbr.rel (0) target = $region13
  $region12: #{transformer_forward.41} parent=0 // pred_region
    _
  $region13: #{transformer_forward.41} parent=0 // pred_fallthru
    _
  %v15 = vld [vmem:[%s0] sm:$0xf]
  %v16 = vld [vmem:[%s0 + $0x4] sm:$0xf]
  %v17 = vld [vmem:[%s1] sm:$0xf]
  %v18 = vld [vmem:[%s1 + $0x4] sm:$0xf]
  %v19 = vld [vmem:[%s1 + $0x8] sm:$0xf]
  %v20 = vld [vmem:[%s1 + $0xc] sm:$0xf]
  %v21 = vld [vmem:[%s1 + $0x10] sm:$0xf]
  %v22 = vld [vmem:[%s1 + $0x14] sm:$0xf]
  %v23 = vld [vmem:[%s1 + $0x18] sm:$0xf]
  %v24 = vld [vmem:[%s1 + $0x1c] sm:$0xf]
  %v25 = vld [vmem:[%s1 + $0x20] sm:$0xf]
  %v26 = vld [vmem:[%s1 + $0x24] sm:$0xf]
  %v27 = vld [vmem:[%s1 + $0x28] sm:$0xf]
  %v28 = vld [vmem:[%s1 + $0x2c] sm:$0xf]
  %v29 = vld [vmem:[%s1 + $0x30] sm:$0xf]
  %v30 = vld [vmem:[%s1 + $0x34] sm:$0xf]
  %v31 = vld [vmem:[%s1 + $0x38] sm:$0xf]
  %v32 = vld [vmem:[%s1 + $0x3c] sm:$0xf]
  %v33 = vld [vmem:[%s2] sm:$0x1]
  %v35 = vlaneseq
  %v36 = vshrl.u32 %v35, 7
  %v37 = vsub.s32 0, %v36
  %v38 = vrot.slane %v33, %v37
  %v42 = vunpack.c.l.b16 %v15
  %v43 = vunpack.c.l.b16 %v16
  %v44 = vpack.c.b16 %v43, %v42
  %v62 = vunpack.c.l.b16 %v17
  %v63 = vunpack.c.l.b16 %v18
  %v64 = vunpack.c.l.b16 %v19
  %v65 = vunpack.c.l.b16 %v20
  %v66 = vunpack.c.l.b16 %v21
  %v67 = vunpack.c.l.b16 %v22
  %v68 = vunpack.c.l.b16 %v23
  %v69 = vunpack.c.l.b16 %v24
  %v70 = vunpack.c.l.b16 %v25
  %v71 = vunpack.c.l.b16 %v26
  %v72 = vunpack.c.l.b16 %v27
  %v73 = vunpack.c.l.b16 %v28
  %v74 = vunpack.c.l.b16 %v29
  %v75 = vunpack.c.l.b16 %v30
  %v76 = vunpack.c.l.b16 %v31
  %v77 = vunpack.c.l.b16 %v32
  %v78 = vpack.c.b16 %v63, %v62
  %v79 = vpack.c.b16 %v65, %v64
  %v80 = vpack.c.b16 %v67, %v66
  %v81 = vpack.c.b16 %v69, %v68
  %v82 = vpack.c.b16 %v71, %v70
  %v83 = vpack.c.b16 %v73, %v72
  %v84 = vpack.c.b16 %v75, %v74
  %v85 = vpack.c.b16 %v77, %v76
  %94 = vmatprep.subr.bf16.mxu0 0
  %95 = vmatpush1.bf16.msra.mxu0 %v85
  %96 = vmatprep.subr.bf16.mxu0 0
  %97 = vmatpush1.bf16.msra.mxu0 %v84
  %98 = vmatprep.subr.bf16.mxu0 0
  %99 = vmatpush1.bf16.msra.mxu0 %v83
  %100 = vmatprep.subr.bf16.mxu0 0
  %101 = vmatpush1.bf16.msra.mxu0 %v82
  %102 = vmatprep.subr.bf16.mxu0 0
  %103 = vmatpush1.bf16.msra.mxu0 %v81
  %104 = vmatprep.subr.bf16.mxu0 0
  %105 = vmatpush1.bf16.msra.mxu0 %v80
  %106 = vmatprep.subr.bf16.mxu0 0
  %107 = vmatpush1.bf16.msra.mxu0 %v79
  %108 = vmatprep.subr.bf16.mxu0 0
  %109 = vmatpush1.bf16.msra.mxu0 %v78
  %110 = vmatprep.subr.bf16.mxu0 0
  %111 = vmatpush2.bf16.msra.mxu0 0
  %112 = vmatprep.subr.bf16.mxu0 0
  %113 = vmatpush2.bf16.msra.mxu0 0
  %114 = vmatprep.subr.bf16.mxu0 0
  %115 = vmatpush2.bf16.msra.mxu0 0
  %116 = vmatprep.subr.bf16.mxu0 0
  %117 = vmatpush2.bf16.msra.mxu0 0
  %118 = vmatprep.subr.bf16.mxu0 0
  %119 = vmatpush2.bf16.msra.mxu0 0
  %120 = vmatprep.subr.bf16.mxu0 0
  %121 = vmatpush2.bf16.msra.mxu0 0
  %122 = vmatprep.subr.bf16.mxu0 0
  %123 = vmatpush2.bf16.msra.mxu0 0
  %124 = vmatprep.subr.bf16.mxu0 0
  %125 = vmatpush2.bf16.msra.mxu0 0
  %126 = vmatprep.mubr.bf16.mxu0 0
  %127 = vmatmul.mubr.bf16.gmra.mxu0 %v44
  %v128 = vpop.f32.mrf.mxu0
  %v129 = vadd.f32 %v38, %v128
  %v130 = vpop.f32.mrf.mxu0
  %v131 = vpop.f32.mrf.mxu0
  %v132 = vadd.f32 %v38, %v131
  %v133 = vpop.f32.mrf.mxu0
  %134 = vdwg.mxu0
  %v135 = vpack.c.bf16 %v132, %v129
  %v137 = vunpack.c.l.b16 %v135
  %v138 = vunpack.c.h.b16 %v135
  %v139 = vpack.c.b16 %v137, %v137
  %v140 = vpack.c.b16 %v138, %v138
  %143 = vst [vmem:[%s3] sm:$0xf] %v139
  %144 = vst [vmem:[%s3 + $0x4] sm:$0xf] %v140
  // Predicated region
  $region14: #{transformer_forward.41} parent=0 // pred_check
    _
  $region15: #{transformer_forward.41} parent=0 // pred_check_branch
    %146 = sbr.rel (0) target = $region17
  $region16: #{transformer_forward.41} parent=0 // pred_region
    _
  $region17: #{transformer_forward.41} parent=0 // pred_fallthru
    _
  // Predicated region
  $region18: #{transformer_forward.41} parent=0 // pred_check
    _
  $region19: #{transformer_forward.41} parent=0 // pred_check_branch
    %148 = sbr.rel (0) target = $region21
  $region20: #{transformer_forward.41} parent=0 // pred_region
    _
  $region21: #{transformer_forward.41} parent=0 // pred_fallthru
    _

// kernel: transformer_forward.40
$region0: #{transformer_forward.40}
  #allocation0 [shape = 'u32[]', space=smem, size = 0x4, offset = 0x4, fixed_abs, tag = 'smem constant byte address 0x4 - core index']
  #allocation1 [shape = 'u32[144,128]{1,0:T(1,128)}', space=vmem, size = 0x12000, scoped, tag = 'internal scratch']
  %s0 = inlined_call_operand.vmem [shape: bf16[16,128], index: 0, kind: input, shape index: {}]
  %s1 = inlined_call_operand.vmem [shape: bf16[128,128], index: 1, kind: input, shape index: {}]
  %s2 = inlined_call_operand.vmem [shape: f32[1,128], index: 2, kind: input, shape index: {}]
  %s3 = inlined_call_operand.vmem [shape: bf16[16,128], index: 3, kind: input, shape index: {}]
  %s4 = inlined_call_operand.vmem [shape: f32[1,128], index: 4, kind: input, shape index: {}]
  %s5 = inlined_call_operand.vmem [shape: f32[1,128], index: 5, kind: input, shape index: {}]
  %s6 = inlined_call_operand.vmem [shape: bf16[16,128], index: 6, kind: output, shape index: {}]
  %s7 = sld [smem:[#allocation0]]
  $region34: #{transformer_forward.40} parent=0
    _
  %s9 = ssub.s32 1, %s7
  %s10 = scalar_select 0, %s9, %s7
  // Predicated region
  $region2: #{transformer_forward.40} parent=0 // pred_check
    _
  $region3: #{transformer_forward.40} parent=0 // pred_check_branch
    %12 = sbr.rel (0) target = $region5
  $region4: #{transformer_forward.40} parent=0 // pred_region
    _
  $region5: #{transformer_forward.40} parent=0 // pred_fallthru
    _
  // Predicated region
  $region6: #{transformer_forward.40} parent=0 // pred_check
    _
  $region7: #{transformer_forward.40} parent=0 // pred_check_branch
    %14 = sbr.rel (0) target = $region9
  $region8: #{transformer_forward.40} parent=0 // pred_region
    _
  $region9: #{transformer_forward.40} parent=0 // pred_fallthru
    _
  // Predicated region
  $region10: #{transformer_forward.40} parent=0 // pred_check
    _
  $region11: #{transformer_forward.40} parent=0 // pred_check_branch
    %16 = sbr.rel (0) target = $region13
  $region12: #{transformer_forward.40} parent=0 // pred_region
    _
  $region13: #{transformer_forward.40} parent=0 // pred_fallthru
    _
  // Predicated region
  $region14: #{transformer_forward.40} parent=0 // pred_check
    _
  $region15: #{transformer_forward.40} parent=0 // pred_check_branch
    %18 = sbr.rel (0) target = $region17
  $region16: #{transformer_forward.40} parent=0 // pred_region
    _
  $region17: #{transformer_forward.40} parent=0 // pred_fallthru
    _
  // Predicated region
  $region18: #{transformer_forward.40} parent=0 // pred_check
    _
  $region19: #{transformer_forward.40} parent=0 // pred_check_branch
    %20 = sbr.rel (0) target = $region21
  $region20: #{transformer_forward.40} parent=0 // pred_region
    _
  $region21: #{transformer_forward.40} parent=0 // pred_fallthru
    _
  // Predicated region
  $region22: #{transformer_forward.40} parent=0 // pred_check
    _
  $region23: #{transformer_forward.40} parent=0 // pred_check_branch
    %22 = sbr.rel (0) target = $region25
  $region24: #{transformer_forward.40} parent=0 // pred_region
    _
  $region25: #{transformer_forward.40} parent=0 // pred_fallthru
    _
  %v24 = vld [vmem:[%s0] sm:$0xf]
  %v25 = vld [vmem:[%s0 + $0x4] sm:$0xf]
  %v26 = vld [vmem:[%s1] sm:$0xf]
  %v27 = vld [vmem:[%s1 + $0x4] sm:$0xf]
  %v28 = vld [vmem:[%s1 + $0x8] sm:$0xf]
  %v29 = vld [vmem:[%s1 + $0xc] sm:$0xf]
  %v30 = vld [vmem:[%s1 + $0x10] sm:$0xf]
  %v31 = vld [vmem:[%s1 + $0x14] sm:$0xf]
  %v32 = vld [vmem:[%s1 + $0x18] sm:$0xf]
  %v33 = vld [vmem:[%s1 + $0x1c] sm:$0xf]
  %v34 = vld [vmem:[%s1 + $0x20] sm:$0xf]
  %v35 = vld [vmem:[%s1 + $0x24] sm:$0xf]
  %v36 = vld [vmem:[%s1 + $0x28] sm:$0xf]
  %v37 = vld [vmem:[%s1 + $0x2c] sm:$0xf]
  %v38 = vld [vmem:[%s1 + $0x30] sm:$0xf]
  %v39 = vld [vmem:[%s1 + $0x34] sm:$0xf]
  %v40 = vld [vmem:[%s1 + $0x38] sm:$0xf]
  %v41 = vld [vmem:[%s1 + $0x3c] sm:$0xf]
  %v42 = vld [vmem:[%s2] sm:$0x1]
  %v44 = vlaneseq
  %v45 = vshrl.u32 %v44, 7
  %v46 = vsub.s32 0, %v45
  %v47 = vrot.slane %v42, %v46
  %v51 = vunpack.c.l.b16 %v24
  %v52 = vunpack.c.l.b16 %v25
  %v53 = vpack.c.b16 %v52, %v51
  %v71 = vunpack.c.l.b16 %v26
  %v72 = vunpack.c.l.b16 %v27
  %v73 = vunpack.c.l.b16 %v28
  %v74 = vunpack.c.l.b16 %v29
  %v75 = vunpack.c.l.b16 %v30
  %v76 = vunpack.c.l.b16 %v31
  %v77 = vunpack.c.l.b16 %v32
  %v78 = vunpack.c.l.b16 %v33
  %v79 = vunpack.c.l.b16 %v34
  %v80 = vunpack.c.l.b16 %v35
  %v81 = vunpack.c.l.b16 %v36
  %v82 = vunpack.c.l.b16 %v37
  %v83 = vunpack.c.l.b16 %v38
  %v84 = vunpack.c.l.b16 %v39
  %v85 = vunpack.c.l.b16 %v40
  %v86 = vunpack.c.l.b16 %v41
  %v87 = vpack.c.b16 %v72, %v71
  %v88 = vpack.c.b16 %v74, %v73
  %v89 = vpack.c.b16 %v76, %v75
  %v90 = vpack.c.b16 %v78, %v77
  %v91 = vpack.c.b16 %v80, %v79
  %v92 = vpack.c.b16 %v82, %v81
  %v93 = vpack.c.b16 %v84, %v83
  %v94 = vpack.c.b16 %v86, %v85
  %103 = vmatprep.subr.bf16.mxu0 0
  %104 = vmatpush1.bf16.msra.mxu0 %v94
  %105 = vmatprep.subr.bf16.mxu0 0
  %106 = vmatpush1.bf16.msra.mxu0 %v93
  %107 = vmatprep.subr.bf16.mxu0 0
  %108 = vmatpush1.bf16.msra.mxu0 %v92
  %109 = vmatprep.subr.bf16.mxu0 0
  %110 = vmatpush1.bf16.msra.mxu0 %v91
  %111 = vmatprep.subr.bf16.mxu0 0
  %112 = vmatpush1.bf16.msra.mxu0 %v90
  %113 = vmatprep.subr.bf16.mxu0 0
  %114 = vmatpush1.bf16.msra.mxu0 %v89
  %115 = vmatprep.subr.bf16.mxu0 0
  %116 = vmatpush1.bf16.msra.mxu0 %v88
  %117 = vmatprep.subr.bf16.mxu0 0
  %118 = vmatpush1.bf16.msra.mxu0 %v87
  %119 = vmatprep.subr.bf16.mxu0 0
  %120 = vmatpush2.bf16.msra.mxu0 0
  %121 = vmatprep.subr.bf16.mxu0 0
  %122 = vmatpush2.bf16.msra.mxu0 0
  %123 = vmatprep.subr.bf16.mxu0 0
  %124 = vmatpush2.bf16.msra.mxu0 0
  %125 = vmatprep.subr.bf16.mxu0 0
  %126 = vmatpush2.bf16.msra.mxu0 0
  %127 = vmatprep.subr.bf16.mxu0 0
  %128 = vmatpush2.bf16.msra.mxu0 0
  %129 = vmatprep.subr.bf16.mxu0 0
  %130 = vmatpush2.bf16.msra.mxu0 0
  %131 = vmatprep.subr.bf16.mxu0 0
  %132 = vmatpush2.bf16.msra.mxu0 0
  %133 = vmatprep.subr.bf16.mxu0 0
  %134 = vmatpush2.bf16.msra.mxu0 0
  %135 = vmatprep.mubr.bf16.mxu0 0
  %136 = vmatmul.mubr.bf16.gmra.mxu0 %v53
  %v137 = vpop.f32.mrf.mxu0
  %v138 = vadd.f32 %v47, %v137
  %v139 = vpop.f32.mrf.mxu0
  %v140 = vpop.f32.mrf.mxu0
  %v141 = vadd.f32 %v47, %v140
  %v142 = vpop.f32.mrf.mxu0
  %143 = vdwg.mxu0
  %v144 = vld [vmem:[%s3] sm:$0xf]
  %v145 = vld [vmem:[%s3 + $0x4] sm:$0xf]
  %v146 = vunpack.c.l.bf16 %v144
  %v147 = vunpack.c.l.bf16 %v145
  %v148 = vadd.f32 %v138, %v146
  %v149 = vadd.f32 %v141, %v147
  %v150 = vld [vmem:[%s4] sm:$0x1]
  %v151 = vld [vmem:[%s5] sm:$0x1]
  %152 = vadd.xlane.f32.xlu0 %v148
  %v153 = vpop.xlane.xlu0 %152
  %154 = vadd.xlane.f32.xlu0 %v149
  %v155 = vpop.xlane.xlu0 %154
  %v156 = vrcp.pop 128.0
  %v157 = vmul.f32 %v153, %v156
  %v158 = vmul.f32 %v155, %v156
  %v159 = vsub.f32 %v148, %v157
  %v160 = vsub.f32 %v149, %v158
  %v161 = vmul.f32 %v159, %v159
  %v162 = vmul.f32 %v160, %v160
  %163 = vadd.xlane.f32.xlu0 %v161
  %v164 = vpop.xlane.xlu0 %163
  %165 = vadd.xlane.f32.xlu0 %v162
  %v166 = vpop.xlane.xlu0 %165
  %v167 = vmul.f32 %v164, %v156
  %v168 = vmul.f32 %v166, %v156
  %v169 = vadd.f32 %v167, 1e-05
  %v170 = vadd.f32 %v168, 1e-05
  %v171 = vrsqrt.pop %v169
  %v172 = vrsqrt.pop %v170
  %v173 = vmul.f32 %v159, %v171
  %v174 = vmul.f32 %v160, %v172
  %v176 = vlaneseq
  %v177 = vshrl.u32 %v176, 7
  %v178 = vsub.s32 0, %v177
  %v179 = vrot.slane %v150, %v178
  %v181 = vmul.f32 %v173, %v179
  %v182 = vmul.f32 %v174, %v179
  %v184 = vlaneseq
  %v185 = vshrl.u32 %v184, 7
  %v186 = vsub.s32 0, %v185
  %v187 = vrot.slane %v151, %v186
  %v189 = vadd.f32 %v181, %v187
  %v190 = vadd.f32 %v182, %v187
  %v191 = vpack.c.bf16 %v190, %v189
  %v193 = vunpack.c.l.b16 %v191
  %v194 = vunpack.c.h.b16 %v191
  %v195 = vpack.c.b16 %v193, %v193
  %v196 = vpack.c.b16 %v194, %v194
  %199 = vst [vmem:[%s6] sm:$0xf] %v195
  %200 = vst [vmem:[%s6 + $0x4] sm:$0xf] %v196
  // Predicated region
  $region26: #{transformer_forward.40} parent=0 // pred_check
    _
  $region27: #{transformer_forward.40} parent=0 // pred_check_branch
    %202 = sbr.rel (0) target = $region29
  $region28: #{transformer_forward.40} parent=0 // pred_region
    _
  $region29: #{transformer_forward.40} parent=0 // pred_fallthru
    _
  // Predicated region
  $region30: #{transformer_forward.40} parent=0 // pred_check
    _
  $region31: #{transformer_forward.40} parent=0 // pred_check_branch
    %204 = sbr.rel (0) target = $region33
  $region32: #{transformer_forward.40} parent=0 // pred_region
    _
  $region33: #{transformer_forward.40} parent=0 // pred_fallthru
    _

// kernel: transformer_forward.28
$region0: #{transformer_forward.28}
  #allocation0 [shape = 'u32[]', space=smem, size = 0x4, offset = 0x4, fixed_abs, tag = 'smem constant byte address 0x4 - core index']
  #allocation1 [shape = 'u32[144,128]{1,0:T(1,128)}', space=vmem, size = 0x12000, scoped, tag = 'internal scratch']
  %s0 = inlined_call_operand.vmem [shape: bf16[16,128], index: 0, kind: input, shape index: {}]
  %s1 = inlined_call_operand.vmem [shape: bf16[128,384], index: 1, kind: input, shape index: {}]
  %s2 = inlined_call_operand.vmem [shape: f32[1,384], index: 2, kind: input, shape index: {}]
  %s3 = inlined_call_operand.vmem [shape: bf16[16,384], index: 3, kind: output, shape index: {}]
  %s4 = sld [smem:[#allocation0]]
  $region22: #{transformer_forward.28} parent=0
    _
  %s6 = ssub.s32 1, %s4
  %s7 = scalar_select 0, %s6, %s4
  // Predicated region
  $region2: #{transformer_forward.28} parent=0 // pred_check
    _
  $region3: #{transformer_forward.28} parent=0 // pred_check_branch
    %9 = sbr.rel (0) target = $region5
  $region4: #{transformer_forward.28} parent=0 // pred_region
    _
  $region5: #{transformer_forward.28} parent=0 // pred_fallthru
    _
  // Predicated region
  $region6: #{transformer_forward.28} parent=0 // pred_check
    _
  $region7: #{transformer_forward.28} parent=0 // pred_check_branch
    %11 = sbr.rel (0) target = $region9
  $region8: #{transformer_forward.28} parent=0 // pred_region
    _
  $region9: #{transformer_forward.28} parent=0 // pred_fallthru
    _
  // Predicated region
  $region10: #{transformer_forward.28} parent=0 // pred_check
    _
  $region11: #{transformer_forward.28} parent=0 // pred_check_branch
    %13 = sbr.rel (0) target = $region13
  $region12: #{transformer_forward.28} parent=0 // pred_region
    _
  $region13: #{transformer_forward.28} parent=0 // pred_fallthru
    _
  %v15 = vld [vmem:[%s0] sm:$0xf]
  %v16 = vld [vmem:[%s0 + $0x4] sm:$0xf]
  %v17 = vld [vmem:[%s1] sm:$0xff]
  %v18 = vld [vmem:[%s1 + $0x8] sm:$0xf]
  %v19 = vld [vmem:[%s1 + $0xc] sm:$0xff]
  %v20 = vld [vmem:[%s1 + $0x14] sm:$0xf]
  %v21 = vld [vmem:[%s1 + $0x18] sm:$0xff]
  %v22 = vld [vmem:[%s1 + $0x20] sm:$0xf]
  %v23 = vld [vmem:[%s1 + $0x24] sm:$0xff]
  %v24 = vld [vmem:[%s1 + $0x2c] sm:$0xf]
  %v25 = vld [vmem:[%s1 + $0x30] sm:$0xff]
  %v26 = vld [vmem:[%s1 + $0x38] sm:$0xf]
  %v27 = vld [vmem:[%s1 + $0x3c] sm:$0xff]
  %v28 = vld [vmem:[%s1 + $0x44] sm:$0xf]
  %v29 = vld [vmem:[%s1 + $0x48] sm:$0xff]
  %v30 = vld [vmem:[%s1 + $0x50] sm:$0xf]
  %v31 = vld [vmem:[%s1 + $0x54] sm:$0xff]
  %v32 = vld [vmem:[%s1 + $0x5c] sm:$0xf]
  %v33 = vld [vmem:[%s1 + $0x60] sm:$0xff]
  %v34 = vld [vmem:[%s1 + $0x68] sm:$0xf]
  %v35 = vld [vmem:[%s1 + $0x6c] sm:$0xff]
  %v36 = vld [vmem:[%s1 + $0x74] sm:$0xf]
  %v37 = vld [vmem:[%s1 + $0x78] sm:$0xff]
  %v38 = vld [vmem:[%s1 + $0x80] sm:$0xf]
  %v39 = vld [vmem:[%s1 + $0x84] sm:$0xff]
  %v40 = vld [vmem:[%s1 + $0x8c] sm:$0xf]
  %v41 = vld [vmem:[%s1 + $0x90] sm:$0xff]
  %v42 = vld [vmem:[%s1 + $0x98] sm:$0xf]
  %v43 = vld [vmem:[%s1 + $0x9c] sm:$0xff]
  %v44 = vld [vmem:[%s1 + $0xa4] sm:$0xf]
  %v45 = vld [vmem:[%s1 + $0xa8] sm:$0xff]
  %v46 = vld [vmem:[%s1 + $0xb0] sm:$0xf]
  %v47 = vld [vmem:[%s1 + $0xb4] sm:$0xff]
  %v48 = vld [vmem:[%s1 + $0xbc] sm:$0xf]
  %v49 = vld [vmem:[%s2] sm:$0x7]
  %v51 = vlaneseq
  %v52 = vshrl.u32 %v51, 7
  %v53 = vsub.s32 0, %v52
  %v54 = vrot.slane %v49, %v53
  %v55 = vlaneseq
  %v56 = vshrl.u32 %v55, 7
  %v57 = vsub.s32 1, %v56
  %v58 = vrot.slane %v49, %v57
  %v59 = vlaneseq
  %v60 = vshrl.u32 %v59, 7
  %v61 = vsub.s32 2, %v60
  %v62 = vrot.slane %v49, %v61
  %v68 = vunpack.c.l.b16 %v15
  %v69 = vunpack.c.l.b16 %v16
  %v70 = vpack.c.b16 %v69, %v68
  %v104 = vunpack.c.l.b16 %v17
  %v105 = vunpack.c.h.b16 %v17
  %v106 = vunpack.c.l.b16 %v18
  %v107 = vunpack.c.l.b16 %v19
  %v108 = vunpack.c.h.b16 %v19
  %v109 = vunpack.c.l.b16 %v20
  %v110 = vunpack.c.l.b16 %v21
  %v111 = vunpack.c.h.b16 %v21
  %v112 = vunpack.c.l.b16 %v22
  %v113 = vunpack.c.l.b16 %v23
  %v114 = vunpack.c.h.b16 %v23
  %v115 = vunpack.c.l.b16 %v24
  %v116 = vunpack.c.l.b16 %v25
  %v117 = vunpack.c.h.b16 %v25
  %v118 = vunpack.c.l.b16 %v26
  %v119 = vunpack.c.l.b16 %v27
  %v120 = vunpack.c.h.b16 %v27
  %v121 = vunpack.c.l.b16 %v28
  %v122 = vunpack.c.l.b16 %v29
  %v123 = vunpack.c.h.b16 %v29
  %v124 = vunpack.c.l.b16 %v30
  %v125 = vunpack.c.l.b16 %v31
  %v126 = vunpack.c.h.b16 %v31
  %v127 = vunpack.c.l.b16 %v32
  %v128 = vunpack.c.l.b16 %v33
  %v129 = vunpack.c.h.b16 %v33
  %v130 = vunpack.c.l.b16 %v34
  %v131 = vunpack.c.l.b16 %v35
  %v132 = vunpack.c.h.b16 %v35
  %v133 = vunpack.c.l.b16 %v36
  %v134 = vunpack.c.l.b16 %v37
  %v135 = vunpack.c.h.b16 %v37
  %v136 = vunpack.c.l.b16 %v38
  %v137 = vunpack.c.l.b16 %v39
  %v138 = vunpack.c.h.b16 %v39
  %v139 = vunpack.c.l.b16 %v40
  %v140 = vunpack.c.l.b16 %v41
  %v141 = vunpack.c.h.b16 %v41
  %v142 = vunpack.c.l.b16 %v42
  %v143 = vunpack.c.l.b16 %v43
  %v144 = vunpack.c.h.b16 %v43
  %v145 = vunpack.c.l.b16 %v44
  %v146 = vunpack.c.l.b16 %v45
  %v147 = vunpack.c.h.b16 %v45
  %v148 = vunpack.c.l.b16 %v46
  %v149 = vunpack.c.l.b16 %v47
  %v150 = vunpack.c.h.b16 %v47
  %v151 = vunpack.c.l.b16 %v48
  %v152 = vpack.c.b16 %v107, %v104
  %v153 = vpack.c.b16 %v108, %v105
  %v154 = vpack.c.b16 %v109, %v106
  %v155 = vpack.c.b16 %v113, %v110
  %v156 = vpack.c.b16 %v114, %v111
  %v157 = vpack.c.b16 %v115, %v112
  %v158 = vpack.c.b16 %v119, %v116
  %v159 = vpack.c.b16 %v120, %v117
  %v160 = vpack.c.b16 %v121, %v118
  %v161 = vpack.c.b16 %v125, %v122
  %v162 = vpack.c.b16 %v126, %v123
  %v163 = vpack.c.b16 %v127, %v124
  %v164 = vpack.c.b16 %v131, %v128
  %v165 = vpack.c.b16 %v132, %v129
  %v166 = vpack.c.b16 %v133, %v130
  %v167 = vpack.c.b16 %v137, %v134
  %v168 = vpack.c.b16 %v138, %v135
  %v169 = vpack.c.b16 %v139, %v136
  %v170 = vpack.c.b16 %v143, %v140
  %v171 = vpack.c.b16 %v144, %v141
  %v172 = vpack.c.b16 %v145, %v142
  %v173 = vpack.c.b16 %v149, %v146
  %v174 = vpack.c.b16 %v150, %v147
  %v175 = vpack.c.b16 %v151, %v148
  %200 = vmatprep.subr.bf16.mxu0 %v174
  %201 = vmatpush1.bf16.msra.mxu0 %v173
  %202 = vmatprep.subr.bf16.mxu0 %v171
  %203 = vmatpush1.bf16.msra.mxu0 %v170
  %204 = vmatprep.subr.bf16.mxu0 %v168
  %205 = vmatpush1.bf16.msra.mxu0 %v167
  %206 = vmatprep.subr.bf16.mxu0 %v165
  %207 = vmatpush1.bf16.msra.mxu0 %v164
  %208 = vmatprep.subr.bf16.mxu0 %v162
  %209 = vmatpush1.bf16.msra.mxu0 %v161
  %210 = vmatprep.subr.bf16.mxu0 %v159
  %211 = vmatpush1.bf16.msra.mxu0 %v158
  %212 = vmatprep.subr.bf16.mxu0 %v156
  %213 = vmatpush1.bf16.msra.mxu0 %v155
  %214 = vmatprep.subr.bf16.mxu0 %v153
  %215 = vmatpush1.bf16.msra.mxu0 %v152
  %216 = vmatprep.subr.bf16.mxu0 0
  %217 = vmatpush2.bf16.msra.mxu0 0
  %218 = vmatprep.subr.bf16.mxu0 0
  %219 = vmatpush2.bf16.msra.mxu0 0
  %220 = vmatprep.subr.bf16.mxu0 0
  %221 = vmatpush2.bf16.msra.mxu0 0
  %222 = vmatprep.subr.bf16.mxu0 0
  %223 = vmatpush2.bf16.msra.mxu0 0
  %224 = vmatprep.subr.bf16.mxu0 0
  %225 = vmatpush2.bf16.msra.mxu0 0
  %226 = vmatprep.subr.bf16.mxu0 0
  %227 = vmatpush2.bf16.msra.mxu0 0
  %228 = vmatprep.subr.bf16.mxu0 0
  %229 = vmatpush2.bf16.msra.mxu0 0
  %230 = vmatprep.subr.bf16.mxu0 0
  %231 = vmatpush2.bf16.msra.mxu0 0
  %232 = vmatprep.mubr.bf16.mxu0 0
  %233 = vmatmul.mubr.bf16.gmra.mxu0 %v70
  %v234 = vpop.f32.mrf.mxu0
  %v235 = vadd.f32 %v54, %v234
  %v236 = vpop.f32.mrf.mxu0
  %v237 = vadd.f32 %v58, %v236
  %v238 = vpop.f32.mrf.mxu0
  %v239 = vadd.f32 %v54, %v238
  %v240 = vpop.f32.mrf.mxu0
  %v241 = vadd.f32 %v58, %v240
  %242 = vdwg.mxu0
  %243 = vmatprep.subr.bf16.mxu0 0
  %244 = vmatpush1.bf16.msra.mxu0 %v175
  %245 = vmatprep.subr.bf16.mxu0 0
  %246 = vmatpush1.bf16.msra.mxu0 %v172
  %247 = vmatprep.subr.bf16.mxu0 0
  %248 = vmatpush1.bf16.msra.mxu0 %v169
  %249 = vmatprep.subr.bf16.mxu0 0
  %250 = vmatpush1.bf16.msra.mxu0 %v166
  %251 = vmatprep.subr.bf16.mxu0 0
  %252 = vmatpush1.bf16.msra.mxu0 %v163
  %253 = vmatprep.subr.bf16.mxu0 0
  %254 = vmatpush1.bf16.msra.mxu0 %v160
  %255 = vmatprep.subr.bf16.mxu0 0
  %256 = vmatpush1.bf16.msra.mxu0 %v157
  %257 = vmatprep.subr.bf16.mxu0 0
  %258 = vmatpush1.bf16.msra.mxu0 %v154
  %259 = vmatprep.subr.bf16.mxu0 0
  %260 = vmatpush2.bf16.msra.mxu0 0
  %261 = vmatprep.subr.bf16.mxu0 0
  %262 = vmatpush2.bf16.msra.mxu0 0
  %263 = vmatprep.subr.bf16.mxu0 0
  %264 = vmatpush2.bf16.msra.mxu0 0
  %265 = vmatprep.subr.bf16.mxu0 0
  %266 = vmatpush2.bf16.msra.mxu0 0
  %267 = vmatprep.subr.bf16.mxu0 0
  %268 = vmatpush2.bf16.msra.mxu0 0
  %269 = vmatprep.subr.bf16.mxu0 0
  %270 = vmatpush2.bf16.msra.mxu0 0
  %271 = vmatprep.subr.bf16.mxu0 0
  %272 = vmatpush2.bf16.msra.mxu0 0
  %273 = vmatprep.subr.bf16.mxu0 0
  %274 = vmatpush2.bf16.msra.mxu0 0
  %275 = vmatprep.mubr.bf16.mxu0 0
  %276 = vmatmul.mubr.bf16.gmra.mxu0 %v70
  %v277 = vpop.f32.mrf.mxu0
  %v278 = vadd.f32 %v62, %v277
  %v279 = vpop.f32.mrf.mxu0
  %v280 = vpop.f32.mrf.mxu0
  %v281 = vadd.f32 %v62, %v280
  %v282 = vpop.f32.mrf.mxu0
  %283 = vdwg.mxu0
  %v284 = vpack.c.bf16 %v239, %v235
  %v285 = vpack.c.bf16 %v241, %v237
  %v286 = vpack.c.bf16 %v281, %v278
  %v290 = vunpack.c.l.b16 %v284
  %v291 = vunpack.c.l.b16 %v285
  %v292 = vunpack.c.l.b16 %v286
  %v293 = vunpack.c.h.b16 %v284
  %v294 = vunpack.c.h.b16 %v285
  %v295 = vunpack.c.h.b16 %v286
  %v296 = vpack.c.b16 %v291, %v290
  %v297 = vpack.c.b16 %v292, %v292
  %v298 = vpack.c.b16 %v294, %v293
  %v299 = vpack.c.b16 %v295, %v295
  %304 = vst [vmem:[%s3] sm:$0xff] %v296
  %305 = vst [vmem:[%s3 + $0x8] sm:$0xf] %v297
  %306 = vst [vmem:[%s3 + $0xc] sm:$0xff] %v298
  %307 = vst [vmem:[%s3 + $0x14] sm:$0xf] %v299
  // Predicated region
  $region14: #{transformer_forward.28} parent=0 // pred_check
    _
  $region15: #{transformer_forward.28} parent=0 // pred_check_branch
    %309 = sbr.rel (0) target = $region17
  $region16: #{transformer_forward.28} parent=0 // pred_region
    _
  $region17: #{transformer_forward.28} parent=0 // pred_fallthru
    _
  // Predicated region
  $region18: #{transformer_forward.28} parent=0 // pred_check
    _
  $region19: #{transformer_forward.28} parent=0 // pred_check_branch
    %311 = sbr.rel (0) target = $region21
  $region20: #{transformer_forward.28} parent=0 // pred_region
    _
  $region21: #{transformer_forward.28} parent=0 // pred_fallthru
    _

// kernel: transformer_forward.31
$region0: #{transformer_forward.31}
  #allocation0 [shape = 'u32[]', space=smem, size = 0x4, offset = 0x4, fixed_abs, tag = 'smem constant byte address 0x4 - core index']
  #allocation1 [shape = 'u32[144,128]{1,0:T(1,128)}', space=vmem, size = 0x12000, scoped, tag = 'internal scratch']
  %s0 = inlined_call_operand.vmem [shape: bf16[16,128], index: 0, kind: input, shape index: {}]
  %s1 = inlined_call_operand.vmem [shape: bf16[128,512], index: 1, kind: input, shape index: {}]
  %s2 = inlined_call_operand.vmem [shape: f32[1,512], index: 2, kind: input, shape index: {}]
  %s3 = inlined_call_operand.vmem [shape: bf16[16,512], index: 3, kind: output, shape index: {}]
  %s4 = sld [smem:[#allocation0]]
  $region22: #{transformer_forward.31} parent=0
    _
  %s6 = ssub.s32 1, %s4
  %s7 = scalar_select 0, %s6, %s4
  // Predicated region
  $region2: #{transformer_forward.31} parent=0 // pred_check
    _
  $region3: #{transformer_forward.31} parent=0 // pred_check_branch
    %9 = sbr.rel (0) target = $region5
  $region4: #{transformer_forward.31} parent=0 // pred_region
    _
  $region5: #{transformer_forward.31} parent=0 // pred_fallthru
    _
  // Predicated region
  $region6: #{transformer_forward.31} parent=0 // pred_check
    _
  $region7: #{transformer_forward.31} parent=0 // pred_check_branch
    %11 = sbr.rel (0) target = $region9
  $region8: #{transformer_forward.31} parent=0 // pred_region
    _
  $region9: #{transformer_forward.31} parent=0 // pred_fallthru
    _
  // Predicated region
  $region10: #{transformer_forward.31} parent=0 // pred_check
    _
  $region11: #{transformer_forward.31} parent=0 // pred_check_branch
    %13 = sbr.rel (0) target = $region13
  $region12: #{transformer_forward.31} parent=0 // pred_region
    _
  $region13: #{transformer_forward.31} parent=0 // pred_fallthru
    _
  %v15 = vld [vmem:[%s0] sm:$0xf]
  %v16 = vld [vmem:[%s0 + $0x4] sm:$0xf]
  %v17 = vld [vmem:[%s1] sm:$0xff]
  %v18 = vld [vmem:[%s1 + $0x8] sm:$0xff]
  %v19 = vld [vmem:[%s1 + $0x10] sm:$0xff]
  %v20 = vld [vmem:[%s1 + $0x18] sm:$0xff]
  %v21 = vld [vmem:[%s1 + $0x20] sm:$0xff]
  %v22 = vld [vmem:[%s1 + $0x28] sm:$0xff]
  %v23 = vld [vmem:[%s1 + $0x30] sm:$0xff]
  %v24 = vld [vmem:[%s1 + $0x38] sm:$0xff]
  %v25 = vld [vmem:[%s1 + $0x40] sm:$0xff]
  %v26 = vld [vmem:[%s1 + $0x48] sm:$0xff]
  %v27 = vld [vmem:[%s1 + $0x50] sm:$0xff]
  %v28 = vld [vmem:[%s1 + $0x58] sm:$0xff]
  %v29 = vld [vmem:[%s1 + $0x60] sm:$0xff]
  %v30 = vld [vmem:[%s1 + $0x68] sm:$0xff]
  %v31 = vld [vmem:[%s1 + $0x70] sm:$0xff]
  %v32 = vld [vmem:[%s1 + $0x78] sm:$0xff]
  %v33 = vld [vmem:[%s1 + $0x80] sm:$0xff]
  %v34 = vld [vmem:[%s1 + $0x88] sm:$0xff]
  %v35 = vld [vmem:[%s1 + $0x90] sm:$0xff]
  %v36 = vld [vmem:[%s1 + $0x98] sm:$0xff]
  %v37 = vld [vmem:[%s1 + $0xa0] sm:$0xff]
  %v38 = vld [vmem:[%s1 + $0xa8] sm:$0xff]
  %v39 = vld [vmem:[%s1 + $0xb0] sm:$0xff]
  %v40 = vld [vmem:[%s1 + $0xb8] sm:$0xff]
  %v41 = vld [vmem:[%s1 + $0xc0] sm:$0xff]
  %v42 = vld [vmem:[%s1 + $0xc8] sm:$0xff]
  %v43 = vld [vmem:[%s1 + $0xd0] sm:$0xff]
  %v44 = vld [vmem:[%s1 + $0xd8] sm:$0xff]
  %v45 = vld [vmem:[%s1 + $0xe0] sm:$0xff]
  %v46 = vld [vmem:[%s1 + $0xe8] sm:$0xff]
  %v47 = vld [vmem:[%s1 + $0xf0] sm:$0xff]
  %v48 = vld [vmem:[%s1 + $0xf8] sm:$0xff]
  %v49 = vld [vmem:[%s2] sm:$0xf]
  %v51 = vlaneseq
  %v52 = vshrl.u32 %v51, 7
  %v53 = vsub.s32 0, %v52
  %v54 = vrot.slane %v49, %v53
  %v55 = vlaneseq
  %v56 = vshrl.u32 %v55, 7
  %v57 = vsub.s32 1, %v56
  %v58 = vrot.slane %v49, %v57
  %v59 = vlaneseq
  %v60 = vshrl.u32 %v59, 7
  %v61 = vsub.s32 2, %v60
  %v62 = vrot.slane %v49, %v61
  %v63 = vlaneseq
  %v64 = vshrl.u32 %v63, 7
  %v65 = vsub.s32 3, %v64
  %v66 = vrot.slane %v49, %v65
  %v73 = vunpack.c.l.b16 %v15
  %v74 = vunpack.c.l.b16 %v16
  %v75 = vpack.c.b16 %v74, %v73
  %v109 = vunpack.c.l.b16 %v17
  %v110 = vunpack.c.h.b16 %v17
  %v111 = vunpack.c.l.b16 %v18
  %v112 = vunpack.c.h.b16 %v18
  %v113 = vunpack.c.l.b16 %v19
  %v114 = vunpack.c.h.b16 %v19
  %v115 = vunpack.c.l.b16 %v20
  %v116 = vunpack.c.h.b16 %v20
  %v117 = vunpack.c.l.b16 %v21
  %v118 = vunpack.c.h.b16 %v21
  %v119 = vunpack.c.l.b16 %v22
  %v120 = vunpack.c.h.b16 %v22
  %v121 = vunpack.c.l.b16 %v23
  %v122 = vunpack.c.h.b16 %v23
  %v123 = vunpack.c.l.b16 %v24
  %v124 = vunpack.c.h.b16 %v24
  %v125 = vunpack.c.l.b16 %v25
  %v126 = vunpack.c.h.b16 %v25
  %v127 = vunpack.c.l.b16 %v26
  %v128 = vunpack.c.h.b16 %v26
  %v129 = vunpack.c.l.b16 %v27
  %v130 = vunpack.c.h.b16 %v27
  %v131 = vunpack.c.l.b16 %v28
  %v132 = vunpack.c.h.b16 %v28
  %v133 = vunpack.c.l.b16 %v29
  %v134 = vunpack.c.h.b16 %v29
  %v135 = vunpack.c.l.b16 %v30
  %v136 = vunpack.c.h.b16 %v30
  %v137 = vunpack.c.l.b16 %v31
  %v138 = vunpack.c.h.b16 %v31
  %v139 = vunpack.c.l.b16 %v32
  %v140 = vunpack.c.h.b16 %v32
  %v141 = vunpack.c.l.b16 %v33
  %v142 = vunpack.c.h.b16 %v33
  %v143 = vunpack.c.l.b16 %v34
  %v144 = vunpack.c.h.b16 %v34
  %v145 = vunpack.c.l.b16 %v35
  %v146 = vunpack.c.h.b16 %v35
  %v147 = vunpack.c.l.b16 %v36
  %v148 = vunpack.c.h.b16 %v36
  %v149 = vunpack.c.l.b16 %v37
  %v150 = vunpack.c.h.b16 %v37
  %v151 = vunpack.c.l.b16 %v38
  %v152 = vunpack.c.h.b16 %v38
  %v153 = vunpack.c.l.b16 %v39
  %v154 = vunpack.c.h.b16 %v39
  %v155 = vunpack.c.l.b16 %v40
  %v156 = vunpack.c.h.b16 %v40
  %v157 = vunpack.c.l.b16 %v41
  %v158 = vunpack.c.h.b16 %v41
  %v159 = vunpack.c.l.b16 %v42
  %v160 = vunpack.c.h.b16 %v42
  %v161 = vunpack.c.l.b16 %v43
  %v162 = vunpack.c.h.b16 %v43
  %v163 = vunpack.c.l.b16 %v44
  %v164 = vunpack.c.h.b16 %v44
  %v165 = vunpack.c.l.b16 %v45
  %v166 = vunpack.c.h.b16 %v45
  %v167 = vunpack.c.l.b16 %v46
  %v168 = vunpack.c.h.b16 %v46
  %v169 = vunpack.c.l.b16 %v47
  %v170 = vunpack.c.h.b16 %v47
  %v171 = vunpack.c.l.b16 %v48
  %v172 = vunpack.c.h.b16 %v48
  %v173 = vpack.c.b16 %v113, %v109
  %v174 = vpack.c.b16 %v114, %v110
  %v175 = vpack.c.b16 %v115, %v111
  %v176 = vpack.c.b16 %v116, %v112
  %v177 = vpack.c.b16 %v121, %v117
  %v178 = vpack.c.b16 %v122, %v118
  %v179 = vpack.c.b16 %v123, %v119
  %v180 = vpack.c.b16 %v124, %v120
  %v181 = vpack.c.b16 %v129, %v125
  %v182 = vpack.c.b16 %v130, %v126
  %v183 = vpack.c.b16 %v131, %v127
  %v184 = vpack.c.b16 %v132, %v128
  %v185 = vpack.c.b16 %v137, %v133
  %v186 = vpack.c.b16 %v138, %v134
  %v187 = vpack.c.b16 %v139, %v135
  %v188 = vpack.c.b16 %v140, %v136
  %v189 = vpack.c.b16 %v145, %v141
  %v190 = vpack.c.b16 %v146, %v142
  %v191 = vpack.c.b16 %v147, %v143
  %v192 = vpack.c.b16 %v148, %v144
  %v193 = vpack.c.b16 %v153, %v149
  %v194 = vpack.c.b16 %v154, %v150
  %v195 = vpack.c.b16 %v155, %v151
  %v196 = vpack.c.b16 %v156, %v152
  %v197 = vpack.c.b16 %v161, %v157
  %v198 = vpack.c.b16 %v162, %v158
  %v199 = vpack.c.b16 %v163, %v159
  %v200 = vpack.c.b16 %v164, %v160
  %v201 = vpack.c.b16 %v169, %v165
  %v202 = vpack.c.b16 %v170, %v166
  %v203 = vpack.c.b16 %v171, %v167
  %v204 = vpack.c.b16 %v172, %v168
  %237 = vmatprep.subr.bf16.mxu0 %v202
  %238 = vmatpush1.bf16.msra.mxu0 %v201
  %239 = vmatprep.subr.bf16.mxu0 %v198
  %240 = vmatpush1.bf16.msra.mxu0 %v197
  %241 = vmatprep.subr.bf16.mxu0 %v194
  %242 = vmatpush1.bf16.msra.mxu0 %v193
  %243 = vmatprep.subr.bf16.mxu0 %v190
  %244 = vmatpush1.bf16.msra.mxu0 %v189
  %245 = vmatprep.subr.bf16.mxu0 %v186
  %246 = vmatpush1.bf16.msra.mxu0 %v185
  %247 = vmatprep.subr.bf16.mxu0 %v182
  %248 = vmatpush1.bf16.msra.mxu0 %v181
  %249 = vmatprep.subr.bf16.mxu0 %v178
  %250 = vmatpush1.bf16.msra.mxu0 %v177
  %251 = vmatprep.subr.bf16.mxu0 %v174
  %252 = vmatpush1.bf16.msra.mxu0 %v173
  %253 = vmatprep.subr.bf16.mxu0 0
  %254 = vmatpush2.bf16.msra.mxu0 0
  %255 = vmatprep.subr.bf16.mxu0 0
  %256 = vmatpush2.bf16.msra.mxu0 0
  %257 = vmatprep.subr.bf16.mxu0 0
  %258 = vmatpush2.bf16.msra.mxu0 0
  %259 = vmatprep.subr.bf16.mxu0 0
  %260 = vmatpush2.bf16.msra.mxu0 0
  %261 = vmatprep.subr.bf16.mxu0 0
  %262 = vmatpush2.bf16.msra.mxu0 0
  %263 = vmatprep.subr.bf16.mxu0 0
  %264 = vmatpush2.bf16.msra.mxu0 0
  %265 = vmatprep.subr.bf16.mxu0 0
  %266 = vmatpush2.bf16.msra.mxu0 0
  %267 = vmatprep.subr.bf16.mxu0 0
  %268 = vmatpush2.bf16.msra.mxu0 0
  %269 = vmatprep.mubr.bf16.mxu0 0
  %270 = vmatmul.mubr.bf16.gmra.mxu0 %v75
  %v271 = vpop.f32.mrf.mxu0
  %v272 = vadd.f32 %v54, %v271
  %v273 = vpop.f32.mrf.mxu0
  %v274 = vadd.f32 %v58, %v273
  %v275 = vpop.f32.mrf.mxu0
  %v276 = vadd.f32 %v54, %v275
  %v277 = vpop.f32.mrf.mxu0
  %v278 = vadd.f32 %v58, %v277
  %279 = vdwg.mxu0
  %280 = vmatprep.subr.bf16.mxu0 %v204
  %281 = vmatpush1.bf16.msra.mxu0 %v203
  %282 = vmatprep.subr.bf16.mxu0 %v200
  %283 = vmatpush1.bf16.msra.mxu0 %v199
  %284 = vmatprep.subr.bf16.mxu0 %v196
  %285 = vmatpush1.bf16.msra.mxu0 %v195
  %286 = vmatprep.subr.bf16.mxu0 %v192
  %287 = vmatpush1.bf16.msra.mxu0 %v191
  %288 = vmatprep.subr.bf16.mxu0 %v188
  %289 = vmatpush1.bf16.msra.mxu0 %v187
  %290 = vmatprep.subr.bf16.mxu0 %v184
  %291 = vmatpush1.bf16.msra.mxu0 %v183
  %292 = vmatprep.subr.bf16.mxu0 %v180
  %293 = vmatpush1.bf16.msra.mxu0 %v179
  %294 = vmatprep.subr.bf16.mxu0 %v176
  %295 = vmatpush1.bf16.msra.mxu0 %v175
  %296 = vmatprep.subr.bf16.mxu0 0
  %297 = vmatpush2.bf16.msra.mxu0 0
  %298 = vmatprep.subr.bf16.mxu0 0
  %299 = vmatpush2.bf16.msra.mxu0 0
  %300 = vmatprep.subr.bf16.mxu0 0
  %301 = vmatpush2.bf16.msra.mxu0 0
  %302 = vmatprep.subr.bf16.mxu0 0
  %303 = vmatpush2.bf16.msra.mxu0 0
  %304 = vmatprep.subr.bf16.mxu0 0
  %305 = vmatpush2.bf16.msra.mxu0 0
  %306 = vmatprep.subr.bf16.mxu0 0
  %307 = vmatpush2.bf16.msra.mxu0 0
  %308 = vmatprep.subr.bf16.mxu0 0
  %309 = vmatpush2.bf16.msra.mxu0 0
  %310 = vmatprep.subr.bf16.mxu0 0
  %311 = vmatpush2.bf16.msra.mxu0 0
  %312 = vmatprep.mubr.bf16.mxu0 0
  %313 = vmatmul.mubr.bf16.gmra.mxu0 %v75
  %v314 = vpop.f32.mrf.mxu0
  %v315 = vadd.f32 %v62, %v314
  %v316 = vpop.f32.mrf.mxu0
  %v317 = vadd.f32 %v66, %v316
  %v318 = vpop.f32.mrf.mxu0
  %v319 = vadd.f32 %v62, %v318
  %v320 = vpop.f32.mrf.mxu0
  %v321 = vadd.f32 %v66, %v320
  %322 = vdwg.mxu0
  %v323 = vmax.f32 %v272, 0.0
  %v324 = vmax.f32 %v274, 0.0
  %v325 = vmax.f32 %v315, 0.0
  %v326 = vmax.f32 %v317, 0.0
  %v327 = vmax.f32 %v276, 0.0
  %v328 = vmax.f32 %v278, 0.0
  %v329 = vmax.f32 %v319, 0.0
  %v330 = vmax.f32 %v321, 0.0
  %v331 = vpack.c.bf16 %v327, %v323
  %v332 = vpack.c.bf16 %v328, %v324
  %v333 = vpack.c.bf16 %v329, %v325
  %v334 = vpack.c.bf16 %v330, %v326
  %v339 = vunpack.c.l.b16 %v331
  %v340 = vunpack.c.l.b16 %v332
  %v341 = vunpack.c.l.b16 %v333
  %v342 = vunpack.c.l.b16 %v334
  %v343 = vunpack.c.h.b16 %v331
  %v344 = vunpack.c.h.b16 %v332
  %v345 = vunpack.c.h.b16 %v333
  %v346 = vunpack.c.h.b16 %v334
  %v347 = vpack.c.b16 %v340, %v339
  %v348 = vpack.c.b16 %v342, %v341
  %v349 = vpack.c.b16 %v344, %v343
  %v350 = vpack.c.b16 %v346, %v345
  %355 = vst [vmem:[%s3] sm:$0xff] %v347
  %356 = vst [vmem:[%s3 + $0x8] sm:$0xff] %v348
  %357 = vst [vmem:[%s3 + $0x10] sm:$0xff] %v349
  %358 = vst [vmem:[%s3 + $0x18] sm:$0xff] %v350
  // Predicated region
  $region14: #{transformer_forward.31} parent=0 // pred_check
    _
  $region15: #{transformer_forward.31} parent=0 // pred_check_branch
    %360 = sbr.rel (0) target = $region17
  $region16: #{transformer_forward.31} parent=0 // pred_region
    _
  $region17: #{transformer_forward.31} parent=0 // pred_fallthru
    _
  // Predicated region
  $region18: #{transformer_forward.31} parent=0 // pred_check
    _
  $region19: #{transformer_forward.31} parent=0 // pred_check_branch
    %362 = sbr.rel (0) target = $region21
  $region20: #{transformer_forward.31} parent=0 // pred_region
    _
  $region21: #{transformer_forward.31} parent=0 // pred_fallthru
    _

// kernel: transformer_forward.29
$region0: #{transformer_forward.29}
  #allocation0 [shape = 'u32[]', space=smem, size = 0x4, offset = 0x4, fixed_abs, tag = 'smem constant byte address 0x4 - core index']
  #allocation1 [shape = 'u32[144,128]{1,0:T(1,128)}', space=vmem, size = 0x12000, scoped, tag = 'internal scratch']
  %s0 = inlined_call_operand.vmem [shape: bf16[2,4,8,32], index: 0, kind: input, shape index: {}]
  %s1 = inlined_call_operand.vmem [shape: bf16[2,4,8,32], index: 1, kind: input, shape index: {}]
  %s2 = inlined_call_operand.vmem [shape: bf16[2,4,8,32], index: 2, kind: input, shape index: {}]
  %s3 = inlined_call_operand.vmem [shape: bf16[2,4,8,32], index: 3, kind: output, shape index: {}]
  %s4 = sld [smem:[#allocation0]]
  $region45: #{transformer_forward.29} parent=0
    _
  %s6 = ssub.s32 1, %s4
  %s7 = scalar_select 0, %s6, %s4
  loop: start=0, step=1, limit=10
  $region2: #{transformer_forward.29} parent=0 // loop_pre_header
    _
  $region3: #{transformer_forward.29} parent=0 // loop_header
    %s9 = sphi 0, %s13
    %p10 = scmp.ge.s32.totalorder %s9, 10
    %s16 = sphi 0, %s28
    %s17 = sphi 0, %s24
    %s18 = sphi 0, %s16
    %s19 = sphi 0, %s17
    %s20 = sphi 0, %s18
    %s21 = sphi 0, %s19
    %s33 = sphi 0, %s35
    %s36 = sphi 0, %s33
    %s37 = sphi 0, %s36
    %s53 = sphi 0, %s37
    %s61 = sphi 0, %s63
    %s64 = sphi 0, %s61
    %s65 = sphi 0, %s64
    %s81 = sphi 0, %s65
    %s89 = sphi 0, %s91
    %s92 = sphi 0, %s89
    %s93 = sphi 0, %s92
    %s109 = sphi 0, %s93
    %s117 = sphi 0, %s119
    %s120 = sphi 0, %s117
    %s121 = sphi 0, %s120
    %s137 = sphi 0, %s121
  $region4: #{transformer_forward.29} parent=0 // loop_header_branch
    %12 = sbr.rel (%p10) target = $region8
  $region5: #{transformer_forward.29} parent=0 // loop_body
    %s14 = ssub.s32 %s9, 1
    %s15 = ssub.s32 %s9, 2
    %s22 = sadd.s32 1, %s17
    %p23 = scmp.ge.s32.totalorder %s22, 4
    %s24 = scalar_select %p23, 0, %s22
    %s25 = sadd.s32 1, %s16
    %s26 = scalar_select %p23, %s25, %s16
    %p27 = scmp.ge.s32.totalorder %s26, 2
    %s28 = scalar_select %p27, 0, %s26
    %s29 = ssub.s32 %s16, %s28
    %s30 = ssub.s32 %s17, %s24
    %s31 = sor.u32 %s29, %s30
    %p32 = scmp.eq.s32.totalorder %s31, 0
    %s34 = sadd.s32 %s33, 1
    %s35 = scalar_select %p32, %s33, %s34
    %p38 = pneg %p32
    %p39 = scmp.eq.s32.totalorder %s9, 7
    %p40 = por %p38, %p39
    %p41 = scmp.ne.s32.totalorder %s33, %s36
    %p42 = scmp.eq.s32.totalorder %s9, 0
    %p43 = por %p41, %p42
    %p44 = scmp.ne.s32.totalorder %s33, %s36
    %p45 = scmp.eq.s32.totalorder %s14, 7
    %p46 = por %p44, %p45
    %p47 = scmp.ne.s32.totalorder %s36, %s37
    %p48 = scmp.eq.s32.totalorder %s14, 0
    %p49 = por %p47, %p48
    %p50 = scmp.ne.s32.totalorder %s36, %s37
    %p51 = scmp.eq.s32.totalorder %s15, 7
    %p52 = por %p50, %p51
    %p54 = scmp.ne.s32.totalorder %s37, %s53
    %p55 = scmp.eq.s32.totalorder %s15, 0
    %p56 = por %p54, %p55
    %s57 = ssub.s32 %s16, %s28
    %s58 = ssub.s32 %s17, %s24
    %s59 = sor.u32 %s57, %s58
    %p60 = scmp.eq.s32.totalorder %s59, 0
    %s62 = sadd.s32 %s61, 1
    %s63 = scalar_select %p60, %s61, %s62
    %p66 = pneg %p60
    %p67 = scmp.eq.s32.totalorder %s9, 7
    %p68 = por %p66, %p67
    %p69 = scmp.ne.s32.totalorder %s61, %s64
    %p70 = scmp.eq.s32.totalorder %s9, 0
    %p71 = por %p69, %p70
    %p72 = scmp.ne.s32.totalorder %s61, %s64
    %p73 = scmp.eq.s32.totalorder %s14, 7
    %p74 = por %p72, %p73
    %p75 = scmp.ne.s32.totalorder %s64, %s65
    %p76 = scmp.eq.s32.totalorder %s14, 0
    %p77 = por %p75, %p76
    %p78 = scmp.ne.s32.totalorder %s64, %s65
    %p79 = scmp.eq.s32.totalorder %s15, 7
    %p80 = por %p78, %p79
    %p82 = scmp.ne.s32.totalorder %s65, %s81
    %p83 = scmp.eq.s32.totalorder %s15, 0
    %p84 = por %p82, %p83
    %s85 = ssub.s32 %s16, %s28
    %s86 = ssub.s32 %s17, %s24
    %s87 = sor.u32 %s85, %s86
    %p88 = scmp.eq.s32.totalorder %s87, 0
    %s90 = sadd.s32 %s89, 1
    %s91 = scalar_select %p88, %s89, %s90
    %p94 = pneg %p88
    %p95 = scmp.eq.s32.totalorder %s9, 7
    %p96 = por %p94, %p95
    %p97 = scmp.ne.s32.totalorder %s89, %s92
    %p98 = scmp.eq.s32.totalorder %s9, 0
    %p99 = por %p97, %p98
    %p100 = scmp.ne.s32.totalorder %s89, %s92
    %p101 = scmp.eq.s32.totalorder %s14, 7
    %p102 = por %p100, %p101
    %p103 = scmp.ne.s32.totalorder %s92, %s93
    %p104 = scmp.eq.s32.totalorder %s14, 0
    %p105 = por %p103, %p104
    %p106 = scmp.ne.s32.totalorder %s92, %s93
    %p107 = scmp.eq.s32.totalorder %s15, 7
    %p108 = por %p106, %p107
    %p110 = scmp.ne.s32.totalorder %s93, %s109
    %p111 = scmp.eq.s32.totalorder %s15, 0
    %p112 = por %p110, %p111
    %s113 = ssub.s32 %s16, %s28
    %s114 = ssub.s32 %s17, %s24
    %s115 = sor.u32 %s113, %s114
    %p116 = scmp.eq.s32.totalorder %s115, 0
    %s118 = sadd.s32 %s117, 1
    %s119 = scalar_select %p116, %s117, %s118
    %p122 = pneg %p116
    %p123 = scmp.eq.s32.totalorder %s9, 7
    %p124 = por %p122, %p123
    %p125 = scmp.ne.s32.totalorder %s117, %s120
    %p126 = scmp.eq.s32.totalorder %s9, 0
    %p127 = por %p125, %p126
    %p128 = scmp.ne.s32.totalorder %s117, %s120
    %p129 = scmp.eq.s32.totalorder %s14, 7
    %p130 = por %p128, %p129
    %p131 = scmp.ne.s32.totalorder %s120, %s121
    %p132 = scmp.eq.s32.totalorder %s14, 0
    %p133 = por %p131, %p132
    %p134 = scmp.ne.s32.totalorder %s120, %s121
    %p135 = scmp.eq.s32.totalorder %s15, 7
    %p136 = por %p134, %p135
    %p138 = scmp.ne.s32.totalorder %s121, %s137
    %p139 = scmp.eq.s32.totalorder %s15, 0
    %p140 = por %p138, %p139
    %p141 = scmp.le.s32.totalorder 1, %s9
    %p142 = scmp.lt.s32.totalorder %s9, 9
    %p143 = pnand %p141, %p142
    %p144 = pneg %p143
    // Predicated region
    $region9: #{transformer_forward.29} parent=5 // pred_check
      _
    $region10: #{transformer_forward.29} parent=5 // pred_check_branch
      %146 = sbr.rel (%p143) target = $region12
    $region11: #{transformer_forward.29} parent=5 // pred_region
      %s147 = ssub.s32 %s9, 1
    $region12: #{transformer_forward.29} parent=5 // pred_fallthru
      _
    %p148 = scmp.lt.s32.totalorder %s9, 8
    // Predicated region
    $region13: #{transformer_forward.29} parent=5 // pred_check
      %p149 = pneg %p148
    $region14: #{transformer_forward.29} parent=5 // pred_check_branch
      %151 = sbr.rel (%p149) target = $region16
    $region15: #{transformer_forward.29} parent=5 // pred_region
      // Predicated region
      $region17: #{transformer_forward.29} parent=15 // pred_check
        %p152 = pneg %p43
      $region18: #{transformer_forward.29} parent=15 // pred_check_branch
        %154 = sbr.rel (%p152) target = $region20
      $region19: #{transformer_forward.29} parent=15 // pred_region
        %p155 = scmp.lt.s32.totalorder %s16, 1
        %s156 = scalar_select %p155, %s16, 1
        %p157 = scmp.lt.s32.totalorder %s17, 3
        %s158 = scalar_select %p157, %s17, 3
        %s159 = smul.addr %s156, 4
        %s160 = sadd.s32 %s158, %s159
        %s161 = smul.addr %s160, 4
        %s162 = scalar_lea.vmem %s0, %s161
      $region20: #{transformer_forward.29} parent=15 // pred_fallthru
        _
      // Predicated region
      $region21: #{transformer_forward.29} parent=15 // pred_check
        %p163 = pneg %p71
      $region22: #{transformer_forward.29} parent=15 // pred_check_branch
        %165 = sbr.rel (%p163) target = $region24
      $region23: #{transformer_forward.29} parent=15 // pred_region
        %p166 = scmp.lt.s32.totalorder %s16, 1
        %s167 = scalar_select %p166, %s16, 1
        %p168 = scmp.lt.s32.totalorder %s17, 3
        %s169 = scalar_select %p168, %s17, 3
        %s170 = smul.addr %s167, 4
        %s171 = sadd.s32 %s169, %s170
        %s172 = smul.addr %s171, 4
        %s173 = scalar_lea.vmem %s1, %s172
      $region24: #{transformer_forward.29} parent=15 // pred_fallthru
        _
      // Predicated region
      $region25: #{transformer_forward.29} parent=15 // pred_check
        %p174 = pneg %p99
      $region26: #{transformer_forward.29} parent=15 // pred_check_branch
        %176 = sbr.rel (%p174) target = $region28
      $region27: #{transformer_forward.29} parent=15 // pred_region
        %p177 = scmp.lt.s32.totalorder %s16, 1
        %s178 = scalar_select %p177, %s16, 1
        %p179 = scmp.lt.s32.totalorder %s17, 3
        %s180 = scalar_select %p179, %s17, 3
        %s181 = smul.addr %s178, 4
        %s182 = sadd.s32 %s180, %s181
        %s183 = smul.addr %s182, 4
        %s184 = scalar_lea.vmem %s2, %s183
      $region28: #{transformer_forward.29} parent=15 // pred_fallthru
        _
    $region16: #{transformer_forward.29} parent=5 // pred_fallthru
      _
    %p185 = scmp.le.s32.totalorder 1, %s9
    %p186 = scmp.lt.s32.totalorder %s9, 9
    %p187 = pnand %p185, %p186
    %p188 = pneg %p187
    // Predicated region
    $region29: #{transformer_forward.29} parent=5 // pred_check
      _
    $region30: #{transformer_forward.29} parent=5 // pred_check_branch
      %190 = sbr.rel (%p187) target = $region32
    $region31: #{transformer_forward.29} parent=5 // pred_region
      %s191 = ssub.s32 %s9, 1
      %p192 = scmp.lt.s32.totalorder %s18, 1
      %s193 = scalar_select %p192, %s18, 1
      %p194 = scmp.lt.s32.totalorder %s19, 3
      %s195 = scalar_select %p194, %s19, 3
      %s196 = smul.addr %s193, 4
      %s197 = sadd.s32 %s195, %s196
      %s198 = smul.addr %s197, 4
      %s199 = scalar_lea.vmem %s0, %s198
      %p200 = pneg %p49
      %p201 = pneg %p46
      %p202 = scmp.lt.s32.totalorder %s18, 1
      %s203 = scalar_select %p202, %s18, 1
      %p204 = scmp.lt.s32.totalorder %s19, 3
      %s205 = scalar_select %p204, %s19, 3
      %s206 = smul.addr %s203, 4
      %s207 = sadd.s32 %s205, %s206
      %s208 = smul.addr %s207, 4
      %s209 = scalar_lea.vmem %s1, %s208
      %p210 = pneg %p77
      %p211 = pneg %p74
      %p212 = scmp.lt.s32.totalorder %s18, 1
      %s213 = scalar_select %p212, %s18, 1
      %p214 = scmp.lt.s32.totalorder %s19, 3
      %s215 = scalar_select %p214, %s19, 3
      %s216 = smul.addr %s213, 4
      %s217 = sadd.s32 %s215, %s216
      %s218 = smul.addr %s217, 4
      %s219 = scalar_lea.vmem %s2, %s218
      %p220 = pneg %p105
      %p221 = pneg %p102
      %p222 = pneg %p133
      %p223 = pneg %p130
      %p224 = scmp.lt.s32.totalorder %s18, 1
      %s225 = scalar_select %p224, %s18, 1
      %p226 = scmp.lt.s32.totalorder %s19, 3
      %s227 = scalar_select %p226, %s19, 3
      %s228 = smul.addr %s225, 4
      %s229 = sadd.s32 %s227, %s228
      %s230 = smul.addr %s229, 4
      %s231 = scalar_lea.vmem %s3, %s230
      %p232 = scmp.lt.s32.totalorder %s18, 1
      %s233 = scalar_select %p232, %s18, 1
      %p234 = scmp.lt.s32.totalorder %s19, 3
      %s235 = scalar_select %p234, %s19, 3
      %s236 = smul.addr %s233, 4
      %s237 = sadd.s32 %s235, %s236
      %s238 = smul.addr %s237, 4
      %s239 = scalar_lea.vmem %s0, %s238
      %p240 = scmp.lt.s32.totalorder %s18, 1
      %s241 = scalar_select %p240, %s18, 1
      %p242 = scmp.lt.s32.totalorder %s19, 3
      %s243 = scalar_select %p242, %s19, 3
      %s244 = smul.addr %s241, 4
      %s245 = sadd.s32 %s243, %s244
      %s246 = smul.addr %s245, 4
      %s247 = scalar_lea.vmem %s1, %s246
      %p248 = scmp.lt.s32.totalorder %s18, 1
      %s249 = scalar_select %p248, %s18, 1
      %p250 = scmp.lt.s32.totalorder %s19, 3
      %s251 = scalar_select %p250, %s19, 3
      %s252 = smul.addr %s249, 4
      %s253 = sadd.s32 %s251, %s252
      %s254 = smul.addr %s253, 4
      %s255 = scalar_lea.vmem %s2, %s254
      %p256 = scmp.lt.s32.totalorder %s18, 1
      %s257 = scalar_select %p256, %s18, 1
      %p258 = scmp.lt.s32.totalorder %s19, 3
      %s259 = scalar_select %p258, %s19, 3
      %s260 = smul.addr %s257, 4
      %s261 = sadd.s32 %s259, %s260
      %s262 = smul.addr %s261, 4
      %s263 = scalar_lea.vmem %s3, %s262
      %v266 = vld [vmem:[%s239] sm:$0xf]
      %v267 = vld [vmem:[%s247] sm:$0xf]
      %v268 = vld [vmem:[%s255] sm:$0xf]
      %v269 = vmul.bf16 %v266, 1043676725
      %vm270 = vcmask 261120
      %v272 = vsel %vm270, %v269, 0
      %v275 = vsel %vm270, %v267, 0
      %277 = vmatprep.subr.bf16.mxu0 0
      %278 = vmatpush1.bf16.xpose.msra.mxu0 0
      %279 = vmatprep.subr.bf16.mxu0 0
      %280 = vmatpush1.bf16.xpose.msra.mxu0 0
      %281 = vmatprep.subr.bf16.mxu0 0
      %282 = vmatpush1.bf16.xpose.msra.mxu0 0
      %283 = vmatprep.subr.bf16.mxu0 0
      %284 = vmatpush1.bf16.xpose.msra.mxu0 0
      %285 = vmatprep.subr.bf16.mxu0 0
      %286 = vmatpush1.bf16.xpose.msra.mxu0 0
      %287 = vmatprep.subr.bf16.mxu0 0
      %288 = vmatpush1.bf16.xpose.msra.mxu0 0
      %289 = vmatprep.subr.bf16.mxu0 0
      %290 = vmatpush1.bf16.xpose.msra.mxu0 0
      %291 = vmatprep.subr.bf16.mxu0 0
      %292 = vmatpush1.bf16.xpose.msra.mxu0 %v275
      %293 = vmatprep.subr.bf16.mxu0 0
      %294 = vmatpush2.bf16.xpose.msra.mxu0 0
      %295 = vmatprep.subr.bf16.mxu0 0
      %296 = vmatpush2.bf16.xpose.msra.mxu0 0
      %297 = vmatprep.subr.bf16.mxu0 0
      %298 = vmatpush2.bf16.xpose.msra.mxu0 0
      %299 = vmatprep.subr.bf16.mxu0 0
      %300 = vmatpush2.bf16.xpose.msra.mxu0 0
      %301 = vmatprep.subr.bf16.mxu0 0
      %302 = vmatpush2.bf16.xpose.msra.mxu0 0
      %303 = vmatprep.subr.bf16.mxu0 0
      %304 = vmatpush2.bf16.xpose.msra.mxu0 0
      %305 = vmatprep.subr.bf16.mxu0 0
      %306 = vmatpush2.bf16.xpose.msra.mxu0 0
      %307 = vmatprep.subr.bf16.mxu0 0
      %308 = vmatpush2.bf16.xpose.msra.mxu0 0
      %309 = vmatprep.mubr.bf16.mxu0 0
      %310 = vmatmul.mubr.bf16.gmra.mxu0 %v272
      %v311 = vpop.f32.mrf.mxu0
      %v312 = vadd.f32 0.0, %v311
      %v313 = vpop.f32.mrf.mxu0
      %v314 = vpop.f32.mrf.mxu0
      %v315 = vpop.f32.mrf.mxu0
      %316 = vdwg.mxu0
      %vm317 = vcmask 64512
      %v318 = vsel %vm317, %v312, -inf
      %319 = vmax.xlane.f32.xlu0 %v318
      %v320 = vpop.xlane.xlu0 %319
      %v321 = vsub.f32 %v312, %v320
      %v322 = vmul.f32 %v321, 1.442695
      %v323 = vpow.pop %v322
      %v324 = vsel %vm317, %v323, 0.0
      %325 = vadd.xlane.f32.xlu0 %v324
      %v326 = vpop.xlane.xlu0 %325
      %v327 = vpack.c.bf16 %v323, %v323
      %v329 = vsel %vm317, %v327, 0
      %vm331 = vcmask 1043456
      %v333 = vsel %vm331, %v268, 0
      %335 = vmatprep.subr.bf16.mxu0 0
      %336 = vmatpush1.bf16.msra.mxu0 0
      %337 = vmatprep.subr.bf16.mxu0 0
      %338 = vmatpush1.bf16.msra.mxu0 0
      %339 = vmatprep.subr.bf16.mxu0 0
      %340 = vmatpush1.bf16.msra.mxu0 0
      %341 = vmatprep.subr.bf16.mxu0 0
      %342 = vmatpush1.bf16.msra.mxu0 0
      %343 = vmatprep.subr.bf16.mxu0 0
      %344 = vmatpush1.bf16.msra.mxu0 0
      %345 = vmatprep.subr.bf16.mxu0 0
      %346 = vmatpush1.bf16.msra.mxu0 0
      %347 = vmatprep.subr.bf16.mxu0 0
      %348 = vmatpush1.bf16.msra.mxu0 0
      %349 = vmatprep.subr.bf16.mxu0 0
      %350 = vmatpush1.bf16.msra.mxu0 %v333
      %351 = vmatprep.subr.bf16.mxu0 0
      %352 = vmatpush2.bf16.msra.mxu0 0
      %353 = vmatprep.subr.bf16.mxu0 0
      %354 = vmatpush2.bf16.msra.mxu0 0
      %355 = vmatprep.subr.bf16.mxu0 0
      %356 = vmatpush2.bf16.msra.mxu0 0
      %357 = vmatprep.subr.bf16.mxu0 0
      %358 = vmatpush2.bf16.msra.mxu0 0
      %359 = vmatprep.subr.bf16.mxu0 0
      %360 = vmatpush2.bf16.msra.mxu0 0
      %361 = vmatprep.subr.bf16.mxu0 0
      %362 = vmatpush2.bf16.msra.mxu0 0
      %363 = vmatprep.subr.bf16.mxu0 0
      %364 = vmatpush2.bf16.msra.mxu0 0
      %365 = vmatprep.subr.bf16.mxu0 0
      %366 = vmatpush2.bf16.msra.mxu0 0
      %367 = vmatprep.mubr.bf16.mxu0 0
      %368 = vmatmul.mubr.bf16.gmra.mxu0 %v329
      %v369 = vpop.f32.mrf.mxu0
      %v370 = vadd.f32 0.0, %v369
      %v371 = vpop.f32.mrf.mxu0
      %v372 = vpop.f32.mrf.mxu0
      %v373 = vpop.f32.mrf.mxu0
      %374 = vdwg.mxu0
      %v375 = vrcp.pop %v326
      %v376 = vmul.f32 %v370, %v375
      %v377 = vpack.c.bf16 %v376, %v376
      %vm378 = vcmask 257024
      %379 = vst.msk [vmem:[%s263] sm:$0xf] %vm378, %v377
      %p380 = scmp.lt.s32.totalorder %s18, 1
      %s381 = scalar_select %p380, %s18, 1
      %p382 = scmp.lt.s32.totalorder %s19, 3
      %s383 = scalar_select %p382, %s19, 3
      %s384 = smul.addr %s381, 4
      %s385 = sadd.s32 %s383, %s384
      %s386 = smul.addr %s385, 4
      %s387 = scalar_lea.vmem %s3, %s386
      // Predicated region
      $region33: #{transformer_forward.29} parent=31 // pred_check
        %p388 = pneg %p130
      $region34: #{transformer_forward.29} parent=31 // pred_check_branch
        %390 = sbr.rel (%p388) target = $region36
      $region35: #{transformer_forward.29} parent=31 // pred_region
        _
      $region36: #{transformer_forward.29} parent=31 // pred_fallthru
        _
    $region32: #{transformer_forward.29} parent=5 // pred_fallthru
      _
    %p391 = scmp.le.s32.totalorder 2, %s9
    // Predicated region
    $region37: #{transformer_forward.29} parent=5 // pred_check
      %p392 = pneg %p391
    $region38: #{transformer_forward.29} parent=5 // pred_check_branch
      %394 = sbr.rel (%p392) target = $region40
    $region39: #{transformer_forward.29} parent=5 // pred_region
      %s395 = ssub.s32 %s9, 2
      // Predicated region
      $region41: #{transformer_forward.29} parent=39 // pred_check
        %p396 = pneg %p136
      $region42: #{transformer_forward.29} parent=39 // pred_check_branch
        %398 = sbr.rel (%p396) target = $region44
      $region43: #{transformer_forward.29} parent=39 // pred_region
        %p399 = scmp.lt.s32.totalorder %s20, 1
        %s400 = scalar_select %p399, %s20, 1
        %p401 = scmp.lt.s32.totalorder %s21, 3
        %s402 = scalar_select %p401, %s21, 3
        %s403 = smul.addr %s400, 4
        %s404 = sadd.s32 %s402, %s403
        %s405 = smul.addr %s404, 4
        %s406 = scalar_lea.vmem %s3, %s405
      $region44: #{transformer_forward.29} parent=39 // pred_fallthru
        _
    $region40: #{transformer_forward.29} parent=5 // pred_fallthru
      _
  $region6: #{transformer_forward.29} parent=0 // loop_footer
    %s13 = sadd.s32 1, %s9
  $region7: #{transformer_forward.29} parent=0 // loop_footer_branch
    %8 = sbr.rel target = $region3
  $region8: #{transformer_forward.29} parent=0 // loop_exit
    _

// kernel: transformer_forward.32
$region0: #{transformer_forward.32}
  #allocation0 [shape = 'u32[]', space=smem, size = 0x4, offset = 0x4, fixed_abs, tag = 'smem constant byte address 0x4 - core index']
  #allocation1 [shape = 'u32[144,128]{1,0:T(1,128)}', space=vmem, size = 0x12000, scoped, tag = 'internal scratch']
  %s0 = inlined_call_operand.vmem [shape: bf16[16,512], index: 0, kind: input, shape index: {}]
  %s1 = inlined_call_operand.vmem [shape: bf16[512,128], index: 1, kind: input, shape index: {}]
  %s2 = inlined_call_operand.vmem [shape: f32[1,128], index: 2, kind: input, shape index: {}]
  %s3 = inlined_call_operand.vmem [shape: bf16[16,128], index: 3, kind: input, shape index: {}]
  %s4 = inlined_call_operand.vmem [shape: f32[1,128], index: 4, kind: input, shape index: {}]
  %s5 = inlined_call_operand.vmem [shape: f32[1,128], index: 5, kind: input, shape index: {}]
  %s6 = inlined_call_operand.vmem [shape: bf16[16,128], index: 6, kind: output, shape index: {}]
  %s7 = sld [smem:[#allocation0]]
  $region34: #{transformer_forward.32} parent=0
    _
  %s9 = ssub.s32 1, %s7
  %s10 = scalar_select 0, %s9, %s7
  // Predicated region
  $region2: #{transformer_forward.32} parent=0 // pred_check
    _
  $region3: #{transformer_forward.32} parent=0 // pred_check_branch
    %12 = sbr.rel (0) target = $region5
  $region4: #{transformer_forward.32} parent=0 // pred_region
    _
  $region5: #{transformer_forward.32} parent=0 // pred_fallthru
    _
  // Predicated region
  $region6: #{transformer_forward.32} parent=0 // pred_check
    _
  $region7: #{transformer_forward.32} parent=0 // pred_check_branch
    %14 = sbr.rel (0) target = $region9
  $region8: #{transformer_forward.32} parent=0 // pred_region
    _
  $region9: #{transformer_forward.32} parent=0 // pred_fallthru
    _
  // Predicated region
  $region10: #{transformer_forward.32} parent=0 // pred_check
    _
  $region11: #{transformer_forward.32} parent=0 // pred_check_branch
    %16 = sbr.rel (0) target = $region13
  $region12: #{transformer_forward.32} parent=0 // pred_region
    _
  $region13: #{transformer_forward.32} parent=0 // pred_fallthru
    _
  // Predicated region
  $region14: #{transformer_forward.32} parent=0 // pred_check
    _
  $region15: #{transformer_forward.32} parent=0 // pred_check_branch
    %18 = sbr.rel (0) target = $region17
  $region16: #{transformer_forward.32} parent=0 // pred_region
    _
  $region17: #{transformer_forward.32} parent=0 // pred_fallthru
    _
  // Predicated region
  $region18: #{transformer_forward.32} parent=0 // pred_check
    _
  $region19: #{transformer_forward.32} parent=0 // pred_check_branch
    %20 = sbr.rel (0) target = $region21
  $region20: #{transformer_forward.32} parent=0 // pred_region
    _
  $region21: #{transformer_forward.32} parent=0 // pred_fallthru
    _
  // Predicated region
  $region22: #{transformer_forward.32} parent=0 // pred_check
    _
  $region23: #{transformer_forward.32} parent=0 // pred_check_branch
    %22 = sbr.rel (0) target = $region25
  $region24: #{transformer_forward.32} parent=0 // pred_region
    _
  $region25: #{transformer_forward.32} parent=0 // pred_fallthru
    _
  %v24 = vld [vmem:[%s0] sm:$0xff]
  %v25 = vld [vmem:[%s0 + $0x8] sm:$0xff]
  %v26 = vld [vmem:[%s0 + $0x10] sm:$0xff]
  %v27 = vld [vmem:[%s0 + $0x18] sm:$0xff]
  %v28 = vld [vmem:[%s1] sm:$0xf]
  %v29 = vld [vmem:[%s1 + $0x4] sm:$0xf]
  %v30 = vld [vmem:[%s1 + $0x8] sm:$0xf]
  %v31 = vld [vmem:[%s1 + $0xc] sm:$0xf]
  %v32 = vld [vmem:[%s1 + $0x10] sm:$0xf]
  %v33 = vld [vmem:[%s1 + $0x14] sm:$0xf]
  %v34 = vld [vmem:[%s1 + $0x18] sm:$0xf]
  %v35 = vld [vmem:[%s1 + $0x1c] sm:$0xf]
  %v36 = vld [vmem:[%s1 + $0x20] sm:$0xf]
  %v37 = vld [vmem:[%s1 + $0x24] sm:$0xf]
  %v38 = vld [vmem:[%s1 + $0x28] sm:$0xf]
  %v39 = vld [vmem:[%s1 + $0x2c] sm:$0xf]
  %v40 = vld [vmem:[%s1 + $0x30] sm:$0xf]
  %v41 = vld [vmem:[%s1 + $0x34] sm:$0xf]
  %v42 = vld [vmem:[%s1 + $0x38] sm:$0xf]
  %v43 = vld [vmem:[%s1 + $0x3c] sm:$0xf]
  %v44 = vld [vmem:[%s1 + $0x40] sm:$0xf]
  %v45 = vld [vmem:[%s1 + $0x44] sm:$0xf]
  %v46 = vld [vmem:[%s1 + $0x48] sm:$0xf]
  %v47 = vld [vmem:[%s1 + $0x4c] sm:$0xf]
  %v48 = vld [vmem:[%s1 + $0x50] sm:$0xf]
  %v49 = vld [vmem:[%s1 + $0x54] sm:$0xf]
  %v50 = vld [vmem:[%s1 + $0x58] sm:$0xf]
  %v51 = vld [vmem:[%s1 + $0x5c] sm:$0xf]
  %v52 = vld [vmem:[%s1 + $0x60] sm:$0xf]
  %v53 = vld [vmem:[%s1 + $0x64] sm:$0xf]
  %v54 = vld [vmem:[%s1 + $0x68] sm:$0xf]
  %v55 = vld [vmem:[%s1 + $0x6c] sm:$0xf]
  %v56 = vld [vmem:[%s1 + $0x70] sm:$0xf]
  %v57 = vld [vmem:[%s1 + $0x74] sm:$0xf]
  %v58 = vld [vmem:[%s1 + $0x78] sm:$0xf]
  %v59 = vld [vmem:[%s1 + $0x7c] sm:$0xf]
  %v60 = vld [vmem:[%s1 + $0x80] sm:$0xf]
  %v61 = vld [vmem:[%s1 + $0x84] sm:$0xf]
  %v62 = vld [vmem:[%s1 + $0x88] sm:$0xf]
  %v63 = vld [vmem:[%s1 + $0x8c] sm:$0xf]
  %v64 = vld [vmem:[%s1 + $0x90] sm:$0xf]
  %v65 = vld [vmem:[%s1 + $0x94] sm:$0xf]
  %v66 = vld [vmem:[%s1 + $0x98] sm:$0xf]
  %v67 = vld [vmem:[%s1 + $0x9c] sm:$0xf]
  %v68 = vld [vmem:[%s1 + $0xa0] sm:$0xf]
  %v69 = vld [vmem:[%s1 + $0xa4] sm:$0xf]
  %v70 = vld [vmem:[%s1 + $0xa8] sm:$0xf]
  %v71 = vld [vmem:[%s1 + $0xac] sm:$0xf]
  %v72 = vld [vmem:[%s1 + $0xb0] sm:$0xf]
  %v73 = vld [vmem:[%s1 + $0xb4] sm:$0xf]
  %v74 = vld [vmem:[%s1 + $0xb8] sm:$0xf]
  %v75 = vld [vmem:[%s1 + $0xbc] sm:$0xf]
  %v76 = vld [vmem:[%s1 + $0xc0] sm:$0xf]
  %v77 = vld [vmem:[%s1 + $0xc4] sm:$0xf]
  %v78 = vld [vmem:[%s1 + $0xc8] sm:$0xf]
  %v79 = vld [vmem:[%s1 + $0xcc] sm:$0xf]
  %v80 = vld [vmem:[%s1 + $0xd0] sm:$0xf]
  %v81 = vld [vmem:[%s1 + $0xd4] sm:$0xf]
  %v82 = vld [vmem:[%s1 + $0xd8] sm:$0xf]
  %v83 = vld [vmem:[%s1 + $0xdc] sm:$0xf]
  %v84 = vld [vmem:[%s1 + $0xe0] sm:$0xf]
  %v85 = vld [vmem:[%s1 + $0xe4] sm:$0xf]
  %v86 = vld [vmem:[%s1 + $0xe8] sm:$0xf]
  %v87 = vld [vmem:[%s1 + $0xec] sm:$0xf]
  %v88 = vld [vmem:[%s1 + $0xf0] sm:$0xf]
  %v89 = vld [vmem:[%s1 + $0xf4] sm:$0xf]
  %v90 = vld [vmem:[%s1 + $0xf8] sm:$0xf]
  %v91 = vld [vmem:[%s1 + $0xfc] sm:$0xf]
  %v92 = vld [vmem:[%s2] sm:$0x1]
  %v94 = vlaneseq
  %v95 = vshrl.u32 %v94, 7
  %v96 = vsub.s32 0, %v95
  %v97 = vrot.slane %v92, %v96
  %v103 = vunpack.c.l.b16 %v24
  %v104 = vunpack.c.h.b16 %v24
  %v105 = vunpack.c.l.b16 %v25
  %v106 = vunpack.c.h.b16 %v25
  %v107 = vunpack.c.l.b16 %v26
  %v108 = vunpack.c.h.b16 %v26
  %v109 = vunpack.c.l.b16 %v27
  %v110 = vunpack.c.h.b16 %v27
  %v111 = vpack.c.b16 %v107, %v103
  %v112 = vpack.c.b16 %v108, %v104
  %v113 = vpack.c.b16 %v109, %v105
  %v114 = vpack.c.b16 %v110, %v106
  %v183 = vunpack.c.l.b16 %v28
  %v184 = vunpack.c.l.b16 %v29
  %v185 = vunpack.c.l.b16 %v30
  %v186 = vunpack.c.l.b16 %v31
  %v187 = vunpack.c.l.b16 %v32
  %v188 = vunpack.c.l.b16 %v33
  %v189 = vunpack.c.l.b16 %v34
  %v190 = vunpack.c.l.b16 %v35
  %v191 = vunpack.c.l.b16 %v36
  %v192 = vunpack.c.l.b16 %v37
  %v193 = vunpack.c.l.b16 %v38
  %v194 = vunpack.c.l.b16 %v39
  %v195 = vunpack.c.l.b16 %v40
  %v196 = vunpack.c.l.b16 %v41
  %v197 = vunpack.c.l.b16 %v42
  %v198 = vunpack.c.l.b16 %v43
  %v199 = vunpack.c.l.b16 %v44
  %v200 = vunpack.c.l.b16 %v45
  %v201 = vunpack.c.l.b16 %v46
  %v202 = vunpack.c.l.b16 %v47
  %v203 = vunpack.c.l.b16 %v48
  %v204 = vunpack.c.l.b16 %v49
  %v205 = vunpack.c.l.b16 %v50
  %v206 = vunpack.c.l.b16 %v51
  %v207 = vunpack.c.l.b16 %v52
  %v208 = vunpack.c.l.b16 %v53
  %v209 = vunpack.c.l.b16 %v54
  %v210 = vunpack.c.l.b16 %v55
  %v211 = vunpack.c.l.b16 %v56
  %v212 = vunpack.c.l.b16 %v57
  %v213 = vunpack.c.l.b16 %v58
  %v214 = vunpack.c.l.b16 %v59
  %v215 = vunpack.c.l.b16 %v60
  %v216 = vunpack.c.l.b16 %v61
  %v217 = vunpack.c.l.b16 %v62
  %v218 = vunpack.c.l.b16 %v63
  %v219 = vunpack.c.l.b16 %v64
  %v220 = vunpack.c.l.b16 %v65
  %v221 = vunpack.c.l.b16 %v66
  %v222 = vunpack.c.l.b16 %v67
  %v223 = vunpack.c.l.b16 %v68
  %v224 = vunpack.c.l.b16 %v69
  %v225 = vunpack.c.l.b16 %v70
  %v226 = vunpack.c.l.b16 %v71
  %v227 = vunpack.c.l.b16 %v72
  %v228 = vunpack.c.l.b16 %v73
  %v229 = vunpack.c.l.b16 %v74
  %v230 = vunpack.c.l.b16 %v75
  %v231 = vunpack.c.l.b16 %v76
  %v232 = vunpack.c.l.b16 %v77
  %v233 = vunpack.c.l.b16 %v78
  %v234 = vunpack.c.l.b16 %v79
  %v235 = vunpack.c.l.b16 %v80
  %v236 = vunpack.c.l.b16 %v81
  %v237 = vunpack.c.l.b16 %v82
  %v238 = vunpack.c.l.b16 %v83
  %v239 = vunpack.c.l.b16 %v84
  %v240 = vunpack.c.l.b16 %v85
  %v241 = vunpack.c.l.b16 %v86
  %v242 = vunpack.c.l.b16 %v87
  %v243 = vunpack.c.l.b16 %v88
  %v244 = vunpack.c.l.b16 %v89
  %v245 = vunpack.c.l.b16 %v90
  %v246 = vunpack.c.l.b16 %v91
  %v247 = vpack.c.b16 %v184, %v183
  %v248 = vpack.c.b16 %v186, %v185
  %v249 = vpack.c.b16 %v188, %v187
  %v250 = vpack.c.b16 %v190, %v189
  %v251 = vpack.c.b16 %v192, %v191
  %v252 = vpack.c.b16 %v194, %v193
  %v253 = vpack.c.b16 %v196, %v195
  %v254 = vpack.c.b16 %v198, %v197
  %v255 = vpack.c.b16 %v200, %v199
  %v256 = vpack.c.b16 %v202, %v201
  %v257 = vpack.c.b16 %v204, %v203
  %v258 = vpack.c.b16 %v206, %v205
  %v259 = vpack.c.b16 %v208, %v207
  %v260 = vpack.c.b16 %v210, %v209
  %v261 = vpack.c.b16 %v212, %v211
  %v262 = vpack.c.b16 %v214, %v213
  %v263 = vpack.c.b16 %v216, %v215
  %v264 = vpack.c.b16 %v218, %v217
  %v265 = vpack.c.b16 %v220, %v219
  %v266 = vpack.c.b16 %v222, %v221
  %v267 = vpack.c.b16 %v224, %v223
  %v268 = vpack.c.b16 %v226, %v225
  %v269 = vpack.c.b16 %v228, %v227
  %v270 = vpack.c.b16 %v230, %v229
  %v271 = vpack.c.b16 %v232, %v231
  %v272 = vpack.c.b16 %v234, %v233
  %v273 = vpack.c.b16 %v236, %v235
  %v274 = vpack.c.b16 %v238, %v237
  %v275 = vpack.c.b16 %v240, %v239
  %v276 = vpack.c.b16 %v242, %v241
  %v277 = vpack.c.b16 %v244, %v243
  %v278 = vpack.c.b16 %v246, %v245
  %311 = vmatprep.subr.bf16.mxu0 0
  %312 = vmatpush1.bf16.msra.mxu0 %v254
  %313 = vmatprep.subr.bf16.mxu0 0
  %314 = vmatpush1.bf16.msra.mxu0 %v253
  %315 = vmatprep.subr.bf16.mxu0 0
  %316 = vmatpush1.bf16.msra.mxu0 %v252
  %317 = vmatprep.subr.bf16.mxu0 0
  %318 = vmatpush1.bf16.msra.mxu0 %v251
  %319 = vmatprep.subr.bf16.mxu0 0
  %320 = vmatpush1.bf16.msra.mxu0 %v250
  %321 = vmatprep.subr.bf16.mxu0 0
  %322 = vmatpush1.bf16.msra.mxu0 %v249
  %323 = vmatprep.subr.bf16.mxu0 0
  %324 = vmatpush1.bf16.msra.mxu0 %v248
  %325 = vmatprep.subr.bf16.mxu0 0
  %326 = vmatpush1.bf16.msra.mxu0 %v247
  %327 = vmatprep.subr.bf16.mxu0 0
  %328 = vmatpush2.bf16.msra.mxu0 %v262
  %329 = vmatprep.subr.bf16.mxu0 0
  %330 = vmatpush2.bf16.msra.mxu0 %v261
  %331 = vmatprep.subr.bf16.mxu0 0
  %332 = vmatpush2.bf16.msra.mxu0 %v260
  %333 = vmatprep.subr.bf16.mxu0 0
  %334 = vmatpush2.bf16.msra.mxu0 %v259
  %335 = vmatprep.subr.bf16.mxu0 0
  %336 = vmatpush2.bf16.msra.mxu0 %v258
  %337 = vmatprep.subr.bf16.mxu0 0
  %338 = vmatpush2.bf16.msra.mxu0 %v257
  %339 = vmatprep.subr.bf16.mxu0 0
  %340 = vmatpush2.bf16.msra.mxu0 %v256
  %341 = vmatprep.subr.bf16.mxu0 0
  %342 = vmatpush2.bf16.msra.mxu0 %v255
  %343 = vmatprep.mubr.bf16.mxu0 %v112
  %344 = vmatmul.mubr.bf16.gmra.mxu0 %v111
  %v345 = vpop.f32.mrf.mxu0
  %v346 = vadd.f32 %v97, %v345
  %v347 = vpop.f32.mrf.mxu0
  %v348 = vpop.f32.mrf.mxu0
  %v349 = vadd.f32 %v97, %v348
  %v350 = vpop.f32.mrf.mxu0
  %351 = vdwg.mxu0
  %352 = vmatprep.subr.bf16.mxu0 0
  %353 = vmatpush1.bf16.msra.mxu0 %v270
  %354 = vmatprep.subr.bf16.mxu0 0
  %355 = vmatpush1.bf16.msra.mxu0 %v269
  %356 = vmatprep.subr.bf16.mxu0 0
  %357 = vmatpush1.bf16.msra.mxu0 %v268
  %358 = vmatprep.subr.bf16.mxu0 0
  %359 = vmatpush1.bf16.msra.mxu0 %v267
  %360 = vmatprep.subr.bf16.mxu0 0
  %361 = vmatpush1.bf16.msra.mxu0 %v266
  %362 = vmatprep.subr.bf16.mxu0 0
  %363 = vmatpush1.bf16.msra.mxu0 %v265
  %364 = vmatprep.subr.bf16.mxu0 0
  %365 = vmatpush1.bf16.msra.mxu0 %v264
  %366 = vmatprep.subr.bf16.mxu0 0
  %367 = vmatpush1.bf16.msra.mxu0 %v263
  %368 = vmatprep.subr.bf16.mxu0 0
  %369 = vmatpush2.bf16.msra.mxu0 %v278
  %370 = vmatprep.subr.bf16.mxu0 0
  %371 = vmatpush2.bf16.msra.mxu0 %v277
  %372 = vmatprep.subr.bf16.mxu0 0
  %373 = vmatpush2.bf16.msra.mxu0 %v276
  %374 = vmatprep.subr.bf16.mxu0 0
  %375 = vmatpush2.bf16.msra.mxu0 %v275
  %376 = vmatprep.subr.bf16.mxu0 0
  %377 = vmatpush2.bf16.msra.mxu0 %v274
  %378 = vmatprep.subr.bf16.mxu0 0
  %379 = vmatpush2.bf16.msra.mxu0 %v273
  %380 = vmatprep.subr.bf16.mxu0 0
  %381 = vmatpush2.bf16.msra.mxu0 %v272
  %382 = vmatprep.subr.bf16.mxu0 0
  %383 = vmatpush2.bf16.msra.mxu0 %v271
  %384 = vmatprep.mubr.bf16.mxu0 %v114
  %385 = vmatmul.mubr.bf16.gmra.mxu0 %v113
  %v386 = vpop.f32.mrf.mxu0
  %v387 = vadd.f32 %v346, %v386
  %v388 = vpop.f32.mrf.mxu0
  %v389 = vpop.f32.mrf.mxu0
  %v390 = vadd.f32 %v349, %v389
  %v391 = vpop.f32.mrf.mxu0
  %392 = vdwg.mxu0
  %v393 = vld [vmem:[%s3] sm:$0xf]
  %v394 = vld [vmem:[%s3 + $0x4] sm:$0xf]
  %v395 = vunpack.c.l.bf16 %v393
  %v396 = vunpack.c.l.bf16 %v394
  %v397 = vadd.f32 %v387, %v395
  %v398 = vadd.f32 %v390, %v396
  %v399 = vld [vmem:[%s4] sm:$0x1]
  %v400 = vld [vmem:[%s5] sm:$0x1]
  %401 = vadd.xlane.f32.xlu0 %v397
  %v402 = vpop.xlane.xlu0 %401
  %403 = vadd.xlane.f32.xlu0 %v398
  %v404 = vpop.xlane.xlu0 %403
  %v405 = vrcp.pop 128.0
  %v406 = vmul.f32 %v402, %v405
  %v407 = vmul.f32 %v404, %v405
  %v408 = vsub.f32 %v397, %v406
  %v409 = vsub.f32 %v398, %v407
  %v410 = vmul.f32 %v408, %v408
  %v411 = vmul.f32 %v409, %v409
  %412 = vadd.xlane.f32.xlu0 %v410
  %v413 = vpop.xlane.xlu0 %412
  %414 = vadd.xlane.f32.xlu0 %v411
  %v415 = vpop.xlane.xlu0 %414
  %v416 = vmul.f32 %v413, %v405
  %v417 = vmul.f32 %v415, %v405
  %v418 = vadd.f32 %v416, 1e-05
  %v419 = vadd.f32 %v417, 1e-05
  %v420 = vrsqrt.pop %v418
  %v421 = vrsqrt.pop %v419
  %v422 = vmul.f32 %v408, %v420
  %v423 = vmul.f32 %v409, %v421
  %v425 = vlaneseq
  %v426 = vshrl.u32 %v425, 7
  %v427 = vsub.s32 0, %v426
  %v428 = vrot.slane %v399, %v427
  %v430 = vmul.f32 %v422, %v428
  %v431 = vmul.f32 %v423, %v428
  %v433 = vlaneseq
  %v434 = vshrl.u32 %v433, 7
  %v435 = vsub.s32 0, %v434
  %v436 = vrot.slane %v400, %v435
  %v438 = vadd.f32 %v430, %v436
  %v439 = vadd.f32 %v431, %v436
  %v440 = vpack.c.bf16 %v439, %v438
  %v442 = vunpack.c.l.b16 %v440
  %v443 = vunpack.c.h.b16 %v440
  %v444 = vpack.c.b16 %v442, %v442
  %v445 = vpack.c.b16 %v443, %v443
  %448 = vst [vmem:[%s6] sm:$0xf] %v444
  %449 = vst [vmem:[%s6 + $0x4] sm:$0xf] %v445
  // Predicated region
  $region26: #{transformer_forward.32} parent=0 // pred_check
    _
  $region27: #{transformer_forward.32} parent=0 // pred_check_branch
    %451 = sbr.rel (0) target = $region29
  $region28: #{transformer_forward.32} parent=0 // pred_region
    _
  $region29: #{transformer_forward.32} parent=0 // pred_fallthru
    _
  // Predicated region
  $region30: #{transformer_forward.32} parent=0 // pred_check
    _
  $region31: #{transformer_forward.32} parent=0 // pred_check_branch
    %453 = sbr.rel (0) target = $region33
  $region32: #{transformer_forward.32} parent=0 // pred_region
    _
  $region33: #{transformer_forward.32} parent=0 // pred_fallthru
    _

// kernel: transformer_forward.42
$region0: #{transformer_forward.42}
  #allocation0 [shape = 'u32[]', space=smem, size = 0x4, offset = 0x4, fixed_abs, tag = 'smem constant byte address 0x4 - core index']
  #allocation1 [shape = 'u32[144,128]{1,0:T(1,128)}', space=vmem, size = 0x12000, scoped, tag = 'internal scratch']
  %s0 = inlined_call_operand.vmem [shape: bf16[16,128], index: 0, kind: input, shape index: {}]
  %s1 = inlined_call_operand.vmem [shape: bf16[128,256], index: 1, kind: input, shape index: {}]
  %s2 = inlined_call_operand.vmem [shape: f32[1,256], index: 2, kind: input, shape index: {}]
  %s3 = inlined_call_operand.vmem [shape: bf16[16,256], index: 3, kind: output, shape index: {}]
  %s4 = sld [smem:[#allocation0]]
  $region22: #{transformer_forward.42} parent=0
    _
  %s6 = ssub.s32 1, %s4
  %s7 = scalar_select 0, %s6, %s4
  // Predicated region
  $region2: #{transformer_forward.42} parent=0 // pred_check
    _
  $region3: #{transformer_forward.42} parent=0 // pred_check_branch
    %9 = sbr.rel (0) target = $region5
  $region4: #{transformer_forward.42} parent=0 // pred_region
    _
  $region5: #{transformer_forward.42} parent=0 // pred_fallthru
    _
  // Predicated region
  $region6: #{transformer_forward.42} parent=0 // pred_check
    _
  $region7: #{transformer_forward.42} parent=0 // pred_check_branch
    %11 = sbr.rel (0) target = $region9
  $region8: #{transformer_forward.42} parent=0 // pred_region
    _
  $region9: #{transformer_forward.42} parent=0 // pred_fallthru
    _
  // Predicated region
  $region10: #{transformer_forward.42} parent=0 // pred_check
    _
  $region11: #{transformer_forward.42} parent=0 // pred_check_branch
    %13 = sbr.rel (0) target = $region13
  $region12: #{transformer_forward.42} parent=0 // pred_region
    _
  $region13: #{transformer_forward.42} parent=0 // pred_fallthru
    _
  %v15 = vld [vmem:[%s0] sm:$0xf]
  %v16 = vld [vmem:[%s0 + $0x4] sm:$0xf]
  %v17 = vld [vmem:[%s1] sm:$0xff]
  %v18 = vld [vmem:[%s1 + $0x8] sm:$0xff]
  %v19 = vld [vmem:[%s1 + $0x10] sm:$0xff]
  %v20 = vld [vmem:[%s1 + $0x18] sm:$0xff]
  %v21 = vld [vmem:[%s1 + $0x20] sm:$0xff]
  %v22 = vld [vmem:[%s1 + $0x28] sm:$0xff]
  %v23 = vld [vmem:[%s1 + $0x30] sm:$0xff]
  %v24 = vld [vmem:[%s1 + $0x38] sm:$0xff]
  %v25 = vld [vmem:[%s1 + $0x40] sm:$0xff]
  %v26 = vld [vmem:[%s1 + $0x48] sm:$0xff]
  %v27 = vld [vmem:[%s1 + $0x50] sm:$0xff]
  %v28 = vld [vmem:[%s1 + $0x58] sm:$0xff]
  %v29 = vld [vmem:[%s1 + $0x60] sm:$0xff]
  %v30 = vld [vmem:[%s1 + $0x68] sm:$0xff]
  %v31 = vld [vmem:[%s1 + $0x70] sm:$0xff]
  %v32 = vld [vmem:[%s1 + $0x78] sm:$0xff]
  %v33 = vld [vmem:[%s2] sm:$0x3]
  %v35 = vlaneseq
  %v36 = vshrl.u32 %v35, 7
  %v37 = vsub.s32 0, %v36
  %v38 = vrot.slane %v33, %v37
  %v39 = vlaneseq
  %v40 = vshrl.u32 %v39, 7
  %v41 = vsub.s32 1, %v40
  %v42 = vrot.slane %v33, %v41
  %v47 = vunpack.c.l.b16 %v15
  %v48 = vunpack.c.l.b16 %v16
  %v49 = vpack.c.b16 %v48, %v47
  %v67 = vunpack.c.l.b16 %v17
  %v68 = vunpack.c.h.b16 %v17
  %v69 = vunpack.c.l.b16 %v18
  %v70 = vunpack.c.h.b16 %v18
  %v71 = vunpack.c.l.b16 %v19
  %v72 = vunpack.c.h.b16 %v19
  %v73 = vunpack.c.l.b16 %v20
  %v74 = vunpack.c.h.b16 %v20
  %v75 = vunpack.c.l.b16 %v21
  %v76 = vunpack.c.h.b16 %v21
  %v77 = vunpack.c.l.b16 %v22
  %v78 = vunpack.c.h.b16 %v22
  %v79 = vunpack.c.l.b16 %v23
  %v80 = vunpack.c.h.b16 %v23
  %v81 = vunpack.c.l.b16 %v24
  %v82 = vunpack.c.h.b16 %v24
  %v83 = vunpack.c.l.b16 %v25
  %v84 = vunpack.c.h.b16 %v25
  %v85 = vunpack.c.l.b16 %v26
  %v86 = vunpack.c.h.b16 %v26
  %v87 = vunpack.c.l.b16 %v27
  %v88 = vunpack.c.h.b16 %v27
  %v89 = vunpack.c.l.b16 %v28
  %v90 = vunpack.c.h.b16 %v28
  %v91 = vunpack.c.l.b16 %v29
  %v92 = vunpack.c.h.b16 %v29
  %v93 = vunpack.c.l.b16 %v30
  %v94 = vunpack.c.h.b16 %v30
  %v95 = vunpack.c.l.b16 %v31
  %v96 = vunpack.c.h.b16 %v31
  %v97 = vunpack.c.l.b16 %v32
  %v98 = vunpack.c.h.b16 %v32
  %v99 = vpack.c.b16 %v69, %v67
  %v100 = vpack.c.b16 %v70, %v68
  %v101 = vpack.c.b16 %v73, %v71
  %v102 = vpack.c.b16 %v74, %v72
  %v103 = vpack.c.b16 %v77, %v75
  %v104 = vpack.c.b16 %v78, %v76
  %v105 = vpack.c.b16 %v81, %v79
  %v106 = vpack.c.b16 %v82, %v80
  %v107 = vpack.c.b16 %v85, %v83
  %v108 = vpack.c.b16 %v86, %v84
  %v109 = vpack.c.b16 %v89, %v87
  %v110 = vpack.c.b16 %v90, %v88
  %v111 = vpack.c.b16 %v93, %v91
  %v112 = vpack.c.b16 %v94, %v92
  %v113 = vpack.c.b16 %v97, %v95
  %v114 = vpack.c.b16 %v98, %v96
  %131 = vmatprep.subr.bf16.mxu0 %v114
  %132 = vmatpush1.bf16.msra.mxu0 %v113
  %133 = vmatprep.subr.bf16.mxu0 %v112
  %134 = vmatpush1.bf16.msra.mxu0 %v111
  %135 = vmatprep.subr.bf16.mxu0 %v110
  %136 = vmatpush1.bf16.msra.mxu0 %v109
  %137 = vmatprep.subr.bf16.mxu0 %v108
  %138 = vmatpush1.bf16.msra.mxu0 %v107
  %139 = vmatprep.subr.bf16.mxu0 %v106
  %140 = vmatpush1.bf16.msra.mxu0 %v105
  %141 = vmatprep.subr.bf16.mxu0 %v104
  %142 = vmatpush1.bf16.msra.mxu0 %v103
  %143 = vmatprep.subr.bf16.mxu0 %v102
  %144 = vmatpush1.bf16.msra.mxu0 %v101
  %145 = vmatprep.subr.bf16.mxu0 %v100
  %146 = vmatpush1.bf16.msra.mxu0 %v99
  %147 = vmatprep.subr.bf16.mxu0 0
  %148 = vmatpush2.bf16.msra.mxu0 0
  %149 = vmatprep.subr.bf16.mxu0 0
  %150 = vmatpush2.bf16.msra.mxu0 0
  %151 = vmatprep.subr.bf16.mxu0 0
  %152 = vmatpush2.bf16.msra.mxu0 0
  %153 = vmatprep.subr.bf16.mxu0 0
  %154 = vmatpush2.bf16.msra.mxu0 0
  %155 = vmatprep.subr.bf16.mxu0 0
  %156 = vmatpush2.bf16.msra.mxu0 0
  %157 = vmatprep.subr.bf16.mxu0 0
  %158 = vmatpush2.bf16.msra.mxu0 0
  %159 = vmatprep.subr.bf16.mxu0 0
  %160 = vmatpush2.bf16.msra.mxu0 0
  %161 = vmatprep.subr.bf16.mxu0 0
  %162 = vmatpush2.bf16.msra.mxu0 0
  %163 = vmatprep.mubr.bf16.mxu0 0
  %164 = vmatmul.mubr.bf16.gmra.mxu0 %v49
  %v165 = vpop.f32.mrf.mxu0
  %v166 = vadd.f32 %v38, %v165
  %v167 = vpop.f32.mrf.mxu0
  %v168 = vadd.f32 %v42, %v167
  %v169 = vpop.f32.mrf.mxu0
  %v170 = vadd.f32 %v38, %v169
  %v171 = vpop.f32.mrf.mxu0
  %v172 = vadd.f32 %v42, %v171
  %173 = vdwg.mxu0
  %v174 = vpack.c.bf16 %v170, %v166
  %v175 = vpack.c.bf16 %v172, %v168
  %v178 = vunpack.c.l.b16 %v174
  %v179 = vunpack.c.l.b16 %v175
  %v180 = vunpack.c.h.b16 %v174
  %v181 = vunpack.c.h.b16 %v175
  %v182 = vpack.c.b16 %v179, %v178
  %v183 = vpack.c.b16 %v181, %v180
  %186 = vst [vmem:[%s3] sm:$0xff] %v182
  %187 = vst [vmem:[%s3 + $0x8] sm:$0xff] %v183
  // Predicated region
  $region14: #{transformer_forward.42} parent=0 // pred_check
    _
  $region15: #{transformer_forward.42} parent=0 // pred_check_branch
    %189 = sbr.rel (0) target = $region17
  $region16: #{transformer_forward.42} parent=0 // pred_region
    _
  $region17: #{transformer_forward.42} parent=0 // pred_fallthru
    _
  // Predicated region
  $region18: #{transformer_forward.42} parent=0 // pred_check
    _
  $region19: #{transformer_forward.42} parent=0 // pred_check_branch
    %191 = sbr.rel (0) target = $region21
  $region20: #{transformer_forward.42} parent=0 // pred_region
    _
  $region21: #{transformer_forward.42} parent=0 // pred_fallthru
    _

</llo_original>
